<compile_context>
chip_gen: v7x
topology: tpu7x:2x2x1
jax: 0.10.0
libtpu: 0.0.40
codegen_flags: <defaults>
</compile_context>

<pallas_src>
import functools
import math

import jax
import jax.numpy as jnp
from jax.experimental import pallas as pl
from jax.experimental.pallas import tpu as pltpu

LANE = 128  # lane-pad width for the final output slab


# ----------------------------- kernel helpers -------------------------------

def _layernorm(x, g, b, eps=1e-5):
    mean = jnp.mean(x, axis=-1, keepdims=True)
    var = jnp.mean(jnp.square(x - mean), axis=-1, keepdims=True)
    return (x - mean) * jax.lax.rsqrt(var + eps) * g + b


def _fused_forward_kernel(x_ref, t_ref,
                          ln1_g, ln1_b, wqkvT, b_in,
                          bias_k, bias_v, woT, bo,
                          ln2_g, ln2_b, wt, bt,
                          ln3_g, ln3_b,
                          wfT, bf,
                          o_ref, *, depth, num_heads):
    """Full forward: depth x (LN1 -> MHA(add_bias_kv) -> LN2 -> +t_embed -> LN3),
    then the final Linear(E, nodes) into a lane-padded output slab."""
    h = x_ref[...]                          # (B, E) f32
    t = t_ref[...]                          # (B, 1) f32
    B, E = h.shape
    hd = E // num_heads
    scale = 1.0 / math.sqrt(hd)

    for d in range(depth):                  # static unroll (depth is tiny)
        xn = _layernorm(h, ln1_g[d], ln1_b[d])

        # ---- fused QKV projection: one (B,E)x(E,3E) bf16 matmul, f32 acc ----
        qkv = jnp.dot(xn.astype(jnp.bfloat16), wqkvT[d],
                      preferred_element_type=jnp.float32) + b_in[d]
        q, k, v = qkv[:, :E], qkv[:, E:2 * E], qkv[:, 2 * E:]

        bk = bias_k[d]                      # (1, E)
        bv = bias_v[d]                      # (1, E)

        # ---- per-head attention core (tiny (B,B) score math only) -----------
        outs = []
        for hh in range(num_heads):
            sl = slice(hh * hd, (hh + 1) * hd)
            qh, kh, vh = q[:, sl], k[:, sl], v[:, sl]
            # scores against the B real keys and the single bias_kv key
            s_k = jax.lax.dot_general(qh, kh, (((1,), (1,)), ((), ())),
                                      preferred_element_type=jnp.float32) * scale
            s_b = jnp.sum(qh * bk[:, sl], axis=-1, keepdims=True) * scale
            # joint softmax over [real keys ++ bias key] without concatenation
            m = jnp.maximum(jnp.max(s_k, axis=-1, keepdims=True), s_b)
            e_k = jnp.exp(s_k - m)
            e_b = jnp.exp(s_b - m)
            inv = pl.reciprocal(jnp.sum(e_k, axis=-1, keepdims=True) + e_b,
                                approx=True)
            outs.append((jnp.dot(e_k, vh, preferred_element_type=jnp.float32)
                         + e_b * bv[:, sl]) * inv)            # (B, hd)
        o = jnp.concatenate(outs, axis=-1)                    # (B, E) lane-dense

        # ---- single fused output projection ---------------------------------
        attn_out = jnp.dot(o.astype(jnp.bfloat16), woT[d],
                           preferred_element_type=jnp.float32) + bo[d]

        x2 = _layernorm(h + attn_out, ln2_g[d], ln2_b[d])
        t_embed = t * wt[d] + bt[d]          # context_embed: Linear(1, E)
        # reference: x_mlp = self.mlp(x) is overwritten by x + t_embed (dead)
        h = _layernorm(2.0 * x2 + t_embed, ln3_g[d], ln3_b[d])

    # ---- final Linear(E, nodes), lane-padded to LANE output columns ---------
    o_ref[...] = (jnp.dot(h.astype(jnp.bfloat16), wfT[...],
                          preferred_element_type=jnp.float32) + bf[...])


# ------------------------------- wrappers ------------------------------------

def input_embed(x, c, id_table, cond_embed):
    """InputEmbedder.forward — pure broadcast/concat glue (no heavy compute)."""
    B, N = x.shape
    H = id_table.shape[1]
    value = jnp.broadcast_to(x[:, :, None], (B, N, H))
    ids = jnp.broadcast_to(id_table[None], (B, N, H))
    cond = cond_embed[None, None, :] * c[:, :, None]
    out = jnp.concatenate([value, ids, cond], axis=-1)
    return out.reshape(B, N * 3 * H)


def transformer_forward(x, c, t, params):
    h = input_embed(x, c, params["id_embed"], params["cond_embed"])
    B, _ = h.shape
    s = params["stacked"]
    args = (h, t,
            s["ln1_g"], s["ln1_b"], s["wqkvT"], s["b_in"],
            s["bias_k"], s["bias_v"], s["woT"], s["bo"],
            s["ln2_g"], s["ln2_b"], s["wt"], s["bt"],
            s["ln3_g"], s["ln3_b"],
            params["final_wT_pad"], params["final_b_pad"])
    kernel = functools.partial(_fused_forward_kernel,
                               depth=params["depth"],
                               num_heads=params["num_heads"])
    out = pl.pallas_call(
        kernel,
        out_shape=jax.ShapeDtypeStruct((B, LANE), jnp.float32),
        in_specs=[pl.BlockSpec(memory_space=pltpu.MemorySpace.VMEM)] * len(args),
        out_specs=pl.BlockSpec(memory_space=pltpu.MemorySpace.VMEM),
    )(*args)
    return out[:, :params["nodes_size"]]


# --------------------------- parameter construction --------------------------

def init_params(key, nodes_size, hidden_size, depth, num_heads):
    E = 3 * nodes_size * hidden_size
    assert E % num_heads == 0
    keys = jax.random.split(key, 4 + depth)

    params = {
        "nodes_size": nodes_size,
        "depth": depth,
        "num_heads": num_heads,
        "id_embed": 0.1 * jax.random.normal(keys[0], (nodes_size, hidden_size), jnp.float32),
        "cond_embed": 0.5 * jax.random.normal(keys[1], (hidden_size,), jnp.float32),
        "final_wT": 0.05 * jax.random.normal(keys[2], (E, nodes_size), jnp.float32),
        "final_b": 0.05 * jax.random.normal(keys[3], (1, nodes_size), jnp.float32),
        "blocks_raw": [],
    }

    for d in range(depth):
        k = jax.random.split(keys[4 + d], 14)
        raw = dict(
            w_in=0.05 * jax.random.normal(k[0], (3 * E, E), jnp.float32),
            b_in=0.05 * jax.random.normal(k[1], (3 * E,), jnp.float32),
            bias_k=0.05 * jax.random.normal(k[2], (E,), jnp.float32),
            bias_v=0.05 * jax.random.normal(k[3], (E,), jnp.float32),
            w_out=0.05 * jax.random.normal(k[4], (E, E), jnp.float32),
            b_out=0.05 * jax.random.normal(k[5], (E,), jnp.float32),
            w_ctx=0.1 * jax.random.normal(k[6], (E, 1), jnp.float32),
            b_ctx=0.1 * jax.random.normal(k[7], (E,), jnp.float32),
        )
        for i, name in enumerate(("ln1", "ln2", "ln3")):
            raw[name + "_g"] = 1.0 + 0.1 * jax.random.normal(k[8 + 2 * i], (E,), jnp.float32)
            raw[name + "_b"] = 0.1 * jax.random.normal(k[9 + 2 * i], (E,), jnp.float32)
        params["blocks_raw"].append(raw)

    # --- stacked, kernel-ready parameters (one leading depth axis) -----------
    def stack(fn):
        return jnp.stack([fn(r) for r in params["blocks_raw"]])

    params["stacked"] = {
        "ln1_g": stack(lambda r: r["ln1_g"].reshape(1, E)),
        "ln1_b": stack(lambda r: r["ln1_b"].reshape(1, E)),
        "ln2_g": stack(lambda r: r["ln2_g"].reshape(1, E)),
        "ln2_b": stack(lambda r: r["ln2_b"].reshape(1, E)),
        "ln3_g": stack(lambda r: r["ln3_g"].reshape(1, E)),
        "ln3_b": stack(lambda r: r["ln3_b"].reshape(1, E)),
        # fused in-projection, pre-transposed, bf16 for the MXU: (D, E, 3E)
        "wqkvT": stack(lambda r: r["w_in"].T.astype(jnp.bfloat16)),
        "b_in": stack(lambda r: r["b_in"].reshape(1, 3 * E)),
        "bias_k": stack(lambda r: r["bias_k"].reshape(1, E)),
        "bias_v": stack(lambda r: r["bias_v"].reshape(1, E)),
        # output projection, pre-transposed, bf16: (D, E, E)
        "woT": stack(lambda r: r["w_out"].T.astype(jnp.bfloat16)),
        "bo": stack(lambda r: r["b_out"].reshape(1, E)),
        "wt": stack(lambda r: r["w_ctx"].reshape(1, E)),
        "bt": stack(lambda r: r["b_ctx"].reshape(1, E)),
    }

    # final linear, lane-padded to LANE output columns (unmasked stores)
    wf = jnp.zeros((E, LANE), jnp.float32).at[:, :nodes_size].set(params["final_wT"])
    bf = jnp.zeros((1, LANE), jnp.float32).at[:, :nodes_size].set(params["final_b"])
    params["final_wT_pad"] = wf.astype(jnp.bfloat16)
    params["final_b_pad"] = bf
    return params


# ------------------------- pure-JAX reference (check) ------------------------

def ref_transformer(x, c, t, params, num_heads):
    P = jax.lax.Precision.HIGHEST
    h = input_embed(x, c, params["id_embed"], params["cond_embed"])
    B, E = h.shape
    hd = E // num_heads
    for r in params["blocks_raw"]:
        xn = _layernorm(h, r["ln1_g"], r["ln1_b"])
        qkv = jnp.dot(xn, r["w_in"].T, precision=P) + r["b_in"]
        q, k, v = qkv[:, :E], qkv[:, E:2 * E], qkv[:, 2 * E:]
        k = jnp.concatenate([k, r["bias_k"][None, :]], axis=0)
        v = jnp.concatenate([v, r["bias_v"][None, :]], axis=0)
        qh = q.reshape(B, num_heads, hd).transpose(1, 0, 2)
        kh = k.reshape(B + 1, num_heads, hd).transpose(1, 0, 2)
        vh = v.reshape(B + 1, num_heads, hd).transpose(1, 0, 2)
        s = jnp.einsum("hqd,hkd->hqk", qh, kh, precision=P) / math.sqrt(hd)
        a = jax.nn.softmax(s, axis=-1)
        o = jnp.einsum("hqk,hkd->hqd", a, vh, precision=P).transpose(1, 0, 2).reshape(B, E)
        attn_out = jnp.dot(o, r["w_out"].T, precision=P) + r["b_out"]
        x2 = _layernorm(h + attn_out, r["ln2_g"], r["ln2_b"])
        t_embed = jnp.dot(t, r["w_ctx"].T, precision=P) + r["b_ctx"]
        h = _layernorm(2.0 * x2 + t_embed, r["ln3_g"], r["ln3_b"])
    return jnp.dot(h, params["final_wT"], precision=P) + params["final_b"]


# ---------------------------------- main --------------------------------------

if __name__ == "__main__":
    nodes_size, hidden_size, depth, num_heads = 4, 8, 2, 4   # E = 3*4*8 = 96
    B = 4

    key = jax.random.PRNGKey(0)
    kx, kc, kt, kp = jax.random.split(key, 4)
    x = jax.random.normal(kx, (B, nodes_size), jnp.float32)
    c = (jax.random.uniform(kc, (B, nodes_size)) > 0.5).astype(jnp.float32)
    t = jax.random.uniform(kt, (B, 1), jnp.float32)

    params = init_params(kp, nodes_size, hidden_size, depth, num_heads)

    out = jax.block_until_ready(transformer_forward(x, c, t, params))
    assert out.shape == (B, nodes_size), out.shape

    ref = jax.block_until_ready(ref_transformer(x, c, t, params, num_heads))
    max_err = float(jnp.max(jnp.abs(out - ref)))
    assert max_err < 5e-2, f"mismatch vs reference: {max_err}"

    print("KERNEL_OK")
</pallas_src>

<mosaic_0001>
module attributes {stable_mosaic.version = 11 : i64} {
  func.func @_fused_forward_kernel(%arg0: memref<4x96xf32, #tpu.memory_space<vmem>>, %arg1: memref<4x1xf32, #tpu.memory_space<vmem>>, %arg2: memref<2x1x96xf32, #tpu.memory_space<vmem>>, %arg3: memref<2x1x96xf32, #tpu.memory_space<vmem>>, %arg4: memref<2x96x288xbf16, #tpu.memory_space<vmem>>, %arg5: memref<2x1x288xf32, #tpu.memory_space<vmem>>, %arg6: memref<2x1x96xf32, #tpu.memory_space<vmem>>, %arg7: memref<2x1x96xf32, #tpu.memory_space<vmem>>, %arg8: memref<2x96x96xbf16, #tpu.memory_space<vmem>>, %arg9: memref<2x1x96xf32, #tpu.memory_space<vmem>>, %arg10: memref<2x1x96xf32, #tpu.memory_space<vmem>>, %arg11: memref<2x1x96xf32, #tpu.memory_space<vmem>>, %arg12: memref<2x1x96xf32, #tpu.memory_space<vmem>>, %arg13: memref<2x1x96xf32, #tpu.memory_space<vmem>>, %arg14: memref<2x1x96xf32, #tpu.memory_space<vmem>>, %arg15: memref<2x1x96xf32, #tpu.memory_space<vmem>>, %arg16: memref<96x128xbf16, #tpu.memory_space<vmem>>, %arg17: memref<1x128xf32, #tpu.memory_space<vmem>>, %arg18: memref<4x128xf32, #tpu.memory_space<vmem>>) attributes {dimension_semantics = [], scalar_prefetch = 0 : i64, scratch_operands = 0 : i64, tpu.core_type = #tpu.core_type<tc>} {
    %c0 = arith.constant 0 : index
    %c0_0 = arith.constant 0 : index
    %0 = vector.load %arg0[%c0, %c0_0] : memref<4x96xf32, #tpu.memory_space<vmem>>, vector<4x96xf32>
    %c0_1 = arith.constant 0 : index
    %c0_2 = arith.constant 0 : index
    %1 = vector.load %arg1[%c0_1, %c0_2] : memref<4x1xf32, #tpu.memory_space<vmem>>, vector<4x1xf32>
    %c0_3 = arith.constant 0 : index
    %c0_4 = arith.constant 0 : index
    %c0_5 = arith.constant 0 : index
    %2 = vector.load %arg2[%c0_3, %c0_4, %c0_5] : memref<2x1x96xf32, #tpu.memory_space<vmem>>, vector<1x1x96xf32>
    %3 = vector.shape_cast %2 : vector<1x1x96xf32> to vector<1x96xf32>
    %c0_6 = arith.constant 0 : index
    %c0_7 = arith.constant 0 : index
    %c0_8 = arith.constant 0 : index
    %4 = vector.load %arg3[%c0_6, %c0_7, %c0_8] : memref<2x1x96xf32, #tpu.memory_space<vmem>>, vector<1x1x96xf32>
    %5 = vector.shape_cast %4 : vector<1x1x96xf32> to vector<1x96xf32>
    %cst = arith.constant dense<0.000000e+00> : vector<4xf32>
    %6 = vector.multi_reduction <add>, %0, %cst [1] : vector<4x96xf32> to vector<4xf32>
    %7 = vector.shape_cast %6 : vector<4xf32> to vector<4x1xf32>
    %cst_9 = arith.constant 9.600000e+01 : f32
    %8 = vector.broadcast %cst_9 : f32 to vector<4x1xf32>
    %9 = arith.divf %7, %8 : vector<4x1xf32>
    %10 = vector.broadcast %9 : vector<4x1xf32> to vector<4x96xf32>
    %11 = arith.subf %0, %10 : vector<4x96xf32>
    %12 = arith.mulf %11, %11 : vector<4x96xf32>
    %cst_10 = arith.constant dense<0.000000e+00> : vector<4xf32>
    %13 = vector.multi_reduction <add>, %12, %cst_10 [1] : vector<4x96xf32> to vector<4xf32>
    %14 = vector.shape_cast %13 : vector<4xf32> to vector<4x1xf32>
    %cst_11 = arith.constant 9.600000e+01 : f32
    %15 = vector.broadcast %cst_11 : f32 to vector<4x1xf32>
    %16 = arith.divf %14, %15 : vector<4x1xf32>
    %17 = vector.broadcast %9 : vector<4x1xf32> to vector<4x96xf32>
    %18 = arith.subf %0, %17 : vector<4x96xf32>
    %cst_12 = arith.constant 9.99999974E-6 : f32
    %19 = vector.broadcast %cst_12 : f32 to vector<4x1xf32>
    %20 = arith.addf %16, %19 : vector<4x1xf32>
    %21 = math.rsqrt %20 : vector<4x1xf32>
    %22 = vector.broadcast %21 : vector<4x1xf32> to vector<4x96xf32>
    %23 = arith.mulf %18, %22 : vector<4x96xf32>
    %24 = vector.broadcast %3 : vector<1x96xf32> to vector<4x96xf32>
    %25 = arith.mulf %23, %24 : vector<4x96xf32>
    %26 = vector.broadcast %5 : vector<1x96xf32> to vector<4x96xf32>
    %27 = arith.addf %25, %26 : vector<4x96xf32>
    %28 = arith.truncf %27 : vector<4x96xf32> to vector<4x96xbf16>
    %c0_13 = arith.constant 0 : index
    %c0_14 = arith.constant 0 : index
    %c0_15 = arith.constant 0 : index
    %29 = vector.load %arg4[%c0_13, %c0_14, %c0_15] : memref<2x96x288xbf16, #tpu.memory_space<vmem>>, vector<1x96x288xbf16>
    %30 = vector.shape_cast %29 : vector<1x96x288xbf16> to vector<96x288xbf16>
    %cst_16 = arith.constant dense<0.000000e+00> : vector<4x288xf32>
    %31 = tpu.matmul %28, %30, %cst_16 {dimension_numbers = #tpu.dot_dimension_numbers<[1], [0], [0], [1], [0, 0, 1, 1], [], []>} : vector<4x96xbf16>, vector<96x288xbf16>, vector<4x288xf32> -> vector<4x288xf32>
    %c0_17 = arith.constant 0 : index
    %c0_18 = arith.constant 0 : index
    %c0_19 = arith.constant 0 : index
    %32 = vector.load %arg5[%c0_17, %c0_18, %c0_19] : memref<2x1x288xf32, #tpu.memory_space<vmem>>, vector<1x1x288xf32>
    %33 = vector.shape_cast %32 : vector<1x1x288xf32> to vector<1x288xf32>
    %34 = vector.broadcast %33 : vector<1x288xf32> to vector<4x288xf32>
    %35 = arith.addf %31, %34 : vector<4x288xf32>
    %36 = vector.extract_strided_slice %35 {offsets = [0, 0], sizes = [4, 96], strides = [1, 1]} : vector<4x288xf32> to vector<4x96xf32>
    %37 = vector.extract_strided_slice %35 {offsets = [0, 96], sizes = [4, 96], strides = [1, 1]} : vector<4x288xf32> to vector<4x96xf32>
    %38 = vector.extract_strided_slice %35 {offsets = [0, 192], sizes = [4, 96], strides = [1, 1]} : vector<4x288xf32> to vector<4x96xf32>
    %c0_20 = arith.constant 0 : index
    %c0_21 = arith.constant 0 : index
    %c0_22 = arith.constant 0 : index
    %39 = vector.load %arg6[%c0_20, %c0_21, %c0_22] : memref<2x1x96xf32, #tpu.memory_space<vmem>>, vector<1x1x96xf32>
    %40 = vector.shape_cast %39 : vector<1x1x96xf32> to vector<1x96xf32>
    %c0_23 = arith.constant 0 : index
    %c0_24 = arith.constant 0 : index
    %c0_25 = arith.constant 0 : index
    %41 = vector.load %arg7[%c0_23, %c0_24, %c0_25] : memref<2x1x96xf32, #tpu.memory_space<vmem>>, vector<1x1x96xf32>
    %42 = vector.shape_cast %41 : vector<1x1x96xf32> to vector<1x96xf32>
    %43 = vector.extract_strided_slice %36 {offsets = [0, 0], sizes = [4, 24], strides = [1, 1]} : vector<4x96xf32> to vector<4x24xf32>
    %44 = vector.extract_strided_slice %37 {offsets = [0, 0], sizes = [4, 24], strides = [1, 1]} : vector<4x96xf32> to vector<4x24xf32>
    %45 = vector.extract_strided_slice %38 {offsets = [0, 0], sizes = [4, 24], strides = [1, 1]} : vector<4x96xf32> to vector<4x24xf32>
    %cst_26 = arith.constant dense<0.000000e+00> : vector<4x4xf32>
    %46 = tpu.matmul %43, %44, %cst_26 {dimension_numbers = #tpu.dot_dimension_numbers<[1], [1], [0], [0], [0, 0, 1, 0], [], []>} : vector<4x24xf32>, vector<4x24xf32>, vector<4x4xf32> -> vector<4x4xf32>
    %cst_27 = arith.constant 0.204124153 : f32
    %47 = vector.broadcast %cst_27 : f32 to vector<4x4xf32>
    %48 = arith.mulf %46, %47 : vector<4x4xf32>
    %49 = vector.extract_strided_slice %40 {offsets = [0, 0], sizes = [1, 24], strides = [1, 1]} : vector<1x96xf32> to vector<1x24xf32>
    %50 = vector.broadcast %49 : vector<1x24xf32> to vector<4x24xf32>
    %51 = arith.mulf %43, %50 : vector<4x24xf32>
    %cst_28 = arith.constant dense<0.000000e+00> : vector<4xf32>
    %52 = vector.multi_reduction <add>, %51, %cst_28 [1] : vector<4x24xf32> to vector<4xf32>
    %53 = vector.shape_cast %52 : vector<4xf32> to vector<4x1xf32>
    %cst_29 = arith.constant 0.204124153 : f32
    %54 = vector.broadcast %cst_29 : f32 to vector<4x1xf32>
    %55 = arith.mulf %53, %54 : vector<4x1xf32>
    %cst_30 = arith.constant dense<0xFF800000> : vector<4xf32>
    %56 = vector.multi_reduction <maximumf>, %48, %cst_30 [1] : vector<4x4xf32> to vector<4xf32>
    %57 = vector.shape_cast %56 : vector<4xf32> to vector<4x1xf32>
    %58 = arith.maximumf %57, %55 : vector<4x1xf32>
    %59 = vector.broadcast %58 : vector<4x1xf32> to vector<4x4xf32>
    %60 = arith.subf %48, %59 : vector<4x4xf32>
    %61 = math.exp %60 : vector<4x4xf32>
    %62 = arith.subf %55, %58 : vector<4x1xf32>
    %63 = math.exp %62 : vector<4x1xf32>
    %cst_31 = arith.constant dense<0.000000e+00> : vector<4xf32>
    %64 = vector.multi_reduction <add>, %61, %cst_31 [1] : vector<4x4xf32> to vector<4xf32>
    %65 = vector.shape_cast %64 : vector<4xf32> to vector<4x1xf32>
    %66 = arith.addf %65, %63 : vector<4x1xf32>
    %67 = tpu.reciprocal %66 {approx = true} : vector<4x1xf32> -> vector<4x1xf32>
    %cst_32 = arith.constant dense<0.000000e+00> : vector<4x24xf32>
    %68 = tpu.matmul %61, %45, %cst_32 {dimension_numbers = #tpu.dot_dimension_numbers<[1], [0], [0], [1], [0, 0, 1, 1], [], []>} : vector<4x4xf32>, vector<4x24xf32>, vector<4x24xf32> -> vector<4x24xf32>
    %69 = vector.extract_strided_slice %42 {offsets = [0, 0], sizes = [1, 24], strides = [1, 1]} : vector<1x96xf32> to vector<1x24xf32>
    %70 = vector.broadcast %63 : vector<4x1xf32> to vector<4x24xf32>
    %71 = vector.broadcast %69 : vector<1x24xf32> to vector<4x24xf32>
    %72 = arith.mulf %70, %71 : vector<4x24xf32>
    %73 = arith.addf %68, %72 : vector<4x24xf32>
    %74 = vector.broadcast %67 : vector<4x1xf32> to vector<4x24xf32>
    %75 = arith.mulf %73, %74 : vector<4x24xf32>
    %76 = vector.extract_strided_slice %36 {offsets = [0, 24], sizes = [4, 24], strides = [1, 1]} : vector<4x96xf32> to vector<4x24xf32>
    %77 = vector.extract_strided_slice %37 {offsets = [0, 24], sizes = [4, 24], strides = [1, 1]} : vector<4x96xf32> to vector<4x24xf32>
    %78 = vector.extract_strided_slice %38 {offsets = [0, 24], sizes = [4, 24], strides = [1, 1]} : vector<4x96xf32> to vector<4x24xf32>
    %cst_33 = arith.constant dense<0.000000e+00> : vector<4x4xf32>
    %79 = tpu.matmul %76, %77, %cst_33 {dimension_numbers = #tpu.dot_dimension_numbers<[1], [1], [0], [0], [0, 0, 1, 0], [], []>} : vector<4x24xf32>, vector<4x24xf32>, vector<4x4xf32> -> vector<4x4xf32>
    %cst_34 = arith.constant 0.204124153 : f32
    %80 = vector.broadcast %cst_34 : f32 to vector<4x4xf32>
    %81 = arith.mulf %79, %80 : vector<4x4xf32>
    %82 = vector.extract_strided_slice %40 {offsets = [0, 24], sizes = [1, 24], strides = [1, 1]} : vector<1x96xf32> to vector<1x24xf32>
    %83 = vector.broadcast %82 : vector<1x24xf32> to vector<4x24xf32>
    %84 = arith.mulf %76, %83 : vector<4x24xf32>
    %cst_35 = arith.constant dense<0.000000e+00> : vector<4xf32>
    %85 = vector.multi_reduction <add>, %84, %cst_35 [1] : vector<4x24xf32> to vector<4xf32>
    %86 = vector.shape_cast %85 : vector<4xf32> to vector<4x1xf32>
    %cst_36 = arith.constant 0.204124153 : f32
    %87 = vector.broadcast %cst_36 : f32 to vector<4x1xf32>
    %88 = arith.mulf %86, %87 : vector<4x1xf32>
    %cst_37 = arith.constant dense<0xFF800000> : vector<4xf32>
    %89 = vector.multi_reduction <maximumf>, %81, %cst_37 [1] : vector<4x4xf32> to vector<4xf32>
    %90 = vector.shape_cast %89 : vector<4xf32> to vector<4x1xf32>
    %91 = arith.maximumf %90, %88 : vector<4x1xf32>
    %92 = vector.broadcast %91 : vector<4x1xf32> to vector<4x4xf32>
    %93 = arith.subf %81, %92 : vector<4x4xf32>
    %94 = math.exp %93 : vector<4x4xf32>
    %95 = arith.subf %88, %91 : vector<4x1xf32>
    %96 = math.exp %95 : vector<4x1xf32>
    %cst_38 = arith.constant dense<0.000000e+00> : vector<4xf32>
    %97 = vector.multi_reduction <add>, %94, %cst_38 [1] : vector<4x4xf32> to vector<4xf32>
    %98 = vector.shape_cast %97 : vector<4xf32> to vector<4x1xf32>
    %99 = arith.addf %98, %96 : vector<4x1xf32>
    %100 = tpu.reciprocal %99 {approx = true} : vector<4x1xf32> -> vector<4x1xf32>
    %cst_39 = arith.constant dense<0.000000e+00> : vector<4x24xf32>
    %101 = tpu.matmul %94, %78, %cst_39 {dimension_numbers = #tpu.dot_dimension_numbers<[1], [0], [0], [1], [0, 0, 1, 1], [], []>} : vector<4x4xf32>, vector<4x24xf32>, vector<4x24xf32> -> vector<4x24xf32>
    %102 = vector.extract_strided_slice %42 {offsets = [0, 24], sizes = [1, 24], strides = [1, 1]} : vector<1x96xf32> to vector<1x24xf32>
    %103 = vector.broadcast %96 : vector<4x1xf32> to vector<4x24xf32>
    %104 = vector.broadcast %102 : vector<1x24xf32> to vector<4x24xf32>
    %105 = arith.mulf %103, %104 : vector<4x24xf32>
    %106 = arith.addf %101, %105 : vector<4x24xf32>
    %107 = vector.broadcast %100 : vector<4x1xf32> to vector<4x24xf32>
    %108 = arith.mulf %106, %107 : vector<4x24xf32>
    %109 = vector.extract_strided_slice %36 {offsets = [0, 48], sizes = [4, 24], strides = [1, 1]} : vector<4x96xf32> to vector<4x24xf32>
    %110 = vector.extract_strided_slice %37 {offsets = [0, 48], sizes = [4, 24], strides = [1, 1]} : vector<4x96xf32> to vector<4x24xf32>
    %111 = vector.extract_strided_slice %38 {offsets = [0, 48], sizes = [4, 24], strides = [1, 1]} : vector<4x96xf32> to vector<4x24xf32>
    %cst_40 = arith.constant dense<0.000000e+00> : vector<4x4xf32>
    %112 = tpu.matmul %109, %110, %cst_40 {dimension_numbers = #tpu.dot_dimension_numbers<[1], [1], [0], [0], [0, 0, 1, 0], [], []>} : vector<4x24xf32>, vector<4x24xf32>, vector<4x4xf32> -> vector<4x4xf32>
    %cst_41 = arith.constant 0.204124153 : f32
    %113 = vector.broadcast %cst_41 : f32 to vector<4x4xf32>
    %114 = arith.mulf %112, %113 : vector<4x4xf32>
    %115 = vector.extract_strided_slice %40 {offsets = [0, 48], sizes = [1, 24], strides = [1, 1]} : vector<1x96xf32> to vector<1x24xf32>
    %116 = vector.broadcast %115 : vector<1x24xf32> to vector<4x24xf32>
    %117 = arith.mulf %109, %116 : vector<4x24xf32>
    %cst_42 = arith.constant dense<0.000000e+00> : vector<4xf32>
    %118 = vector.multi_reduction <add>, %117, %cst_42 [1] : vector<4x24xf32> to vector<4xf32>
    %119 = vector.shape_cast %118 : vector<4xf32> to vector<4x1xf32>
    %cst_43 = arith.constant 0.204124153 : f32
    %120 = vector.broadcast %cst_43 : f32 to vector<4x1xf32>
    %121 = arith.mulf %119, %120 : vector<4x1xf32>
    %cst_44 = arith.constant dense<0xFF800000> : vector<4xf32>
    %122 = vector.multi_reduction <maximumf>, %114, %cst_44 [1] : vector<4x4xf32> to vector<4xf32>
    %123 = vector.shape_cast %122 : vector<4xf32> to vector<4x1xf32>
    %124 = arith.maximumf %123, %121 : vector<4x1xf32>
    %125 = vector.broadcast %124 : vector<4x1xf32> to vector<4x4xf32>
    %126 = arith.subf %114, %125 : vector<4x4xf32>
    %127 = math.exp %126 : vector<4x4xf32>
    %128 = arith.subf %121, %124 : vector<4x1xf32>
    %129 = math.exp %128 : vector<4x1xf32>
    %cst_45 = arith.constant dense<0.000000e+00> : vector<4xf32>
    %130 = vector.multi_reduction <add>, %127, %cst_45 [1] : vector<4x4xf32> to vector<4xf32>
    %131 = vector.shape_cast %130 : vector<4xf32> to vector<4x1xf32>
    %132 = arith.addf %131, %129 : vector<4x1xf32>
    %133 = tpu.reciprocal %132 {approx = true} : vector<4x1xf32> -> vector<4x1xf32>
    %cst_46 = arith.constant dense<0.000000e+00> : vector<4x24xf32>
    %134 = tpu.matmul %127, %111, %cst_46 {dimension_numbers = #tpu.dot_dimension_numbers<[1], [0], [0], [1], [0, 0, 1, 1], [], []>} : vector<4x4xf32>, vector<4x24xf32>, vector<4x24xf32> -> vector<4x24xf32>
    %135 = vector.extract_strided_slice %42 {offsets = [0, 48], sizes = [1, 24], strides = [1, 1]} : vector<1x96xf32> to vector<1x24xf32>
    %136 = vector.broadcast %129 : vector<4x1xf32> to vector<4x24xf32>
    %137 = vector.broadcast %135 : vector<1x24xf32> to vector<4x24xf32>
    %138 = arith.mulf %136, %137 : vector<4x24xf32>
    %139 = arith.addf %134, %138 : vector<4x24xf32>
    %140 = vector.broadcast %133 : vector<4x1xf32> to vector<4x24xf32>
    %141 = arith.mulf %139, %140 : vector<4x24xf32>
    %142 = vector.extract_strided_slice %36 {offsets = [0, 72], sizes = [4, 24], strides = [1, 1]} : vector<4x96xf32> to vector<4x24xf32>
    %143 = vector.extract_strided_slice %37 {offsets = [0, 72], sizes = [4, 24], strides = [1, 1]} : vector<4x96xf32> to vector<4x24xf32>
    %144 = vector.extract_strided_slice %38 {offsets = [0, 72], sizes = [4, 24], strides = [1, 1]} : vector<4x96xf32> to vector<4x24xf32>
    %cst_47 = arith.constant dense<0.000000e+00> : vector<4x4xf32>
    %145 = tpu.matmul %142, %143, %cst_47 {dimension_numbers = #tpu.dot_dimension_numbers<[1], [1], [0], [0], [0, 0, 1, 0], [], []>} : vector<4x24xf32>, vector<4x24xf32>, vector<4x4xf32> -> vector<4x4xf32>
    %cst_48 = arith.constant 0.204124153 : f32
    %146 = vector.broadcast %cst_48 : f32 to vector<4x4xf32>
    %147 = arith.mulf %145, %146 : vector<4x4xf32>
    %148 = vector.extract_strided_slice %40 {offsets = [0, 72], sizes = [1, 24], strides = [1, 1]} : vector<1x96xf32> to vector<1x24xf32>
    %149 = vector.broadcast %148 : vector<1x24xf32> to vector<4x24xf32>
    %150 = arith.mulf %142, %149 : vector<4x24xf32>
    %cst_49 = arith.constant dense<0.000000e+00> : vector<4xf32>
    %151 = vector.multi_reduction <add>, %150, %cst_49 [1] : vector<4x24xf32> to vector<4xf32>
    %152 = vector.shape_cast %151 : vector<4xf32> to vector<4x1xf32>
    %cst_50 = arith.constant 0.204124153 : f32
    %153 = vector.broadcast %cst_50 : f32 to vector<4x1xf32>
    %154 = arith.mulf %152, %153 : vector<4x1xf32>
    %cst_51 = arith.constant dense<0xFF800000> : vector<4xf32>
    %155 = vector.multi_reduction <maximumf>, %147, %cst_51 [1] : vector<4x4xf32> to vector<4xf32>
    %156 = vector.shape_cast %155 : vector<4xf32> to vector<4x1xf32>
    %157 = arith.maximumf %156, %154 : vector<4x1xf32>
    %158 = vector.broadcast %157 : vector<4x1xf32> to vector<4x4xf32>
    %159 = arith.subf %147, %158 : vector<4x4xf32>
    %160 = math.exp %159 : vector<4x4xf32>
    %161 = arith.subf %154, %157 : vector<4x1xf32>
    %162 = math.exp %161 : vector<4x1xf32>
    %cst_52 = arith.constant dense<0.000000e+00> : vector<4xf32>
    %163 = vector.multi_reduction <add>, %160, %cst_52 [1] : vector<4x4xf32> to vector<4xf32>
    %164 = vector.shape_cast %163 : vector<4xf32> to vector<4x1xf32>
    %165 = arith.addf %164, %162 : vector<4x1xf32>
    %166 = tpu.reciprocal %165 {approx = true} : vector<4x1xf32> -> vector<4x1xf32>
    %cst_53 = arith.constant dense<0.000000e+00> : vector<4x24xf32>
    %167 = tpu.matmul %160, %144, %cst_53 {dimension_numbers = #tpu.dot_dimension_numbers<[1], [0], [0], [1], [0, 0, 1, 1], [], []>} : vector<4x4xf32>, vector<4x24xf32>, vector<4x24xf32> -> vector<4x24xf32>
    %168 = vector.extract_strided_slice %42 {offsets = [0, 72], sizes = [1, 24], strides = [1, 1]} : vector<1x96xf32> to vector<1x24xf32>
    %169 = vector.broadcast %162 : vector<4x1xf32> to vector<4x24xf32>
    %170 = vector.broadcast %168 : vector<1x24xf32> to vector<4x24xf32>
    %171 = arith.mulf %169, %170 : vector<4x24xf32>
    %172 = arith.addf %167, %171 : vector<4x24xf32>
    %173 = vector.broadcast %166 : vector<4x1xf32> to vector<4x24xf32>
    %174 = arith.mulf %172, %173 : vector<4x24xf32>
    %175 = tpu.concatenate %75, %108, %141, %174 in 1 : vector<4x24xf32>, vector<4x24xf32>, vector<4x24xf32>, vector<4x24xf32> -> vector<4x96xf32>
    %176 = arith.truncf %175 : vector<4x96xf32> to vector<4x96xbf16>
    %c0_54 = arith.constant 0 : index
    %c0_55 = arith.constant 0 : index
    %c0_56 = arith.constant 0 : index
    %177 = vector.load %arg8[%c0_54, %c0_55, %c0_56] : memref<2x96x96xbf16, #tpu.memory_space<vmem>>, vector<1x96x96xbf16>
    %178 = vector.shape_cast %177 : vector<1x96x96xbf16> to vector<96x96xbf16>
    %cst_57 = arith.constant dense<0.000000e+00> : vector<4x96xf32>
    %179 = tpu.matmul %176, %178, %cst_57 {dimension_numbers = #tpu.dot_dimension_numbers<[1], [0], [0], [1], [0, 0, 1, 1], [], []>} : vector<4x96xbf16>, vector<96x96xbf16>, vector<4x96xf32> -> vector<4x96xf32>
    %c0_58 = arith.constant 0 : index
    %c0_59 = arith.constant 0 : index
    %c0_60 = arith.constant 0 : index
    %180 = vector.load %arg9[%c0_58, %c0_59, %c0_60] : memref<2x1x96xf32, #tpu.memory_space<vmem>>, vector<1x1x96xf32>
    %181 = vector.shape_cast %180 : vector<1x1x96xf32> to vector<1x96xf32>
    %182 = vector.broadcast %181 : vector<1x96xf32> to vector<4x96xf32>
    %183 = arith.addf %179, %182 : vector<4x96xf32>
    %184 = arith.addf %0, %183 : vector<4x96xf32>
    %c0_61 = arith.constant 0 : index
    %c0_62 = arith.constant 0 : index
    %c0_63 = arith.constant 0 : index
    %185 = vector.load %arg10[%c0_61, %c0_62, %c0_63] : memref<2x1x96xf32, #tpu.memory_space<vmem>>, vector<1x1x96xf32>
    %186 = vector.shape_cast %185 : vector<1x1x96xf32> to vector<1x96xf32>
    %c0_64 = arith.constant 0 : index
    %c0_65 = arith.constant 0 : index
    %c0_66 = arith.constant 0 : index
    %187 = vector.load %arg11[%c0_64, %c0_65, %c0_66] : memref<2x1x96xf32, #tpu.memory_space<vmem>>, vector<1x1x96xf32>
    %188 = vector.shape_cast %187 : vector<1x1x96xf32> to vector<1x96xf32>
    %cst_67 = arith.constant dense<0.000000e+00> : vector<4xf32>
    %189 = vector.multi_reduction <add>, %184, %cst_67 [1] : vector<4x96xf32> to vector<4xf32>
    %190 = vector.shape_cast %189 : vector<4xf32> to vector<4x1xf32>
    %cst_68 = arith.constant 9.600000e+01 : f32
    %191 = vector.broadcast %cst_68 : f32 to vector<4x1xf32>
    %192 = arith.divf %190, %191 : vector<4x1xf32>
    %193 = vector.broadcast %192 : vector<4x1xf32> to vector<4x96xf32>
    %194 = arith.subf %184, %193 : vector<4x96xf32>
    %195 = arith.mulf %194, %194 : vector<4x96xf32>
    %cst_69 = arith.constant dense<0.000000e+00> : vector<4xf32>
    %196 = vector.multi_reduction <add>, %195, %cst_69 [1] : vector<4x96xf32> to vector<4xf32>
    %197 = vector.shape_cast %196 : vector<4xf32> to vector<4x1xf32>
    %cst_70 = arith.constant 9.600000e+01 : f32
    %198 = vector.broadcast %cst_70 : f32 to vector<4x1xf32>
    %199 = arith.divf %197, %198 : vector<4x1xf32>
    %200 = vector.broadcast %192 : vector<4x1xf32> to vector<4x96xf32>
    %201 = arith.subf %184, %200 : vector<4x96xf32>
    %cst_71 = arith.constant 9.99999974E-6 : f32
    %202 = vector.broadcast %cst_71 : f32 to vector<4x1xf32>
    %203 = arith.addf %199, %202 : vector<4x1xf32>
    %204 = math.rsqrt %203 : vector<4x1xf32>
    %205 = vector.broadcast %204 : vector<4x1xf32> to vector<4x96xf32>
    %206 = arith.mulf %201, %205 : vector<4x96xf32>
    %207 = vector.broadcast %186 : vector<1x96xf32> to vector<4x96xf32>
    %208 = arith.mulf %206, %207 : vector<4x96xf32>
    %209 = vector.broadcast %188 : vector<1x96xf32> to vector<4x96xf32>
    %210 = arith.addf %208, %209 : vector<4x96xf32>
    %c0_72 = arith.constant 0 : index
    %c0_73 = arith.constant 0 : index
    %c0_74 = arith.constant 0 : index
    %211 = vector.load %arg12[%c0_72, %c0_73, %c0_74] : memref<2x1x96xf32, #tpu.memory_space<vmem>>, vector<1x1x96xf32>
    %212 = vector.shape_cast %211 : vector<1x1x96xf32> to vector<1x96xf32>
    %213 = vector.broadcast %1 : vector<4x1xf32> to vector<4x96xf32>
    %214 = vector.broadcast %212 : vector<1x96xf32> to vector<4x96xf32>
    %215 = arith.mulf %213, %214 : vector<4x96xf32>
    %c0_75 = arith.constant 0 : index
    %c0_76 = arith.constant 0 : index
    %c0_77 = arith.constant 0 : index
    %216 = vector.load %arg13[%c0_75, %c0_76, %c0_77] : memref<2x1x96xf32, #tpu.memory_space<vmem>>, vector<1x1x96xf32>
    %217 = vector.shape_cast %216 : vector<1x1x96xf32> to vector<1x96xf32>
    %218 = vector.broadcast %217 : vector<1x96xf32> to vector<4x96xf32>
    %219 = arith.addf %215, %218 : vector<4x96xf32>
    %cst_78 = arith.constant 2.000000e+00 : f32
    %220 = vector.broadcast %cst_78 : f32 to vector<4x96xf32>
    %221 = arith.mulf %220, %210 : vector<4x96xf32>
    %222 = arith.addf %221, %219 : vector<4x96xf32>
    %c0_79 = arith.constant 0 : index
    %c0_80 = arith.constant 0 : index
    %c0_81 = arith.constant 0 : index
    %223 = vector.load %arg14[%c0_79, %c0_80, %c0_81] : memref<2x1x96xf32, #tpu.memory_space<vmem>>, vector<1x1x96xf32>
    %224 = vector.shape_cast %223 : vector<1x1x96xf32> to vector<1x96xf32>
    %c0_82 = arith.constant 0 : index
    %c0_83 = arith.constant 0 : index
    %c0_84 = arith.constant 0 : index
    %225 = vector.load %arg15[%c0_82, %c0_83, %c0_84] : memref<2x1x96xf32, #tpu.memory_space<vmem>>, vector<1x1x96xf32>
    %226 = vector.shape_cast %225 : vector<1x1x96xf32> to vector<1x96xf32>
    %cst_85 = arith.constant dense<0.000000e+00> : vector<4xf32>
    %227 = vector.multi_reduction <add>, %222, %cst_85 [1] : vector<4x96xf32> to vector<4xf32>
    %228 = vector.shape_cast %227 : vector<4xf32> to vector<4x1xf32>
    %cst_86 = arith.constant 9.600000e+01 : f32
    %229 = vector.broadcast %cst_86 : f32 to vector<4x1xf32>
    %230 = arith.divf %228, %229 : vector<4x1xf32>
    %231 = vector.broadcast %230 : vector<4x1xf32> to vector<4x96xf32>
    %232 = arith.subf %222, %231 : vector<4x96xf32>
    %233 = arith.mulf %232, %232 : vector<4x96xf32>
    %cst_87 = arith.constant dense<0.000000e+00> : vector<4xf32>
    %234 = vector.multi_reduction <add>, %233, %cst_87 [1] : vector<4x96xf32> to vector<4xf32>
    %235 = vector.shape_cast %234 : vector<4xf32> to vector<4x1xf32>
    %cst_88 = arith.constant 9.600000e+01 : f32
    %236 = vector.broadcast %cst_88 : f32 to vector<4x1xf32>
    %237 = arith.divf %235, %236 : vector<4x1xf32>
    %238 = vector.broadcast %230 : vector<4x1xf32> to vector<4x96xf32>
    %239 = arith.subf %222, %238 : vector<4x96xf32>
    %cst_89 = arith.constant 9.99999974E-6 : f32
    %240 = vector.broadcast %cst_89 : f32 to vector<4x1xf32>
    %241 = arith.addf %237, %240 : vector<4x1xf32>
    %242 = math.rsqrt %241 : vector<4x1xf32>
    %243 = vector.broadcast %242 : vector<4x1xf32> to vector<4x96xf32>
    %244 = arith.mulf %239, %243 : vector<4x96xf32>
    %245 = vector.broadcast %224 : vector<1x96xf32> to vector<4x96xf32>
    %246 = arith.mulf %244, %245 : vector<4x96xf32>
    %247 = vector.broadcast %226 : vector<1x96xf32> to vector<4x96xf32>
    %248 = arith.addf %246, %247 : vector<4x96xf32>
    %c1 = arith.constant 1 : index
    %c0_90 = arith.constant 0 : index
    %c0_91 = arith.constant 0 : index
    %249 = vector.load %arg2[%c1, %c0_90, %c0_91] : memref<2x1x96xf32, #tpu.memory_space<vmem>>, vector<1x1x96xf32>
    %250 = vector.shape_cast %249 : vector<1x1x96xf32> to vector<1x96xf32>
    %c1_92 = arith.constant 1 : index
    %c0_93 = arith.constant 0 : index
    %c0_94 = arith.constant 0 : index
    %251 = vector.load %arg3[%c1_92, %c0_93, %c0_94] : memref<2x1x96xf32, #tpu.memory_space<vmem>>, vector<1x1x96xf32>
    %252 = vector.shape_cast %251 : vector<1x1x96xf32> to vector<1x96xf32>
    %cst_95 = arith.constant dense<0.000000e+00> : vector<4xf32>
    %253 = vector.multi_reduction <add>, %248, %cst_95 [1] : vector<4x96xf32> to vector<4xf32>
    %254 = vector.shape_cast %253 : vector<4xf32> to vector<4x1xf32>
    %cst_96 = arith.constant 9.600000e+01 : f32
    %255 = vector.broadcast %cst_96 : f32 to vector<4x1xf32>
    %256 = arith.divf %254, %255 : vector<4x1xf32>
    %257 = vector.broadcast %256 : vector<4x1xf32> to vector<4x96xf32>
    %258 = arith.subf %248, %257 : vector<4x96xf32>
    %259 = arith.mulf %258, %258 : vector<4x96xf32>
    %cst_97 = arith.constant dense<0.000000e+00> : vector<4xf32>
    %260 = vector.multi_reduction <add>, %259, %cst_97 [1] : vector<4x96xf32> to vector<4xf32>
    %261 = vector.shape_cast %260 : vector<4xf32> to vector<4x1xf32>
    %cst_98 = arith.constant 9.600000e+01 : f32
    %262 = vector.broadcast %cst_98 : f32 to vector<4x1xf32>
    %263 = arith.divf %261, %262 : vector<4x1xf32>
    %264 = vector.broadcast %256 : vector<4x1xf32> to vector<4x96xf32>
    %265 = arith.subf %248, %264 : vector<4x96xf32>
    %cst_99 = arith.constant 9.99999974E-6 : f32
    %266 = vector.broadcast %cst_99 : f32 to vector<4x1xf32>
    %267 = arith.addf %263, %266 : vector<4x1xf32>
    %268 = math.rsqrt %267 : vector<4x1xf32>
    %269 = vector.broadcast %268 : vector<4x1xf32> to vector<4x96xf32>
    %270 = arith.mulf %265, %269 : vector<4x96xf32>
    %271 = vector.broadcast %250 : vector<1x96xf32> to vector<4x96xf32>
    %272 = arith.mulf %270, %271 : vector<4x96xf32>
    %273 = vector.broadcast %252 : vector<1x96xf32> to vector<4x96xf32>
    %274 = arith.addf %272, %273 : vector<4x96xf32>
    %275 = arith.truncf %274 : vector<4x96xf32> to vector<4x96xbf16>
    %c1_100 = arith.constant 1 : index
    %c0_101 = arith.constant 0 : index
    %c0_102 = arith.constant 0 : index
    %276 = vector.load %arg4[%c1_100, %c0_101, %c0_102] : memref<2x96x288xbf16, #tpu.memory_space<vmem>>, vector<1x96x288xbf16>
    %277 = vector.shape_cast %276 : vector<1x96x288xbf16> to vector<96x288xbf16>
    %cst_103 = arith.constant dense<0.000000e+00> : vector<4x288xf32>
    %278 = tpu.matmul %275, %277, %cst_103 {dimension_numbers = #tpu.dot_dimension_numbers<[1], [0], [0], [1], [0, 0, 1, 1], [], []>} : vector<4x96xbf16>, vector<96x288xbf16>, vector<4x288xf32> -> vector<4x288xf32>
    %c1_104 = arith.constant 1 : index
    %c0_105 = arith.constant 0 : index
    %c0_106 = arith.constant 0 : index
    %279 = vector.load %arg5[%c1_104, %c0_105, %c0_106] : memref<2x1x288xf32, #tpu.memory_space<vmem>>, vector<1x1x288xf32>
    %280 = vector.shape_cast %279 : vector<1x1x288xf32> to vector<1x288xf32>
    %281 = vector.broadcast %280 : vector<1x288xf32> to vector<4x288xf32>
    %282 = arith.addf %278, %281 : vector<4x288xf32>
    %283 = vector.extract_strided_slice %282 {offsets = [0, 0], sizes = [4, 96], strides = [1, 1]} : vector<4x288xf32> to vector<4x96xf32>
    %284 = vector.extract_strided_slice %282 {offsets = [0, 96], sizes = [4, 96], strides = [1, 1]} : vector<4x288xf32> to vector<4x96xf32>
    %285 = vector.extract_strided_slice %282 {offsets = [0, 192], sizes = [4, 96], strides = [1, 1]} : vector<4x288xf32> to vector<4x96xf32>
    %c1_107 = arith.constant 1 : index
    %c0_108 = arith.constant 0 : index
    %c0_109 = arith.constant 0 : index
    %286 = vector.load %arg6[%c1_107, %c0_108, %c0_109] : memref<2x1x96xf32, #tpu.memory_space<vmem>>, vector<1x1x96xf32>
    %287 = vector.shape_cast %286 : vector<1x1x96xf32> to vector<1x96xf32>
    %c1_110 = arith.constant 1 : index
    %c0_111 = arith.constant 0 : index
    %c0_112 = arith.constant 0 : index
    %288 = vector.load %arg7[%c1_110, %c0_111, %c0_112] : memref<2x1x96xf32, #tpu.memory_space<vmem>>, vector<1x1x96xf32>
    %289 = vector.shape_cast %288 : vector<1x1x96xf32> to vector<1x96xf32>
    %290 = vector.extract_strided_slice %283 {offsets = [0, 0], sizes = [4, 24], strides = [1, 1]} : vector<4x96xf32> to vector<4x24xf32>
    %291 = vector.extract_strided_slice %284 {offsets = [0, 0], sizes = [4, 24], strides = [1, 1]} : vector<4x96xf32> to vector<4x24xf32>
    %292 = vector.extract_strided_slice %285 {offsets = [0, 0], sizes = [4, 24], strides = [1, 1]} : vector<4x96xf32> to vector<4x24xf32>
    %cst_113 = arith.constant dense<0.000000e+00> : vector<4x4xf32>
    %293 = tpu.matmul %290, %291, %cst_113 {dimension_numbers = #tpu.dot_dimension_numbers<[1], [1], [0], [0], [0, 0, 1, 0], [], []>} : vector<4x24xf32>, vector<4x24xf32>, vector<4x4xf32> -> vector<4x4xf32>
    %cst_114 = arith.constant 0.204124153 : f32
    %294 = vector.broadcast %cst_114 : f32 to vector<4x4xf32>
    %295 = arith.mulf %293, %294 : vector<4x4xf32>
    %296 = vector.extract_strided_slice %287 {offsets = [0, 0], sizes = [1, 24], strides = [1, 1]} : vector<1x96xf32> to vector<1x24xf32>
    %297 = vector.broadcast %296 : vector<1x24xf32> to vector<4x24xf32>
    %298 = arith.mulf %290, %297 : vector<4x24xf32>
    %cst_115 = arith.constant dense<0.000000e+00> : vector<4xf32>
    %299 = vector.multi_reduction <add>, %298, %cst_115 [1] : vector<4x24xf32> to vector<4xf32>
    %300 = vector.shape_cast %299 : vector<4xf32> to vector<4x1xf32>
    %cst_116 = arith.constant 0.204124153 : f32
    %301 = vector.broadcast %cst_116 : f32 to vector<4x1xf32>
    %302 = arith.mulf %300, %301 : vector<4x1xf32>
    %cst_117 = arith.constant dense<0xFF800000> : vector<4xf32>
    %303 = vector.multi_reduction <maximumf>, %295, %cst_117 [1] : vector<4x4xf32> to vector<4xf32>
    %304 = vector.shape_cast %303 : vector<4xf32> to vector<4x1xf32>
    %305 = arith.maximumf %304, %302 : vector<4x1xf32>
    %306 = vector.broadcast %305 : vector<4x1xf32> to vector<4x4xf32>
    %307 = arith.subf %295, %306 : vector<4x4xf32>
    %308 = math.exp %307 : vector<4x4xf32>
    %309 = arith.subf %302, %305 : vector<4x1xf32>
    %310 = math.exp %309 : vector<4x1xf32>
    %cst_118 = arith.constant dense<0.000000e+00> : vector<4xf32>
    %311 = vector.multi_reduction <add>, %308, %cst_118 [1] : vector<4x4xf32> to vector<4xf32>
    %312 = vector.shape_cast %311 : vector<4xf32> to vector<4x1xf32>
    %313 = arith.addf %312, %310 : vector<4x1xf32>
    %314 = tpu.reciprocal %313 {approx = true} : vector<4x1xf32> -> vector<4x1xf32>
    %cst_119 = arith.constant dense<0.000000e+00> : vector<4x24xf32>
    %315 = tpu.matmul %308, %292, %cst_119 {dimension_numbers = #tpu.dot_dimension_numbers<[1], [0], [0], [1], [0, 0, 1, 1], [], []>} : vector<4x4xf32>, vector<4x24xf32>, vector<4x24xf32> -> vector<4x24xf32>
    %316 = vector.extract_strided_slice %289 {offsets = [0, 0], sizes = [1, 24], strides = [1, 1]} : vector<1x96xf32> to vector<1x24xf32>
    %317 = vector.broadcast %310 : vector<4x1xf32> to vector<4x24xf32>
    %318 = vector.broadcast %316 : vector<1x24xf32> to vector<4x24xf32>
    %319 = arith.mulf %317, %318 : vector<4x24xf32>
    %320 = arith.addf %315, %319 : vector<4x24xf32>
    %321 = vector.broadcast %314 : vector<4x1xf32> to vector<4x24xf32>
    %322 = arith.mulf %320, %321 : vector<4x24xf32>
    %323 = vector.extract_strided_slice %283 {offsets = [0, 24], sizes = [4, 24], strides = [1, 1]} : vector<4x96xf32> to vector<4x24xf32>
    %324 = vector.extract_strided_slice %284 {offsets = [0, 24], sizes = [4, 24], strides = [1, 1]} : vector<4x96xf32> to vector<4x24xf32>
    %325 = vector.extract_strided_slice %285 {offsets = [0, 24], sizes = [4, 24], strides = [1, 1]} : vector<4x96xf32> to vector<4x24xf32>
    %cst_120 = arith.constant dense<0.000000e+00> : vector<4x4xf32>
    %326 = tpu.matmul %323, %324, %cst_120 {dimension_numbers = #tpu.dot_dimension_numbers<[1], [1], [0], [0], [0, 0, 1, 0], [], []>} : vector<4x24xf32>, vector<4x24xf32>, vector<4x4xf32> -> vector<4x4xf32>
    %cst_121 = arith.constant 0.204124153 : f32
    %327 = vector.broadcast %cst_121 : f32 to vector<4x4xf32>
    %328 = arith.mulf %326, %327 : vector<4x4xf32>
    %329 = vector.extract_strided_slice %287 {offsets = [0, 24], sizes = [1, 24], strides = [1, 1]} : vector<1x96xf32> to vector<1x24xf32>
    %330 = vector.broadcast %329 : vector<1x24xf32> to vector<4x24xf32>
    %331 = arith.mulf %323, %330 : vector<4x24xf32>
    %cst_122 = arith.constant dense<0.000000e+00> : vector<4xf32>
    %332 = vector.multi_reduction <add>, %331, %cst_122 [1] : vector<4x24xf32> to vector<4xf32>
    %333 = vector.shape_cast %332 : vector<4xf32> to vector<4x1xf32>
    %cst_123 = arith.constant 0.204124153 : f32
    %334 = vector.broadcast %cst_123 : f32 to vector<4x1xf32>
    %335 = arith.mulf %333, %334 : vector<4x1xf32>
    %cst_124 = arith.constant dense<0xFF800000> : vector<4xf32>
    %336 = vector.multi_reduction <maximumf>, %328, %cst_124 [1] : vector<4x4xf32> to vector<4xf32>
    %337 = vector.shape_cast %336 : vector<4xf32> to vector<4x1xf32>
    %338 = arith.maximumf %337, %335 : vector<4x1xf32>
    %339 = vector.broadcast %338 : vector<4x1xf32> to vector<4x4xf32>
    %340 = arith.subf %328, %339 : vector<4x4xf32>
    %341 = math.exp %340 : vector<4x4xf32>
    %342 = arith.subf %335, %338 : vector<4x1xf32>
    %343 = math.exp %342 : vector<4x1xf32>
    %cst_125 = arith.constant dense<0.000000e+00> : vector<4xf32>
    %344 = vector.multi_reduction <add>, %341, %cst_125 [1] : vector<4x4xf32> to vector<4xf32>
    %345 = vector.shape_cast %344 : vector<4xf32> to vector<4x1xf32>
    %346 = arith.addf %345, %343 : vector<4x1xf32>
    %347 = tpu.reciprocal %346 {approx = true} : vector<4x1xf32> -> vector<4x1xf32>
    %cst_126 = arith.constant dense<0.000000e+00> : vector<4x24xf32>
    %348 = tpu.matmul %341, %325, %cst_126 {dimension_numbers = #tpu.dot_dimension_numbers<[1], [0], [0], [1], [0, 0, 1, 1], [], []>} : vector<4x4xf32>, vector<4x24xf32>, vector<4x24xf32> -> vector<4x24xf32>
    %349 = vector.extract_strided_slice %289 {offsets = [0, 24], sizes = [1, 24], strides = [1, 1]} : vector<1x96xf32> to vector<1x24xf32>
    %350 = vector.broadcast %343 : vector<4x1xf32> to vector<4x24xf32>
    %351 = vector.broadcast %349 : vector<1x24xf32> to vector<4x24xf32>
    %352 = arith.mulf %350, %351 : vector<4x24xf32>
    %353 = arith.addf %348, %352 : vector<4x24xf32>
    %354 = vector.broadcast %347 : vector<4x1xf32> to vector<4x24xf32>
    %355 = arith.mulf %353, %354 : vector<4x24xf32>
    %356 = vector.extract_strided_slice %283 {offsets = [0, 48], sizes = [4, 24], strides = [1, 1]} : vector<4x96xf32> to vector<4x24xf32>
    %357 = vector.extract_strided_slice %284 {offsets = [0, 48], sizes = [4, 24], strides = [1, 1]} : vector<4x96xf32> to vector<4x24xf32>
    %358 = vector.extract_strided_slice %285 {offsets = [0, 48], sizes = [4, 24], strides = [1, 1]} : vector<4x96xf32> to vector<4x24xf32>
    %cst_127 = arith.constant dense<0.000000e+00> : vector<4x4xf32>
    %359 = tpu.matmul %356, %357, %cst_127 {dimension_numbers = #tpu.dot_dimension_numbers<[1], [1], [0], [0], [0, 0, 1, 0], [], []>} : vector<4x24xf32>, vector<4x24xf32>, vector<4x4xf32> -> vector<4x4xf32>
    %cst_128 = arith.constant 0.204124153 : f32
    %360 = vector.broadcast %cst_128 : f32 to vector<4x4xf32>
    %361 = arith.mulf %359, %360 : vector<4x4xf32>
    %362 = vector.extract_strided_slice %287 {offsets = [0, 48], sizes = [1, 24], strides = [1, 1]} : vector<1x96xf32> to vector<1x24xf32>
    %363 = vector.broadcast %362 : vector<1x24xf32> to vector<4x24xf32>
    %364 = arith.mulf %356, %363 : vector<4x24xf32>
    %cst_129 = arith.constant dense<0.000000e+00> : vector<4xf32>
    %365 = vector.multi_reduction <add>, %364, %cst_129 [1] : vector<4x24xf32> to vector<4xf32>
    %366 = vector.shape_cast %365 : vector<4xf32> to vector<4x1xf32>
    %cst_130 = arith.constant 0.204124153 : f32
    %367 = vector.broadcast %cst_130 : f32 to vector<4x1xf32>
    %368 = arith.mulf %366, %367 : vector<4x1xf32>
    %cst_131 = arith.constant dense<0xFF800000> : vector<4xf32>
    %369 = vector.multi_reduction <maximumf>, %361, %cst_131 [1] : vector<4x4xf32> to vector<4xf32>
    %370 = vector.shape_cast %369 : vector<4xf32> to vector<4x1xf32>
    %371 = arith.maximumf %370, %368 : vector<4x1xf32>
    %372 = vector.broadcast %371 : vector<4x1xf32> to vector<4x4xf32>
    %373 = arith.subf %361, %372 : vector<4x4xf32>
    %374 = math.exp %373 : vector<4x4xf32>
    %375 = arith.subf %368, %371 : vector<4x1xf32>
    %376 = math.exp %375 : vector<4x1xf32>
    %cst_132 = arith.constant dense<0.000000e+00> : vector<4xf32>
    %377 = vector.multi_reduction <add>, %374, %cst_132 [1] : vector<4x4xf32> to vector<4xf32>
    %378 = vector.shape_cast %377 : vector<4xf32> to vector<4x1xf32>
    %379 = arith.addf %378, %376 : vector<4x1xf32>
    %380 = tpu.reciprocal %379 {approx = true} : vector<4x1xf32> -> vector<4x1xf32>
    %cst_133 = arith.constant dense<0.000000e+00> : vector<4x24xf32>
    %381 = tpu.matmul %374, %358, %cst_133 {dimension_numbers = #tpu.dot_dimension_numbers<[1], [0], [0], [1], [0, 0, 1, 1], [], []>} : vector<4x4xf32>, vector<4x24xf32>, vector<4x24xf32> -> vector<4x24xf32>
    %382 = vector.extract_strided_slice %289 {offsets = [0, 48], sizes = [1, 24], strides = [1, 1]} : vector<1x96xf32> to vector<1x24xf32>
    %383 = vector.broadcast %376 : vector<4x1xf32> to vector<4x24xf32>
    %384 = vector.broadcast %382 : vector<1x24xf32> to vector<4x24xf32>
    %385 = arith.mulf %383, %384 : vector<4x24xf32>
    %386 = arith.addf %381, %385 : vector<4x24xf32>
    %387 = vector.broadcast %380 : vector<4x1xf32> to vector<4x24xf32>
    %388 = arith.mulf %386, %387 : vector<4x24xf32>
    %389 = vector.extract_strided_slice %283 {offsets = [0, 72], sizes = [4, 24], strides = [1, 1]} : vector<4x96xf32> to vector<4x24xf32>
    %390 = vector.extract_strided_slice %284 {offsets = [0, 72], sizes = [4, 24], strides = [1, 1]} : vector<4x96xf32> to vector<4x24xf32>
    %391 = vector.extract_strided_slice %285 {offsets = [0, 72], sizes = [4, 24], strides = [1, 1]} : vector<4x96xf32> to vector<4x24xf32>
    %cst_134 = arith.constant dense<0.000000e+00> : vector<4x4xf32>
    %392 = tpu.matmul %389, %390, %cst_134 {dimension_numbers = #tpu.dot_dimension_numbers<[1], [1], [0], [0], [0, 0, 1, 0], [], []>} : vector<4x24xf32>, vector<4x24xf32>, vector<4x4xf32> -> vector<4x4xf32>
    %cst_135 = arith.constant 0.204124153 : f32
    %393 = vector.broadcast %cst_135 : f32 to vector<4x4xf32>
    %394 = arith.mulf %392, %393 : vector<4x4xf32>
    %395 = vector.extract_strided_slice %287 {offsets = [0, 72], sizes = [1, 24], strides = [1, 1]} : vector<1x96xf32> to vector<1x24xf32>
    %396 = vector.broadcast %395 : vector<1x24xf32> to vector<4x24xf32>
    %397 = arith.mulf %389, %396 : vector<4x24xf32>
    %cst_136 = arith.constant dense<0.000000e+00> : vector<4xf32>
    %398 = vector.multi_reduction <add>, %397, %cst_136 [1] : vector<4x24xf32> to vector<4xf32>
    %399 = vector.shape_cast %398 : vector<4xf32> to vector<4x1xf32>
    %cst_137 = arith.constant 0.204124153 : f32
    %400 = vector.broadcast %cst_137 : f32 to vector<4x1xf32>
    %401 = arith.mulf %399, %400 : vector<4x1xf32>
    %cst_138 = arith.constant dense<0xFF800000> : vector<4xf32>
    %402 = vector.multi_reduction <maximumf>, %394, %cst_138 [1] : vector<4x4xf32> to vector<4xf32>
    %403 = vector.shape_cast %402 : vector<4xf32> to vector<4x1xf32>
    %404 = arith.maximumf %403, %401 : vector<4x1xf32>
    %405 = vector.broadcast %404 : vector<4x1xf32> to vector<4x4xf32>
    %406 = arith.subf %394, %405 : vector<4x4xf32>
    %407 = math.exp %406 : vector<4x4xf32>
    %408 = arith.subf %401, %404 : vector<4x1xf32>
    %409 = math.exp %408 : vector<4x1xf32>
    %cst_139 = arith.constant dense<0.000000e+00> : vector<4xf32>
    %410 = vector.multi_reduction <add>, %407, %cst_139 [1] : vector<4x4xf32> to vector<4xf32>
    %411 = vector.shape_cast %410 : vector<4xf32> to vector<4x1xf32>
    %412 = arith.addf %411, %409 : vector<4x1xf32>
    %413 = tpu.reciprocal %412 {approx = true} : vector<4x1xf32> -> vector<4x1xf32>
    %cst_140 = arith.constant dense<0.000000e+00> : vector<4x24xf32>
    %414 = tpu.matmul %407, %391, %cst_140 {dimension_numbers = #tpu.dot_dimension_numbers<[1], [0], [0], [1], [0, 0, 1, 1], [], []>} : vector<4x4xf32>, vector<4x24xf32>, vector<4x24xf32> -> vector<4x24xf32>
    %415 = vector.extract_strided_slice %289 {offsets = [0, 72], sizes = [1, 24], strides = [1, 1]} : vector<1x96xf32> to vector<1x24xf32>
    %416 = vector.broadcast %409 : vector<4x1xf32> to vector<4x24xf32>
    %417 = vector.broadcast %415 : vector<1x24xf32> to vector<4x24xf32>
    %418 = arith.mulf %416, %417 : vector<4x24xf32>
    %419 = arith.addf %414, %418 : vector<4x24xf32>
    %420 = vector.broadcast %413 : vector<4x1xf32> to vector<4x24xf32>
    %421 = arith.mulf %419, %420 : vector<4x24xf32>
    %422 = tpu.concatenate %322, %355, %388, %421 in 1 : vector<4x24xf32>, vector<4x24xf32>, vector<4x24xf32>, vector<4x24xf32> -> vector<4x96xf32>
    %423 = arith.truncf %422 : vector<4x96xf32> to vector<4x96xbf16>
    %c1_141 = arith.constant 1 : index
    %c0_142 = arith.constant 0 : index
    %c0_143 = arith.constant 0 : index
    %424 = vector.load %arg8[%c1_141, %c0_142, %c0_143] : memref<2x96x96xbf16, #tpu.memory_space<vmem>>, vector<1x96x96xbf16>
    %425 = vector.shape_cast %424 : vector<1x96x96xbf16> to vector<96x96xbf16>
    %cst_144 = arith.constant dense<0.000000e+00> : vector<4x96xf32>
    %426 = tpu.matmul %423, %425, %cst_144 {dimension_numbers = #tpu.dot_dimension_numbers<[1], [0], [0], [1], [0, 0, 1, 1], [], []>} : vector<4x96xbf16>, vector<96x96xbf16>, vector<4x96xf32> -> vector<4x96xf32>
    %c1_145 = arith.constant 1 : index
    %c0_146 = arith.constant 0 : index
    %c0_147 = arith.constant 0 : index
    %427 = vector.load %arg9[%c1_145, %c0_146, %c0_147] : memref<2x1x96xf32, #tpu.memory_space<vmem>>, vector<1x1x96xf32>
    %428 = vector.shape_cast %427 : vector<1x1x96xf32> to vector<1x96xf32>
    %429 = vector.broadcast %428 : vector<1x96xf32> to vector<4x96xf32>
    %430 = arith.addf %426, %429 : vector<4x96xf32>
    %431 = arith.addf %248, %430 : vector<4x96xf32>
    %c1_148 = arith.constant 1 : index
    %c0_149 = arith.constant 0 : index
    %c0_150 = arith.constant 0 : index
    %432 = vector.load %arg10[%c1_148, %c0_149, %c0_150] : memref<2x1x96xf32, #tpu.memory_space<vmem>>, vector<1x1x96xf32>
    %433 = vector.shape_cast %432 : vector<1x1x96xf32> to vector<1x96xf32>
    %c1_151 = arith.constant 1 : index
    %c0_152 = arith.constant 0 : index
    %c0_153 = arith.constant 0 : index
    %434 = vector.load %arg11[%c1_151, %c0_152, %c0_153] : memref<2x1x96xf32, #tpu.memory_space<vmem>>, vector<1x1x96xf32>
    %435 = vector.shape_cast %434 : vector<1x1x96xf32> to vector<1x96xf32>
    %cst_154 = arith.constant dense<0.000000e+00> : vector<4xf32>
    %436 = vector.multi_reduction <add>, %431, %cst_154 [1] : vector<4x96xf32> to vector<4xf32>
    %437 = vector.shape_cast %436 : vector<4xf32> to vector<4x1xf32>
    %cst_155 = arith.constant 9.600000e+01 : f32
    %438 = vector.broadcast %cst_155 : f32 to vector<4x1xf32>
    %439 = arith.divf %437, %438 : vector<4x1xf32>
    %440 = vector.broadcast %439 : vector<4x1xf32> to vector<4x96xf32>
    %441 = arith.subf %431, %440 : vector<4x96xf32>
    %442 = arith.mulf %441, %441 : vector<4x96xf32>
    %cst_156 = arith.constant dense<0.000000e+00> : vector<4xf32>
    %443 = vector.multi_reduction <add>, %442, %cst_156 [1] : vector<4x96xf32> to vector<4xf32>
    %444 = vector.shape_cast %443 : vector<4xf32> to vector<4x1xf32>
    %cst_157 = arith.constant 9.600000e+01 : f32
    %445 = vector.broadcast %cst_157 : f32 to vector<4x1xf32>
    %446 = arith.divf %444, %445 : vector<4x1xf32>
    %447 = vector.broadcast %439 : vector<4x1xf32> to vector<4x96xf32>
    %448 = arith.subf %431, %447 : vector<4x96xf32>
    %cst_158 = arith.constant 9.99999974E-6 : f32
    %449 = vector.broadcast %cst_158 : f32 to vector<4x1xf32>
    %450 = arith.addf %446, %449 : vector<4x1xf32>
    %451 = math.rsqrt %450 : vector<4x1xf32>
    %452 = vector.broadcast %451 : vector<4x1xf32> to vector<4x96xf32>
    %453 = arith.mulf %448, %452 : vector<4x96xf32>
    %454 = vector.broadcast %433 : vector<1x96xf32> to vector<4x96xf32>
    %455 = arith.mulf %453, %454 : vector<4x96xf32>
    %456 = vector.broadcast %435 : vector<1x96xf32> to vector<4x96xf32>
    %457 = arith.addf %455, %456 : vector<4x96xf32>
    %c1_159 = arith.constant 1 : index
    %c0_160 = arith.constant 0 : index
    %c0_161 = arith.constant 0 : index
    %458 = vector.load %arg12[%c1_159, %c0_160, %c0_161] : memref<2x1x96xf32, #tpu.memory_space<vmem>>, vector<1x1x96xf32>
    %459 = vector.shape_cast %458 : vector<1x1x96xf32> to vector<1x96xf32>
    %460 = vector.broadcast %1 : vector<4x1xf32> to vector<4x96xf32>
    %461 = vector.broadcast %459 : vector<1x96xf32> to vector<4x96xf32>
    %462 = arith.mulf %460, %461 : vector<4x96xf32>
    %c1_162 = arith.constant 1 : index
    %c0_163 = arith.constant 0 : index
    %c0_164 = arith.constant 0 : index
    %463 = vector.load %arg13[%c1_162, %c0_163, %c0_164] : memref<2x1x96xf32, #tpu.memory_space<vmem>>, vector<1x1x96xf32>
    %464 = vector.shape_cast %463 : vector<1x1x96xf32> to vector<1x96xf32>
    %465 = vector.broadcast %464 : vector<1x96xf32> to vector<4x96xf32>
    %466 = arith.addf %462, %465 : vector<4x96xf32>
    %cst_165 = arith.constant 2.000000e+00 : f32
    %467 = vector.broadcast %cst_165 : f32 to vector<4x96xf32>
    %468 = arith.mulf %467, %457 : vector<4x96xf32>
    %469 = arith.addf %468, %466 : vector<4x96xf32>
    %c1_166 = arith.constant 1 : index
    %c0_167 = arith.constant 0 : index
    %c0_168 = arith.constant 0 : index
    %470 = vector.load %arg14[%c1_166, %c0_167, %c0_168] : memref<2x1x96xf32, #tpu.memory_space<vmem>>, vector<1x1x96xf32>
    %471 = vector.shape_cast %470 : vector<1x1x96xf32> to vector<1x96xf32>
    %c1_169 = arith.constant 1 : index
    %c0_170 = arith.constant 0 : index
    %c0_171 = arith.constant 0 : index
    %472 = vector.load %arg15[%c1_169, %c0_170, %c0_171] : memref<2x1x96xf32, #tpu.memory_space<vmem>>, vector<1x1x96xf32>
    %473 = vector.shape_cast %472 : vector<1x1x96xf32> to vector<1x96xf32>
    %cst_172 = arith.constant dense<0.000000e+00> : vector<4xf32>
    %474 = vector.multi_reduction <add>, %469, %cst_172 [1] : vector<4x96xf32> to vector<4xf32>
    %475 = vector.shape_cast %474 : vector<4xf32> to vector<4x1xf32>
    %cst_173 = arith.constant 9.600000e+01 : f32
    %476 = vector.broadcast %cst_173 : f32 to vector<4x1xf32>
    %477 = arith.divf %475, %476 : vector<4x1xf32>
    %478 = vector.broadcast %477 : vector<4x1xf32> to vector<4x96xf32>
    %479 = arith.subf %469, %478 : vector<4x96xf32>
    %480 = arith.mulf %479, %479 : vector<4x96xf32>
    %cst_174 = arith.constant dense<0.000000e+00> : vector<4xf32>
    %481 = vector.multi_reduction <add>, %480, %cst_174 [1] : vector<4x96xf32> to vector<4xf32>
    %482 = vector.shape_cast %481 : vector<4xf32> to vector<4x1xf32>
    %cst_175 = arith.constant 9.600000e+01 : f32
    %483 = vector.broadcast %cst_175 : f32 to vector<4x1xf32>
    %484 = arith.divf %482, %483 : vector<4x1xf32>
    %485 = vector.broadcast %477 : vector<4x1xf32> to vector<4x96xf32>
    %486 = arith.subf %469, %485 : vector<4x96xf32>
    %cst_176 = arith.constant 9.99999974E-6 : f32
    %487 = vector.broadcast %cst_176 : f32 to vector<4x1xf32>
    %488 = arith.addf %484, %487 : vector<4x1xf32>
    %489 = math.rsqrt %488 : vector<4x1xf32>
    %490 = vector.broadcast %489 : vector<4x1xf32> to vector<4x96xf32>
    %491 = arith.mulf %486, %490 : vector<4x96xf32>
    %492 = vector.broadcast %471 : vector<1x96xf32> to vector<4x96xf32>
    %493 = arith.mulf %491, %492 : vector<4x96xf32>
    %494 = vector.broadcast %473 : vector<1x96xf32> to vector<4x96xf32>
    %495 = arith.addf %493, %494 : vector<4x96xf32>
    %496 = arith.truncf %495 : vector<4x96xf32> to vector<4x96xbf16>
    %c0_177 = arith.constant 0 : index
    %c0_178 = arith.constant 0 : index
    %497 = vector.load %arg16[%c0_177, %c0_178] : memref<96x128xbf16, #tpu.memory_space<vmem>>, vector<96x128xbf16>
    %cst_179 = arith.constant dense<0.000000e+00> : vector<4x128xf32>
    %498 = tpu.matmul %496, %497, %cst_179 {dimension_numbers = #tpu.dot_dimension_numbers<[1], [0], [0], [1], [0, 0, 1, 1], [], []>} : vector<4x96xbf16>, vector<96x128xbf16>, vector<4x128xf32> -> vector<4x128xf32>
    %c0_180 = arith.constant 0 : index
    %c0_181 = arith.constant 0 : index
    %499 = vector.load %arg17[%c0_180, %c0_181] : memref<1x128xf32, #tpu.memory_space<vmem>>, vector<1x128xf32>
    %500 = vector.broadcast %499 : vector<1x128xf32> to vector<4x128xf32>
    %501 = arith.addf %498, %500 : vector<4x128xf32>
    %c0_182 = arith.constant 0 : index
    %c0_183 = arith.constant 0 : index
    %502 = vector.load %arg18[%c0_182, %c0_183] : memref<4x128xf32, #tpu.memory_space<vmem>>, vector<4x128xf32>
    tpu.vector_store %arg18[%c0_182, %c0_183], %501 {strides = array<i32>} : memref<4x128xf32, #tpu.memory_space<vmem>>, vector<4x128xf32>,
    return
  }
}

</mosaic_0001>

<llo_original>
// kernel: tpu_custom_call.1
$region0: #{tpu_custom_call.1}
  #allocation0 [shape = 'u32[]', space=smem, size = 0x4, offset = 0x4, fixed_abs, tag = 'smem constant byte address 0x4 - core index']
  #allocation1 [shape = 'u32[144,128]{1,0:T(1,128)}', space=vmem, size = 0x12000, scoped, tag = 'internal scratch']
  %s0 = inlined_call_operand.vmem [shape: f32[4,96], index: 0, kind: input, shape index: {}]
  %s1 = inlined_call_operand.vmem [shape: f32[4,1], index: 1, kind: input, shape index: {}]
  %s2 = inlined_call_operand.vmem [shape: f32[2,1,96], index: 2, kind: input, shape index: {}]
  %s3 = inlined_call_operand.vmem [shape: f32[2,1,96], index: 3, kind: input, shape index: {}]
  %s4 = inlined_call_operand.hbm [shape: bf16[2,96,288], index: 4, kind: input, shape index: {}]
  %s5 = inlined_call_operand.vmem [shape: f32[2,1,288], index: 5, kind: input, shape index: {}]
  %s6 = inlined_call_operand.vmem [shape: f32[2,1,96], index: 6, kind: input, shape index: {}]
  %s7 = inlined_call_operand.hbm [shape: f32[2,1,96], index: 7, kind: input, shape index: {}]
  %s8 = inlined_call_operand.hbm [shape: bf16[2,96,96], index: 8, kind: input, shape index: {}]
  %s9 = inlined_call_operand.hbm [shape: f32[2,1,96], index: 9, kind: input, shape index: {}]
  %s10 = inlined_call_operand.hbm [shape: f32[2,1,96], index: 10, kind: input, shape index: {}]
  %s11 = inlined_call_operand.hbm [shape: f32[2,1,96], index: 11, kind: input, shape index: {}]
  %s12 = inlined_call_operand.hbm [shape: f32[2,1,96], index: 12, kind: input, shape index: {}]
  %s13 = inlined_call_operand.hbm [shape: f32[2,1,96], index: 13, kind: input, shape index: {}]
  %s14 = inlined_call_operand.hbm [shape: f32[2,1,96], index: 14, kind: input, shape index: {}]
  %s15 = inlined_call_operand.hbm [shape: f32[2,1,96], index: 15, kind: input, shape index: {}]
  %s16 = inlined_call_operand.vmem [shape: bf16[96,128], index: 16, kind: input, shape index: {}]
  %s17 = inlined_call_operand.vmem [shape: f32[1,128], index: 17, kind: input, shape index: {}]
  %s18 = inlined_call_operand.hbm [shape: f32[4,128], index: 18, kind: output, shape index: {}]
  %s19 = sld [smem:[#allocation0]]
  $region122: #{tpu_custom_call.1} parent=0
    _
  %s21 = ssub.s32 1, %s19
  %s22 = scalar_select 0, %s21, %s19
  $region1: #{tpu_custom_call.1} parent=0
    #allocation2 [shape = 'u8[147456]{0}', space=vmem, size = 0x24000, scoped, tag = 'input window, operand 4, single buffered']
    #allocation3 [shape = 's32[1]{0}', space=sflag, size = 0x4, scoped, tag = 'scoped memory for tpu_custom_call.1']
    #allocation4 [shape = 's32[1]{0}', space=sflag, size = 0x4, scoped, tag = 'scoped memory for tpu_custom_call.1']
    #allocation5 [shape = 'u8[1024]{0}', space=vmem, size = 0x400, scoped, tag = 'input window, operand 7, single buffered']
    #allocation6 [shape = 's32[1]{0}', space=sflag, size = 0x4, scoped, tag = 'scoped memory for tpu_custom_call.1']
    #allocation7 [shape = 'u8[49152]{0}', space=vmem, size = 0xc000, scoped, tag = 'input window, operand 8, single buffered']
    #allocation8 [shape = 'u8[1024]{0}', space=vmem, size = 0x400, scoped, tag = 'input window, operand 9, single buffered']
    #allocation9 [shape = 's32[1]{0}', space=sflag, size = 0x4, scoped, tag = 'scoped memory for tpu_custom_call.1']
    #allocation10 [shape = 'u8[1024]{0}', space=vmem, size = 0x400, scoped, tag = 'input window, operand 10, single buffered']
    #allocation11 [shape = 'u8[1024]{0}', space=vmem, size = 0x400, scoped, tag = 'input window, operand 11, single buffered']
    #allocation12 [shape = 's32[1]{0}', space=sflag, size = 0x4, scoped, tag = 'scoped memory for tpu_custom_call.1']
    #allocation13 [shape = 'u8[1024]{0}', space=vmem, size = 0x400, scoped, tag = 'input window, operand 12, single buffered']
    #allocation14 [shape = 'u8[1024]{0}', space=vmem, size = 0x400, scoped, tag = 'input window, operand 13, single buffered']
    #allocation15 [shape = 's32[1]{0}', space=sflag, size = 0x4, scoped, tag = 'scoped memory for tpu_custom_call.1']
    #allocation16 [shape = 'u8[1024]{0}', space=vmem, size = 0x400, scoped, tag = 'input window, operand 14, single buffered']
    #allocation17 [shape = 'u8[1024]{0}', space=vmem, size = 0x400, scoped, tag = 'input window, operand 15, single buffered']
    #allocation18 [shape = 's32[1]{0}', space=sflag, size = 0x4, scoped, tag = 'scoped memory for tpu_custom_call.1']
    #allocation19 [shape = 'u8[2048]{0}', space=vmem, size = 0x800, scoped, tag = 'output window, operand 0, single buffered']
    %23 = vsyncpa [#allocation3], 0
    %24 = vsyncpa [#allocation6], 0
    %25 = vsyncpa [#allocation9], 0
    %26 = vsyncpa [#allocation12], 0
    %27 = vsyncpa [#allocation15], 0
    %28 = vsyncpa [#allocation18], 0
    %29 = vsyncpa [#allocation4], 0
    // Predicated region
    $region2: #{tpu_custom_call.1} parent=1 // pred_check
      _
    $region3: #{tpu_custom_call.1} parent=1 // pred_check_branch
      %31 = sbr.rel (0) target = $region5
    $region4: #{tpu_custom_call.1} parent=1 // pred_region
      _
    $region5: #{tpu_custom_call.1} parent=1 // pred_fallthru
      _
    // Predicated region
    $region6: #{tpu_custom_call.1} parent=1 // pred_check
      _
    $region7: #{tpu_custom_call.1} parent=1 // pred_check_branch
      %33 = sbr.rel (0) target = $region9
    $region8: #{tpu_custom_call.1} parent=1 // pred_region
      _
    $region9: #{tpu_custom_call.1} parent=1 // pred_fallthru
      _
    // Predicated region
    $region10: #{tpu_custom_call.1} parent=1 // pred_check
      _
    $region11: #{tpu_custom_call.1} parent=1 // pred_check_branch
      %35 = sbr.rel (0) target = $region13
    $region12: #{tpu_custom_call.1} parent=1 // pred_region
      _
    $region13: #{tpu_custom_call.1} parent=1 // pred_fallthru
      _
    // Predicated region
    $region14: #{tpu_custom_call.1} parent=1 // pred_check
      _
    $region15: #{tpu_custom_call.1} parent=1 // pred_check_branch
      %37 = sbr.rel (0) target = $region17
    $region16: #{tpu_custom_call.1} parent=1 // pred_region
      _
    $region17: #{tpu_custom_call.1} parent=1 // pred_fallthru
      _
    // Predicated region
    $region18: #{tpu_custom_call.1} parent=1 // pred_check
      _
    $region19: #{tpu_custom_call.1} parent=1 // pred_check_branch
      %39 = sbr.rel (0) target = $region21
    $region20: #{tpu_custom_call.1} parent=1 // pred_region
      %s41 = ssub.s32 4608, 4608
      %42 = vsyncadd [#allocation3], %s41
      %s43 = sshll.u32 [#allocation2], 4
      %s44 = int_to_ptr.vmem [resolvable:$true] %s43
      %49 = dma.hbm_to_vmem [thread:$0]  %s4, 4608, %s44, [#allocation3], 192, 192, 12
    $region21: #{tpu_custom_call.1} parent=1 // pred_fallthru
      _
    // Predicated region
    $region22: #{tpu_custom_call.1} parent=1 // pred_check
      _
    $region23: #{tpu_custom_call.1} parent=1 // pred_check_branch
      %51 = sbr.rel (0) target = $region25
    $region24: #{tpu_custom_call.1} parent=1 // pred_region
      _
    $region25: #{tpu_custom_call.1} parent=1 // pred_fallthru
      _
    // Predicated region
    $region26: #{tpu_custom_call.1} parent=1 // pred_check
      _
    $region27: #{tpu_custom_call.1} parent=1 // pred_check_branch
      %53 = sbr.rel (0) target = $region29
    $region28: #{tpu_custom_call.1} parent=1 // pred_region
      _
    $region29: #{tpu_custom_call.1} parent=1 // pred_fallthru
      _
    // Predicated region
    $region30: #{tpu_custom_call.1} parent=1 // pred_check
      _
    $region31: #{tpu_custom_call.1} parent=1 // pred_check_branch
      %55 = sbr.rel (0) target = $region33
    $region32: #{tpu_custom_call.1} parent=1 // pred_region
      %s57 = ssub.s32 32, 32
      %58 = vsyncadd [#allocation6], %s57
      %s59 = sshll.u32 [#allocation5], 4
      %s60 = int_to_ptr.vmem [resolvable:$true] %s59
      %65 = dma.hbm_to_vmem [thread:$0]  %s7, 32, %s60, [#allocation6], 16, 16, 1
    $region33: #{tpu_custom_call.1} parent=1 // pred_fallthru
      _
    // Predicated region
    $region34: #{tpu_custom_call.1} parent=1 // pred_check
      _
    $region35: #{tpu_custom_call.1} parent=1 // pred_check_branch
      %67 = sbr.rel (0) target = $region37
    $region36: #{tpu_custom_call.1} parent=1 // pred_region
      %s69 = ssub.s32 1536, 1536
      %70 = vsyncadd [#allocation6], %s69
      %s71 = sshll.u32 [#allocation7], 4
      %s72 = int_to_ptr.vmem [resolvable:$true] %s71
      %77 = dma.hbm_to_vmem [thread:$0]  %s8, 1536, %s72, [#allocation6], 64, 64, 4
    $region37: #{tpu_custom_call.1} parent=1 // pred_fallthru
      _
    // Predicated region
    $region38: #{tpu_custom_call.1} parent=1 // pred_check
      _
    $region39: #{tpu_custom_call.1} parent=1 // pred_check_branch
      %79 = sbr.rel (0) target = $region41
    $region40: #{tpu_custom_call.1} parent=1 // pred_region
      %s81 = ssub.s32 32, 32
      %82 = vsyncadd [#allocation9], %s81
      %s83 = sshll.u32 [#allocation8], 4
      %s84 = int_to_ptr.vmem [resolvable:$true] %s83
      %89 = dma.hbm_to_vmem [thread:$0]  %s9, 32, %s84, [#allocation9], 16, 16, 1
    $region41: #{tpu_custom_call.1} parent=1 // pred_fallthru
      _
    // Predicated region
    $region42: #{tpu_custom_call.1} parent=1 // pred_check
      _
    $region43: #{tpu_custom_call.1} parent=1 // pred_check_branch
      %91 = sbr.rel (0) target = $region45
    $region44: #{tpu_custom_call.1} parent=1 // pred_region
      %s93 = ssub.s32 32, 32
      %94 = vsyncadd [#allocation9], %s93
      %s95 = sshll.u32 [#allocation10], 4
      %s96 = int_to_ptr.vmem [resolvable:$true] %s95
      %101 = dma.hbm_to_vmem [thread:$0]  %s10, 32, %s96, [#allocation9], 16, 16, 1
    $region45: #{tpu_custom_call.1} parent=1 // pred_fallthru
      _
    // Predicated region
    $region46: #{tpu_custom_call.1} parent=1 // pred_check
      _
    $region47: #{tpu_custom_call.1} parent=1 // pred_check_branch
      %103 = sbr.rel (0) target = $region49
    $region48: #{tpu_custom_call.1} parent=1 // pred_region
      %s105 = ssub.s32 32, 32
      %106 = vsyncadd [#allocation12], %s105
      %s107 = sshll.u32 [#allocation11], 4
      %s108 = int_to_ptr.vmem [resolvable:$true] %s107
      %113 = dma.hbm_to_vmem [thread:$0]  %s11, 32, %s108, [#allocation12], 16, 16, 1
    $region49: #{tpu_custom_call.1} parent=1 // pred_fallthru
      _
    // Predicated region
    $region50: #{tpu_custom_call.1} parent=1 // pred_check
      _
    $region51: #{tpu_custom_call.1} parent=1 // pred_check_branch
      %115 = sbr.rel (0) target = $region53
    $region52: #{tpu_custom_call.1} parent=1 // pred_region
      %s117 = ssub.s32 32, 32
      %118 = vsyncadd [#allocation12], %s117
      %s119 = sshll.u32 [#allocation13], 4
      %s120 = int_to_ptr.vmem [resolvable:$true] %s119
      %125 = dma.hbm_to_vmem [thread:$0]  %s12, 32, %s120, [#allocation12], 16, 16, 1
    $region53: #{tpu_custom_call.1} parent=1 // pred_fallthru
      _
    // Predicated region
    $region54: #{tpu_custom_call.1} parent=1 // pred_check
      _
    $region55: #{tpu_custom_call.1} parent=1 // pred_check_branch
      %127 = sbr.rel (0) target = $region57
    $region56: #{tpu_custom_call.1} parent=1 // pred_region
      %s129 = ssub.s32 32, 32
      %130 = vsyncadd [#allocation15], %s129
      %s131 = sshll.u32 [#allocation14], 4
      %s132 = int_to_ptr.vmem [resolvable:$true] %s131
      %137 = dma.hbm_to_vmem [thread:$0]  %s13, 32, %s132, [#allocation15], 16, 16, 1
    $region57: #{tpu_custom_call.1} parent=1 // pred_fallthru
      _
    // Predicated region
    $region58: #{tpu_custom_call.1} parent=1 // pred_check
      _
    $region59: #{tpu_custom_call.1} parent=1 // pred_check_branch
      %139 = sbr.rel (0) target = $region61
    $region60: #{tpu_custom_call.1} parent=1 // pred_region
      %s141 = ssub.s32 32, 32
      %142 = vsyncadd [#allocation15], %s141
      %s143 = sshll.u32 [#allocation16], 4
      %s144 = int_to_ptr.vmem [resolvable:$true] %s143
      %149 = dma.hbm_to_vmem [thread:$0]  %s14, 32, %s144, [#allocation15], 16, 16, 1
    $region61: #{tpu_custom_call.1} parent=1 // pred_fallthru
      _
    // Predicated region
    $region62: #{tpu_custom_call.1} parent=1 // pred_check
      _
    $region63: #{tpu_custom_call.1} parent=1 // pred_check_branch
      %151 = sbr.rel (0) target = $region65
    $region64: #{tpu_custom_call.1} parent=1 // pred_region
      %s153 = ssub.s32 32, 32
      %154 = vsyncadd [#allocation18], %s153
      %s155 = sshll.u32 [#allocation17], 4
      %s156 = int_to_ptr.vmem [resolvable:$true] %s155
      %161 = dma.hbm_to_vmem [thread:$0]  %s15, 32, %s156, [#allocation18], 16, 16, 1
    $region65: #{tpu_custom_call.1} parent=1 // pred_fallthru
      _
    // Predicated region
    $region66: #{tpu_custom_call.1} parent=1 // pred_check
      _
    $region67: #{tpu_custom_call.1} parent=1 // pred_check_branch
      %163 = sbr.rel (0) target = $region69
    $region68: #{tpu_custom_call.1} parent=1 // pred_region
      _
    $region69: #{tpu_custom_call.1} parent=1 // pred_fallthru
      _
    // Predicated region
    $region70: #{tpu_custom_call.1} parent=1 // pred_check
      _
    $region71: #{tpu_custom_call.1} parent=1 // pred_check_branch
      %165 = sbr.rel (0) target = $region73
    $region72: #{tpu_custom_call.1} parent=1 // pred_region
      _
    $region73: #{tpu_custom_call.1} parent=1 // pred_fallthru
      _
    // Predicated region
    $region74: #{tpu_custom_call.1} parent=1 // pred_check
      _
    $region75: #{tpu_custom_call.1} parent=1 // pred_check_branch
      %167 = sbr.rel (0) target = $region77
    $region76: #{tpu_custom_call.1} parent=1 // pred_region
      %168 = dma.done [#allocation3], 4608
    $region77: #{tpu_custom_call.1} parent=1 // pred_fallthru
      _
    // Predicated region
    $region78: #{tpu_custom_call.1} parent=1 // pred_check
      _
    $region79: #{tpu_custom_call.1} parent=1 // pred_check_branch
      %170 = sbr.rel (0) target = $region81
    $region80: #{tpu_custom_call.1} parent=1 // pred_region
      %171 = dma.done [#allocation6], 32
    $region81: #{tpu_custom_call.1} parent=1 // pred_fallthru
      _
    // Predicated region
    $region82: #{tpu_custom_call.1} parent=1 // pred_check
      _
    $region83: #{tpu_custom_call.1} parent=1 // pred_check_branch
      %173 = sbr.rel (0) target = $region85
    $region84: #{tpu_custom_call.1} parent=1 // pred_region
      %174 = dma.done [#allocation6], 1536
    $region85: #{tpu_custom_call.1} parent=1 // pred_fallthru
      _
    // Predicated region
    $region86: #{tpu_custom_call.1} parent=1 // pred_check
      _
    $region87: #{tpu_custom_call.1} parent=1 // pred_check_branch
      %176 = sbr.rel (0) target = $region89
    $region88: #{tpu_custom_call.1} parent=1 // pred_region
      %177 = dma.done [#allocation9], 32
    $region89: #{tpu_custom_call.1} parent=1 // pred_fallthru
      _
    // Predicated region
    $region90: #{tpu_custom_call.1} parent=1 // pred_check
      _
    $region91: #{tpu_custom_call.1} parent=1 // pred_check_branch
      %179 = sbr.rel (0) target = $region93
    $region92: #{tpu_custom_call.1} parent=1 // pred_region
      %180 = dma.done [#allocation9], 32
    $region93: #{tpu_custom_call.1} parent=1 // pred_fallthru
      _
    // Predicated region
    $region94: #{tpu_custom_call.1} parent=1 // pred_check
      _
    $region95: #{tpu_custom_call.1} parent=1 // pred_check_branch
      %182 = sbr.rel (0) target = $region97
    $region96: #{tpu_custom_call.1} parent=1 // pred_region
      %183 = dma.done [#allocation12], 32
    $region97: #{tpu_custom_call.1} parent=1 // pred_fallthru
      _
    // Predicated region
    $region98: #{tpu_custom_call.1} parent=1 // pred_check
      _
    $region99: #{tpu_custom_call.1} parent=1 // pred_check_branch
      %185 = sbr.rel (0) target = $region101
    $region100: #{tpu_custom_call.1} parent=1 // pred_region
      %186 = dma.done [#allocation12], 32
    $region101: #{tpu_custom_call.1} parent=1 // pred_fallthru
      _
    // Predicated region
    $region102: #{tpu_custom_call.1} parent=1 // pred_check
      _
    $region103: #{tpu_custom_call.1} parent=1 // pred_check_branch
      %188 = sbr.rel (0) target = $region105
    $region104: #{tpu_custom_call.1} parent=1 // pred_region
      %189 = dma.done [#allocation15], 32
    $region105: #{tpu_custom_call.1} parent=1 // pred_fallthru
      _
    // Predicated region
    $region106: #{tpu_custom_call.1} parent=1 // pred_check
      _
    $region107: #{tpu_custom_call.1} parent=1 // pred_check_branch
      %191 = sbr.rel (0) target = $region109
    $region108: #{tpu_custom_call.1} parent=1 // pred_region
      %192 = dma.done [#allocation15], 32
    $region109: #{tpu_custom_call.1} parent=1 // pred_fallthru
      _
    // Predicated region
    $region110: #{tpu_custom_call.1} parent=1 // pred_check
      _
    $region111: #{tpu_custom_call.1} parent=1 // pred_check_branch
      %194 = sbr.rel (0) target = $region113
    $region112: #{tpu_custom_call.1} parent=1 // pred_region
      %195 = dma.done [#allocation18], 32
    $region113: #{tpu_custom_call.1} parent=1 // pred_fallthru
      _
    %v197 = vld [vmem:[%s0] sm:$0xf]
    %v198 = vld [vmem:[%s1] sm:$0xf]
    %v199 = vld [vmem:[%s2] sm:$0x1]
    %v200 = vld [vmem:[%s3] sm:$0x1]
    %vm201 = vcmask 781312
    %v202 = vsel %vm201, %v197, 0.0
    %203 = vadd.xlane.f32.xlu0 %v202
    %v204 = vpop.xlane.xlu0 %203
    %v205 = vrcp.pop 96.0
    %v206 = vmul.f32 %v204, %v205
    %v207 = vsub.f32 %v197, %v206
    %v208 = vmul.f32 %v207, %v207
    %v209 = vsel %vm201, %v208, 0.0
    %210 = vadd.xlane.f32.xlu0 %v209
    %v211 = vpop.xlane.xlu0 %210
    %v212 = vmul.f32 %v211, %v205
    %v213 = vadd.f32 %v212, 1e-05
    %v214 = vrsqrt.pop %v213
    %v215 = vmul.f32 %v207, %v214
    %v217 = vlaneseq
    %v218 = vshrl.u32 %v217, 7
    %v219 = vsub.s32 0, %v218
    %v220 = vrot.slane %v199, %v219
    %v222 = vmul.f32 %v215, %v220
    %v224 = vlaneseq
    %v225 = vshrl.u32 %v224, 7
    %v226 = vsub.s32 0, %v225
    %v227 = vrot.slane %v200, %v226
    %v229 = vadd.f32 %v222, %v227
    %v230 = vpack.c.bf16 %v229, %v229
    %v231 = vld [vmem:[#allocation2] sm:$0xff]
    %v232 = vld [vmem:[#allocation2 + $0x8] sm:$0xf]
    %v233 = vld [vmem:[#allocation2 + $0xc] sm:$0xff]
    %v234 = vld [vmem:[#allocation2 + $0x14] sm:$0xf]
    %v235 = vld [vmem:[#allocation2 + $0x18] sm:$0xff]
    %v236 = vld [vmem:[#allocation2 + $0x20] sm:$0xf]
    %v237 = vld [vmem:[#allocation2 + $0x24] sm:$0xff]
    %v238 = vld [vmem:[#allocation2 + $0x2c] sm:$0xf]
    %v239 = vld [vmem:[#allocation2 + $0x30] sm:$0xff]
    %v240 = vld [vmem:[#allocation2 + $0x38] sm:$0xf]
    %v241 = vld [vmem:[#allocation2 + $0x3c] sm:$0xff]
    %v242 = vld [vmem:[#allocation2 + $0x44] sm:$0xf]
    %v243 = vld [vmem:[#allocation2 + $0x48] sm:$0xff]
    %v244 = vld [vmem:[#allocation2 + $0x50] sm:$0xf]
    %v245 = vld [vmem:[#allocation2 + $0x54] sm:$0xff]
    %v246 = vld [vmem:[#allocation2 + $0x5c] sm:$0xf]
    %v247 = vld [vmem:[#allocation2 + $0x60] sm:$0xff]
    %v248 = vld [vmem:[#allocation2 + $0x68] sm:$0xf]
    %v249 = vld [vmem:[#allocation2 + $0x6c] sm:$0xff]
    %v250 = vld [vmem:[#allocation2 + $0x74] sm:$0xf]
    %v251 = vld [vmem:[#allocation2 + $0x78] sm:$0xff]
    %v252 = vld [vmem:[#allocation2 + $0x80] sm:$0xf]
    %v253 = vld [vmem:[#allocation2 + $0x84] sm:$0xff]
    %v254 = vld [vmem:[#allocation2 + $0x8c] sm:$0xf]
    %v255 = vld [vmem:[%s5] sm:$0x7]
    %v257 = vlaneseq
    %v258 = vshrl.u32 %v257, 7
    %v259 = vsub.s32 0, %v258
    %v260 = vrot.slane %v255, %v259
    %v261 = vlaneseq
    %v262 = vshrl.u32 %v261, 7
    %v263 = vsub.s32 1, %v262
    %v264 = vrot.slane %v255, %v263
    %v265 = vlaneseq
    %v266 = vshrl.u32 %v265, 7
    %v267 = vsub.s32 2, %v266
    %v268 = vrot.slane %v255, %v267
    %v296 = vunpack.c.l.b16 %v231
    %v297 = vunpack.c.h.b16 %v231
    %v298 = vunpack.c.l.b16 %v232
    %v299 = vunpack.c.l.b16 %v233
    %v300 = vunpack.c.h.b16 %v233
    %v301 = vunpack.c.l.b16 %v234
    %v302 = vunpack.c.l.b16 %v235
    %v303 = vunpack.c.h.b16 %v235
    %v304 = vunpack.c.l.b16 %v236
    %v305 = vunpack.c.l.b16 %v237
    %v306 = vunpack.c.h.b16 %v237
    %v307 = vunpack.c.l.b16 %v238
    %v308 = vunpack.c.l.b16 %v239
    %v309 = vunpack.c.h.b16 %v239
    %v310 = vunpack.c.l.b16 %v240
    %v311 = vunpack.c.l.b16 %v241
    %v312 = vunpack.c.h.b16 %v241
    %v313 = vunpack.c.l.b16 %v242
    %v314 = vunpack.c.l.b16 %v243
    %v315 = vunpack.c.h.b16 %v243
    %v316 = vunpack.c.l.b16 %v244
    %v317 = vunpack.c.l.b16 %v245
    %v318 = vunpack.c.h.b16 %v245
    %v319 = vunpack.c.l.b16 %v246
    %v320 = vunpack.c.l.b16 %v247
    %v321 = vunpack.c.h.b16 %v247
    %v322 = vunpack.c.l.b16 %v248
    %v323 = vunpack.c.l.b16 %v249
    %v324 = vunpack.c.h.b16 %v249
    %v325 = vunpack.c.l.b16 %v250
    %v326 = vunpack.c.l.b16 %v251
    %v327 = vunpack.c.h.b16 %v251
    %v328 = vunpack.c.l.b16 %v252
    %v329 = vunpack.c.l.b16 %v253
    %v330 = vunpack.c.h.b16 %v253
    %v331 = vunpack.c.l.b16 %v254
    %v332 = vpack.c.b16 %v299, %v296
    %v333 = vpack.c.b16 %v300, %v297
    %v334 = vpack.c.b16 %v301, %v298
    %v335 = vpack.c.b16 %v305, %v302
    %v336 = vpack.c.b16 %v306, %v303
    %v337 = vpack.c.b16 %v307, %v304
    %v338 = vpack.c.b16 %v311, %v308
    %v339 = vpack.c.b16 %v312, %v309
    %v340 = vpack.c.b16 %v313, %v310
    %v341 = vpack.c.b16 %v317, %v314
    %v342 = vpack.c.b16 %v318, %v315
    %v343 = vpack.c.b16 %v319, %v316
    %v344 = vpack.c.b16 %v323, %v320
    %v345 = vpack.c.b16 %v324, %v321
    %v346 = vpack.c.b16 %v325, %v322
    %v347 = vpack.c.b16 %v329, %v326
    %v348 = vpack.c.b16 %v330, %v327
    %v349 = vpack.c.b16 %v331, %v328
    %vm368 = vcmask 785408
    %v370 = vsel %vm368, %v230, 0
    %372 = vmatprep.subr.bf16.mxu0 %v333
    %373 = vmatpush1.bf16.msra.mxu0 %v332
    %374 = vmatprep.subr.bf16.mxu0 %v336
    %375 = vmatpush1.bf16.msra.mxu0 %v335
    %376 = vmatprep.subr.bf16.mxu0 %v339
    %377 = vmatpush1.bf16.msra.mxu0 %v338
    %378 = vmatprep.subr.bf16.mxu0 %v342
    %379 = vmatpush1.bf16.msra.mxu0 %v341
    %380 = vmatprep.subr.bf16.mxu0 %v345
    %381 = vmatpush1.bf16.msra.mxu0 %v344
    %382 = vmatprep.subr.bf16.mxu0 %v348
    %383 = vmatpush1.bf16.msra.mxu0 %v347
    %384 = vmatprep.subr.bf16.mxu0 0
    %385 = vmatpush1.bf16.msra.mxu0 0
    %386 = vmatprep.subr.bf16.mxu0 0
    %387 = vmatpush1.bf16.msra.mxu0 0
    %388 = vmatprep.subr.bf16.mxu0 0
    %389 = vmatpush1.bf16.msra.mxu0 0
    %390 = vmatprep.subr.bf16.mxu0 0
    %391 = vmatpush1.bf16.msra.mxu0 0
    %392 = vmatprep.subr.bf16.mxu0 0
    %393 = vmatpush1.bf16.msra.mxu0 0
    %394 = vmatprep.subr.bf16.mxu0 0
    %395 = vmatpush1.bf16.msra.mxu0 0
    %396 = vmatprep.subr.bf16.mxu0 0
    %397 = vmatpush1.bf16.msra.mxu0 0
    %398 = vmatprep.subr.bf16.mxu0 0
    %399 = vmatpush1.bf16.msra.mxu0 0
    %400 = vmatprep.subr.bf16.mxu0 0
    %401 = vmatpush1.bf16.msra.mxu0 0
    %402 = vmatprep.subr.bf16.mxu0 0
    %403 = vmatpush1.bf16.msra.mxu0 0
    %404 = vmatprep.mubr.bf16.mxu0 0
    %405 = vmatmul.mubr.bf16.gmra.mrb[0].mxu0 %v370
    %v406 = vpop.f32.mrb[0].mxu0
    %v407 = vadd.f32 %v260, %v406
    %v408 = vpop.f32.mrb[0].mxu0
    %v409 = vadd.f32 %v264, %v408
    %v410 = vpop.f32.mrb[0].mxu0
    %v411 = vpop.f32.mrb[0].mxu0
    %412 = vdwg.mxu0
    %413 = vmatprep.subr.bf16.mxu0 0
    %414 = vmatpush1.bf16.msra.mxu0 %v334
    %415 = vmatprep.subr.bf16.mxu0 0
    %416 = vmatpush1.bf16.msra.mxu0 %v337
    %417 = vmatprep.subr.bf16.mxu0 0
    %418 = vmatpush1.bf16.msra.mxu0 %v340
    %419 = vmatprep.subr.bf16.mxu0 0
    %420 = vmatpush1.bf16.msra.mxu0 %v343
    %421 = vmatprep.subr.bf16.mxu0 0
    %422 = vmatpush1.bf16.msra.mxu0 %v346
    %423 = vmatprep.subr.bf16.mxu0 0
    %424 = vmatpush1.bf16.msra.mxu0 %v349
    %425 = vmatprep.subr.bf16.mxu0 0
    %426 = vmatpush1.bf16.msra.mxu0 0
    %427 = vmatprep.subr.bf16.mxu0 0
    %428 = vmatpush1.bf16.msra.mxu0 0
    %429 = vmatprep.subr.bf16.mxu0 0
    %430 = vmatpush1.bf16.msra.mxu0 0
    %431 = vmatprep.subr.bf16.mxu0 0
    %432 = vmatpush1.bf16.msra.mxu0 0
    %433 = vmatprep.subr.bf16.mxu0 0
    %434 = vmatpush1.bf16.msra.mxu0 0
    %435 = vmatprep.subr.bf16.mxu0 0
    %436 = vmatpush1.bf16.msra.mxu0 0
    %437 = vmatprep.subr.bf16.mxu0 0
    %438 = vmatpush1.bf16.msra.mxu0 0
    %439 = vmatprep.subr.bf16.mxu0 0
    %440 = vmatpush1.bf16.msra.mxu0 0
    %441 = vmatprep.subr.bf16.mxu0 0
    %442 = vmatpush1.bf16.msra.mxu0 0
    %443 = vmatprep.subr.bf16.mxu0 0
    %444 = vmatpush1.bf16.msra.mxu0 0
    %445 = vmatprep.mubr.bf16.mxu0 0
    %446 = vmatmul.mubr.bf16.gmra.mrb[0].mxu0 %v370
    %v447 = vpop.f32.mrb[0].mxu0
    %v448 = vadd.f32 %v268, %v447
    %v449 = vpop.f32.mrb[0].mxu0
    %v450 = vpop.f32.mrb[0].mxu0
    %v451 = vpop.f32.mrb[0].mxu0
    %452 = vdwg.mxu0
    %v453 = vld [vmem:[%s6] sm:$0x1]
    %v454 = vld [vmem:[#allocation5] sm:$0x1]
    %456 = vrot.lane.b32.xlu0 %v407, 32
    %v457 = vpop.permute.xlu0 %456
    %vm458 = vcmask 195584
    %v459 = vsel %vm458, %v407, 0
    %v461 = vsel %vm458, %v457, 0
    %463 = vmatprep.subr.mxu0 0.0
    %464 = vmatpush1.xpose.msra.mxu0 %v461
    %465 = vmatprep.subr.mxu0 0.0
    %466 = vmatpush1.xpose.msra.mxu0 0.0
    %467 = vmatprep.subr.mxu0 0.0
    %468 = vmatpush1.xpose.msra.mxu0 0.0
    %469 = vmatprep.subr.mxu0 0.0
    %470 = vmatpush1.xpose.msra.mxu0 0.0
    %471 = vmatprep.subr.mxu0 0.0
    %472 = vmatpush1.xpose.msra.mxu0 0.0
    %473 = vmatprep.subr.mxu0 0.0
    %474 = vmatpush1.xpose.msra.mxu0 0.0
    %475 = vmatprep.subr.mxu0 0.0
    %476 = vmatpush1.xpose.msra.mxu0 0.0
    %477 = vmatprep.subr.mxu0 0.0
    %478 = vmatpush1.xpose.msra.mxu0 0.0
    %479 = vmatprep.subr.mxu0 0.0
    %480 = vmatpush1.xpose.msra.mxu0 0.0
    %481 = vmatprep.subr.mxu0 0.0
    %482 = vmatpush1.xpose.msra.mxu0 0.0
    %483 = vmatprep.subr.mxu0 0.0
    %484 = vmatpush1.xpose.msra.mxu0 0.0
    %485 = vmatprep.subr.mxu0 0.0
    %486 = vmatpush1.xpose.msra.mxu0 0.0
    %487 = vmatprep.subr.mxu0 0.0
    %488 = vmatpush1.xpose.msra.mxu0 0.0
    %489 = vmatprep.subr.mxu0 0.0
    %490 = vmatpush1.xpose.msra.mxu0 0.0
    %491 = vmatprep.subr.mxu0 0.0
    %492 = vmatpush1.xpose.msra.mxu0 0.0
    %493 = vmatprep.subr.mxu0 0.0
    %494 = vmatpush1.xpose.msra.mxu0 0.0
    %495 = vmatprep.subr.mxu0 0.0
    %496 = vmatpush1.xpose.msra.mxu0 0.0
    %497 = vmatprep.subr.mxu0 0.0
    %498 = vmatpush1.xpose.msra.mxu0 0.0
    %499 = vmatprep.subr.mxu0 0.0
    %500 = vmatpush1.xpose.msra.mxu0 0.0
    %501 = vmatprep.subr.mxu0 0.0
    %502 = vmatpush1.xpose.msra.mxu0 0.0
    %503 = vmatprep.subr.mxu0 0.0
    %504 = vmatpush1.xpose.msra.mxu0 0.0
    %505 = vmatprep.subr.mxu0 0.0
    %506 = vmatpush1.xpose.msra.mxu0 0.0
    %507 = vmatprep.subr.mxu0 0.0
    %508 = vmatpush1.xpose.msra.mxu0 0.0
    %509 = vmatprep.subr.mxu0 0.0
    %510 = vmatpush1.xpose.msra.mxu0 0.0
    %511 = vmatprep.subr.mxu0 0.0
    %512 = vmatpush1.xpose.msra.mxu0 0.0
    %513 = vmatprep.subr.mxu0 0.0
    %514 = vmatpush1.xpose.msra.mxu0 0.0
    %515 = vmatprep.subr.mxu0 0.0
    %516 = vmatpush1.xpose.msra.mxu0 0.0
    %517 = vmatprep.subr.mxu0 0.0
    %518 = vmatpush1.xpose.msra.mxu0 0.0
    %519 = vmatprep.subr.mxu0 0.0
    %520 = vmatpush1.xpose.msra.mxu0 0.0
    %521 = vmatprep.subr.mxu0 0.0
    %522 = vmatpush1.xpose.msra.mxu0 0.0
    %523 = vmatprep.subr.mxu0 0.0
    %524 = vmatpush1.xpose.msra.mxu0 0.0
    %525 = vmatprep.subr.mxu0 0.0
    %526 = vmatpush1.xpose.msra.mxu0 0.0
    %527 = vmatprep.mubr.f32.mxu0 0.0
    %528 = vmatmul.mubr.f32.gmra.mrb[0].mxu0 %v459
    %v529 = vpop.f32.mrb[0].mxu0
    %v530 = vadd.f32 0.0, %v529
    %v531 = vpop.f32.mrb[0].mxu0
    %532 = vdwg.mxu0
    %v533 = vmul.f32 %v530, 0.20412415
    %v535 = vlaneseq
    %v536 = vshrl.u32 %v535, 7
    %v537 = vsub.s32 0, %v536
    %v538 = vrot.slane %v453, %v537
    %v540 = vmul.f32 %v407, %v538
    %vm541 = vcmask 191488
    %v542 = vsel %vm541, %v540, 0.0
    %543 = vadd.xlane.f32.xlu0 %v542
    %v544 = vpop.xlane.xlu0 %543
    %v545 = vmul.f32 %v544, 0.20412415
    %vm546 = vcmask 27648
    %v547 = vsel %vm546, %v533, -inf
    %548 = vmax.xlane.f32.xlu0 %v547
    %v549 = vpop.xlane.xlu0 %548
    %v550 = vmax.f32 %v549, %v545
    %v551 = vsub.f32 %v533, %v550
    %v552 = vmul.f32 %v551, 1.442695
    %v553 = vpow.pop %v552
    %v554 = vsub.f32 %v545, %v550
    %v555 = vmul.f32 %v554, 1.442695
    %v556 = vpow.pop %v555
    %v557 = vsel %vm546, %v553, 0.0
    %558 = vadd.xlane.f32.xlu0 %v557
    %v559 = vpop.xlane.xlu0 %558
    %v560 = vadd.f32 %v559, %v556
    %v561 = vrcp.pop %v560
    %v563 = vlaneseq
    %v564 = vshrl.u32 %v563, 7
    %v565 = vsub.s32 0, %v564
    %v566 = vrot.slane %v454, %v565
    %v568 = vmul.f32 %v556, %v566
    %570 = vrot.lane.b32.xlu0 %v409, 64
    %v571 = vpop.permute.xlu0 %570
    %vm572 = vcmask 31744
    %v574 = vsel %vm572, %v553, 0
    %vm576 = vcmask 1043456
    %v577 = vsel %vm576, %v571, 0
    %579 = vmatprep.subr.mxu0 0.0
    %580 = vmatpush1.msra.mxu0 %v577
    %581 = vmatprep.subr.mxu0 0.0
    %582 = vmatpush1.msra.mxu0 0.0
    %583 = vmatprep.subr.mxu0 0.0
    %584 = vmatpush1.msra.mxu0 0.0
    %585 = vmatprep.subr.mxu0 0.0
    %586 = vmatpush1.msra.mxu0 0.0
    %587 = vmatprep.subr.mxu0 0.0
    %588 = vmatpush1.msra.mxu0 0.0
    %589 = vmatprep.subr.mxu0 0.0
    %590 = vmatpush1.msra.mxu0 0.0
    %591 = vmatprep.subr.mxu0 0.0
    %592 = vmatpush1.msra.mxu0 0.0
    %593 = vmatprep.subr.mxu0 0.0
    %594 = vmatpush1.msra.mxu0 0.0
    %595 = vmatprep.subr.mxu0 0.0
    %596 = vmatpush1.msra.mxu0 0.0
    %597 = vmatprep.subr.mxu0 0.0
    %598 = vmatpush1.msra.mxu0 0.0
    %599 = vmatprep.subr.mxu0 0.0
    %600 = vmatpush1.msra.mxu0 0.0
    %601 = vmatprep.subr.mxu0 0.0
    %602 = vmatpush1.msra.mxu0 0.0
    %603 = vmatprep.subr.mxu0 0.0
    %604 = vmatpush1.msra.mxu0 0.0
    %605 = vmatprep.subr.mxu0 0.0
    %606 = vmatpush1.msra.mxu0 0.0
    %607 = vmatprep.subr.mxu0 0.0
    %608 = vmatpush1.msra.mxu0 0.0
    %609 = vmatprep.subr.mxu0 0.0
    %610 = vmatpush1.msra.mxu0 0.0
    %611 = vmatprep.subr.mxu0 0.0
    %612 = vmatpush1.msra.mxu0 0.0
    %613 = vmatprep.subr.mxu0 0.0
    %614 = vmatpush1.msra.mxu0 0.0
    %615 = vmatprep.subr.mxu0 0.0
    %616 = vmatpush1.msra.mxu0 0.0
    %617 = vmatprep.subr.mxu0 0.0
    %618 = vmatpush1.msra.mxu0 0.0
    %619 = vmatprep.subr.mxu0 0.0
    %620 = vmatpush1.msra.mxu0 0.0
    %621 = vmatprep.subr.mxu0 0.0
    %622 = vmatpush1.msra.mxu0 0.0
    %623 = vmatprep.subr.mxu0 0.0
    %624 = vmatpush1.msra.mxu0 0.0
    %625 = vmatprep.subr.mxu0 0.0
    %626 = vmatpush1.msra.mxu0 0.0
    %627 = vmatprep.subr.mxu0 0.0
    %628 = vmatpush1.msra.mxu0 0.0
    %629 = vmatprep.subr.mxu0 0.0
    %630 = vmatpush1.msra.mxu0 0.0
    %631 = vmatprep.subr.mxu0 0.0
    %632 = vmatpush1.msra.mxu0 0.0
    %633 = vmatprep.subr.mxu0 0.0
    %634 = vmatpush1.msra.mxu0 0.0
    %635 = vmatprep.subr.mxu0 0.0
    %636 = vmatpush1.msra.mxu0 0.0
    %637 = vmatprep.subr.mxu0 0.0
    %638 = vmatpush1.msra.mxu0 0.0
    %639 = vmatprep.subr.mxu0 0.0
    %640 = vmatpush1.msra.mxu0 0.0
    %641 = vmatprep.subr.mxu0 0.0
    %642 = vmatpush1.msra.mxu0 0.0
    %643 = vmatprep.mubr.f32.mxu0 0.0
    %644 = vmatmul.mubr.f32.gmra.mrb[0].mxu0 %v574
    %v645 = vpop.f32.mrb[0].mxu0
    %v646 = vadd.f32 %v568, %v645
    %v647 = vpop.f32.mrb[0].mxu0
    %648 = vdwg.mxu0
    %v649 = vmul.f32 %v646, %v561
    %650 = vrot.lane.b32.xlu0 %v407, 104
    %v651 = vpop.permute.xlu0 %650
    %652 = vrot.lane.b32.xlu0 %v407, 8
    %v653 = vpop.permute.xlu0 %652
    %654 = vrot.lane.b32.xlu0 %v409, 8
    %v655 = vpop.permute.xlu0 %654
    %vm656 = vcmask 64512
    %v657 = vsel %vm656, %v653, %v655
    %v658 = vsel %vm458, %v651, 0
    %v660 = vsel %vm458, %v657, 0
    %662 = vmatprep.subr.mxu0 0.0
    %663 = vmatpush1.xpose.msra.mxu0 %v660
    %664 = vmatprep.subr.mxu0 0.0
    %665 = vmatpush1.xpose.msra.mxu0 0.0
    %666 = vmatprep.subr.mxu0 0.0
    %667 = vmatpush1.xpose.msra.mxu0 0.0
    %668 = vmatprep.subr.mxu0 0.0
    %669 = vmatpush1.xpose.msra.mxu0 0.0
    %670 = vmatprep.subr.mxu0 0.0
    %671 = vmatpush1.xpose.msra.mxu0 0.0
    %672 = vmatprep.subr.mxu0 0.0
    %673 = vmatpush1.xpose.msra.mxu0 0.0
    %674 = vmatprep.subr.mxu0 0.0
    %675 = vmatpush1.xpose.msra.mxu0 0.0
    %676 = vmatprep.subr.mxu0 0.0
    %677 = vmatpush1.xpose.msra.mxu0 0.0
    %678 = vmatprep.subr.mxu0 0.0
    %679 = vmatpush1.xpose.msra.mxu0 0.0
    %680 = vmatprep.subr.mxu0 0.0
    %681 = vmatpush1.xpose.msra.mxu0 0.0
    %682 = vmatprep.subr.mxu0 0.0
    %683 = vmatpush1.xpose.msra.mxu0 0.0
    %684 = vmatprep.subr.mxu0 0.0
    %685 = vmatpush1.xpose.msra.mxu0 0.0
    %686 = vmatprep.subr.mxu0 0.0
    %687 = vmatpush1.xpose.msra.mxu0 0.0
    %688 = vmatprep.subr.mxu0 0.0
    %689 = vmatpush1.xpose.msra.mxu0 0.0
    %690 = vmatprep.subr.mxu0 0.0
    %691 = vmatpush1.xpose.msra.mxu0 0.0
    %692 = vmatprep.subr.mxu0 0.0
    %693 = vmatpush1.xpose.msra.mxu0 0.0
    %694 = vmatprep.subr.mxu0 0.0
    %695 = vmatpush1.xpose.msra.mxu0 0.0
    %696 = vmatprep.subr.mxu0 0.0
    %697 = vmatpush1.xpose.msra.mxu0 0.0
    %698 = vmatprep.subr.mxu0 0.0
    %699 = vmatpush1.xpose.msra.mxu0 0.0
    %700 = vmatprep.subr.mxu0 0.0
    %701 = vmatpush1.xpose.msra.mxu0 0.0
    %702 = vmatprep.subr.mxu0 0.0
    %703 = vmatpush1.xpose.msra.mxu0 0.0
    %704 = vmatprep.subr.mxu0 0.0
    %705 = vmatpush1.xpose.msra.mxu0 0.0
    %706 = vmatprep.subr.mxu0 0.0
    %707 = vmatpush1.xpose.msra.mxu0 0.0
    %708 = vmatprep.subr.mxu0 0.0
    %709 = vmatpush1.xpose.msra.mxu0 0.0
    %710 = vmatprep.subr.mxu0 0.0
    %711 = vmatpush1.xpose.msra.mxu0 0.0
    %712 = vmatprep.subr.mxu0 0.0
    %713 = vmatpush1.xpose.msra.mxu0 0.0
    %714 = vmatprep.subr.mxu0 0.0
    %715 = vmatpush1.xpose.msra.mxu0 0.0
    %716 = vmatprep.subr.mxu0 0.0
    %717 = vmatpush1.xpose.msra.mxu0 0.0
    %718 = vmatprep.subr.mxu0 0.0
    %719 = vmatpush1.xpose.msra.mxu0 0.0
    %720 = vmatprep.subr.mxu0 0.0
    %721 = vmatpush1.xpose.msra.mxu0 0.0
    %722 = vmatprep.subr.mxu0 0.0
    %723 = vmatpush1.xpose.msra.mxu0 0.0
    %724 = vmatprep.subr.mxu0 0.0
    %725 = vmatpush1.xpose.msra.mxu0 0.0
    %726 = vmatprep.mubr.f32.mxu0 0.0
    %727 = vmatmul.mubr.f32.gmra.mrb[0].mxu0 %v658
    %v728 = vpop.f32.mrb[0].mxu0
    %v729 = vadd.f32 0.0, %v728
    %v730 = vpop.f32.mrb[0].mxu0
    %731 = vdwg.mxu0
    %v732 = vmul.f32 %v729, 0.20412415
    %734 = vrot.lane.b32.xlu0 %v540, 104
    %v735 = vpop.permute.xlu0 %734
    %v737 = vsel %vm541, %v735, 0.0
    %738 = vadd.xlane.f32.xlu0 %v737
    %v739 = vpop.xlane.xlu0 %738
    %v740 = vmul.f32 %v739, 0.20412415
    %v741 = vsel %vm546, %v732, -inf
    %742 = vmax.xlane.f32.xlu0 %v741
    %v743 = vpop.xlane.xlu0 %742
    %v744 = vmax.f32 %v743, %v740
    %v745 = vsub.f32 %v732, %v744
    %v746 = vmul.f32 %v745, 1.442695
    %v747 = vpow.pop %v746
    %v748 = vsub.f32 %v740, %v744
    %v749 = vmul.f32 %v748, 1.442695
    %v750 = vpow.pop %v749
    %v751 = vsel %vm546, %v747, 0.0
    %752 = vadd.xlane.f32.xlu0 %v751
    %v753 = vpop.xlane.xlu0 %752
    %v754 = vadd.f32 %v753, %v750
    %v755 = vrcp.pop %v754
    %v756 = vmul.f32 %v750, %v566
    %757 = vrot.lane.b32.xlu0 %v409, 40
    %v758 = vpop.permute.xlu0 %757
    %760 = vrot.lane.b32.xlu0 %v756, 104
    %v761 = vpop.permute.xlu0 %760
    %v764 = vsel %vm572, %v747, 0
    %v766 = vsel %vm576, %v758, 0
    %768 = vmatprep.subr.mxu0 0.0
    %769 = vmatpush1.msra.mxu0 %v766
    %770 = vmatprep.subr.mxu0 0.0
    %771 = vmatpush1.msra.mxu0 0.0
    %772 = vmatprep.subr.mxu0 0.0
    %773 = vmatpush1.msra.mxu0 0.0
    %774 = vmatprep.subr.mxu0 0.0
    %775 = vmatpush1.msra.mxu0 0.0
    %776 = vmatprep.subr.mxu0 0.0
    %777 = vmatpush1.msra.mxu0 0.0
    %778 = vmatprep.subr.mxu0 0.0
    %779 = vmatpush1.msra.mxu0 0.0
    %780 = vmatprep.subr.mxu0 0.0
    %781 = vmatpush1.msra.mxu0 0.0
    %782 = vmatprep.subr.mxu0 0.0
    %783 = vmatpush1.msra.mxu0 0.0
    %784 = vmatprep.subr.mxu0 0.0
    %785 = vmatpush1.msra.mxu0 0.0
    %786 = vmatprep.subr.mxu0 0.0
    %787 = vmatpush1.msra.mxu0 0.0
    %788 = vmatprep.subr.mxu0 0.0
    %789 = vmatpush1.msra.mxu0 0.0
    %790 = vmatprep.subr.mxu0 0.0
    %791 = vmatpush1.msra.mxu0 0.0
    %792 = vmatprep.subr.mxu0 0.0
    %793 = vmatpush1.msra.mxu0 0.0
    %794 = vmatprep.subr.mxu0 0.0
    %795 = vmatpush1.msra.mxu0 0.0
    %796 = vmatprep.subr.mxu0 0.0
    %797 = vmatpush1.msra.mxu0 0.0
    %798 = vmatprep.subr.mxu0 0.0
    %799 = vmatpush1.msra.mxu0 0.0
    %800 = vmatprep.subr.mxu0 0.0
    %801 = vmatpush1.msra.mxu0 0.0
    %802 = vmatprep.subr.mxu0 0.0
    %803 = vmatpush1.msra.mxu0 0.0
    %804 = vmatprep.subr.mxu0 0.0
    %805 = vmatpush1.msra.mxu0 0.0
    %806 = vmatprep.subr.mxu0 0.0
    %807 = vmatpush1.msra.mxu0 0.0
    %808 = vmatprep.subr.mxu0 0.0
    %809 = vmatpush1.msra.mxu0 0.0
    %810 = vmatprep.subr.mxu0 0.0
    %811 = vmatpush1.msra.mxu0 0.0
    %812 = vmatprep.subr.mxu0 0.0
    %813 = vmatpush1.msra.mxu0 0.0
    %814 = vmatprep.subr.mxu0 0.0
    %815 = vmatpush1.msra.mxu0 0.0
    %816 = vmatprep.subr.mxu0 0.0
    %817 = vmatpush1.msra.mxu0 0.0
    %818 = vmatprep.subr.mxu0 0.0
    %819 = vmatpush1.msra.mxu0 0.0
    %820 = vmatprep.subr.mxu0 0.0
    %821 = vmatpush1.msra.mxu0 0.0
    %822 = vmatprep.subr.mxu0 0.0
    %823 = vmatpush1.msra.mxu0 0.0
    %824 = vmatprep.subr.mxu0 0.0
    %825 = vmatpush1.msra.mxu0 0.0
    %826 = vmatprep.subr.mxu0 0.0
    %827 = vmatpush1.msra.mxu0 0.0
    %828 = vmatprep.subr.mxu0 0.0
    %829 = vmatpush1.msra.mxu0 0.0
    %830 = vmatprep.subr.mxu0 0.0
    %831 = vmatpush1.msra.mxu0 0.0
    %832 = vmatprep.mubr.f32.mxu0 0.0
    %833 = vmatmul.mubr.f32.gmra.mrb[0].mxu0 %v764
    %v834 = vpop.f32.mrb[0].mxu0
    %v835 = vadd.f32 %v761, %v834
    %v836 = vpop.f32.mrb[0].mxu0
    %837 = vdwg.mxu0
    %v838 = vmul.f32 %v835, %v755
    %839 = vrot.lane.b32.xlu0 %v407, 80
    %v840 = vpop.permute.xlu0 %839
    %841 = vrot.lane.b32.xlu0 %v409, 112
    %v842 = vpop.permute.xlu0 %841
    %v843 = vsel %vm458, %v840, 0
    %v845 = vsel %vm458, %v842, 0
    %847 = vmatprep.subr.mxu0 0.0
    %848 = vmatpush1.xpose.msra.mxu0 %v845
    %849 = vmatprep.subr.mxu0 0.0
    %850 = vmatpush1.xpose.msra.mxu0 0.0
    %851 = vmatprep.subr.mxu0 0.0
    %852 = vmatpush1.xpose.msra.mxu0 0.0
    %853 = vmatprep.subr.mxu0 0.0
    %854 = vmatpush1.xpose.msra.mxu0 0.0
    %855 = vmatprep.subr.mxu0 0.0
    %856 = vmatpush1.xpose.msra.mxu0 0.0
    %857 = vmatprep.subr.mxu0 0.0
    %858 = vmatpush1.xpose.msra.mxu0 0.0
    %859 = vmatprep.subr.mxu0 0.0
    %860 = vmatpush1.xpose.msra.mxu0 0.0
    %861 = vmatprep.subr.mxu0 0.0
    %862 = vmatpush1.xpose.msra.mxu0 0.0
    %863 = vmatprep.subr.mxu0 0.0
    %864 = vmatpush1.xpose.msra.mxu0 0.0
    %865 = vmatprep.subr.mxu0 0.0
    %866 = vmatpush1.xpose.msra.mxu0 0.0
    %867 = vmatprep.subr.mxu0 0.0
    %868 = vmatpush1.xpose.msra.mxu0 0.0
    %869 = vmatprep.subr.mxu0 0.0
    %870 = vmatpush1.xpose.msra.mxu0 0.0
    %871 = vmatprep.subr.mxu0 0.0
    %872 = vmatpush1.xpose.msra.mxu0 0.0
    %873 = vmatprep.subr.mxu0 0.0
    %874 = vmatpush1.xpose.msra.mxu0 0.0
    %875 = vmatprep.subr.mxu0 0.0
    %876 = vmatpush1.xpose.msra.mxu0 0.0
    %877 = vmatprep.subr.mxu0 0.0
    %878 = vmatpush1.xpose.msra.mxu0 0.0
    %879 = vmatprep.subr.mxu0 0.0
    %880 = vmatpush1.xpose.msra.mxu0 0.0
    %881 = vmatprep.subr.mxu0 0.0
    %882 = vmatpush1.xpose.msra.mxu0 0.0
    %883 = vmatprep.subr.mxu0 0.0
    %884 = vmatpush1.xpose.msra.mxu0 0.0
    %885 = vmatprep.subr.mxu0 0.0
    %886 = vmatpush1.xpose.msra.mxu0 0.0
    %887 = vmatprep.subr.mxu0 0.0
    %888 = vmatpush1.xpose.msra.mxu0 0.0
    %889 = vmatprep.subr.mxu0 0.0
    %890 = vmatpush1.xpose.msra.mxu0 0.0
    %891 = vmatprep.subr.mxu0 0.0
    %892 = vmatpush1.xpose.msra.mxu0 0.0
    %893 = vmatprep.subr.mxu0 0.0
    %894 = vmatpush1.xpose.msra.mxu0 0.0
    %895 = vmatprep.subr.mxu0 0.0
    %896 = vmatpush1.xpose.msra.mxu0 0.0
    %897 = vmatprep.subr.mxu0 0.0
    %898 = vmatpush1.xpose.msra.mxu0 0.0
    %899 = vmatprep.subr.mxu0 0.0
    %900 = vmatpush1.xpose.msra.mxu0 0.0
    %901 = vmatprep.subr.mxu0 0.0
    %902 = vmatpush1.xpose.msra.mxu0 0.0
    %903 = vmatprep.subr.mxu0 0.0
    %904 = vmatpush1.xpose.msra.mxu0 0.0
    %905 = vmatprep.subr.mxu0 0.0
    %906 = vmatpush1.xpose.msra.mxu0 0.0
    %907 = vmatprep.subr.mxu0 0.0
    %908 = vmatpush1.xpose.msra.mxu0 0.0
    %909 = vmatprep.subr.mxu0 0.0
    %910 = vmatpush1.xpose.msra.mxu0 0.0
    %911 = vmatprep.mubr.f32.mxu0 0.0
    %912 = vmatmul.mubr.f32.gmra.mrb[0].mxu0 %v843
    %v913 = vpop.f32.mrb[0].mxu0
    %v914 = vadd.f32 0.0, %v913
    %v915 = vpop.f32.mrb[0].mxu0
    %916 = vdwg.mxu0
    %v917 = vmul.f32 %v914, 0.20412415
    %918 = vrot.lane.b32.xlu0 %v540, 80
    %v919 = vpop.permute.xlu0 %918
    %v921 = vsel %vm541, %v919, 0.0
    %922 = vadd.xlane.f32.xlu0 %v921
    %v923 = vpop.xlane.xlu0 %922
    %v924 = vmul.f32 %v923, 0.20412415
    %v925 = vsel %vm546, %v917, -inf
    %926 = vmax.xlane.f32.xlu0 %v925
    %v927 = vpop.xlane.xlu0 %926
    %v928 = vmax.f32 %v927, %v924
    %v929 = vsub.f32 %v917, %v928
    %v930 = vmul.f32 %v929, 1.442695
    %v931 = vpow.pop %v930
    %v932 = vsub.f32 %v924, %v928
    %v933 = vmul.f32 %v932, 1.442695
    %v934 = vpow.pop %v933
    %v935 = vsel %vm546, %v931, 0.0
    %936 = vadd.xlane.f32.xlu0 %v935
    %v937 = vpop.xlane.xlu0 %936
    %v938 = vadd.f32 %v937, %v934
    %v939 = vrcp.pop %v938
    %v940 = vmul.f32 %v934, %v566
    %942 = vrot.lane.b32.xlu0 %v409, 16
    %v943 = vpop.permute.xlu0 %942
    %944 = vrot.lane.b32.xlu0 %v448, 16
    %v945 = vpop.permute.xlu0 %944
    %vm946 = vcmask 130048
    %v947 = vsel %vm946, %v943, %v945
    %949 = vrot.lane.b32.xlu0 %v940, 80
    %v950 = vpop.permute.xlu0 %949
    %v953 = vsel %vm572, %v931, 0
    %v955 = vsel %vm576, %v947, 0
    %957 = vmatprep.subr.mxu0 0.0
    %958 = vmatpush1.msra.mxu0 %v955
    %959 = vmatprep.subr.mxu0 0.0
    %960 = vmatpush1.msra.mxu0 0.0
    %961 = vmatprep.subr.mxu0 0.0
    %962 = vmatpush1.msra.mxu0 0.0
    %963 = vmatprep.subr.mxu0 0.0
    %964 = vmatpush1.msra.mxu0 0.0
    %965 = vmatprep.subr.mxu0 0.0
    %966 = vmatpush1.msra.mxu0 0.0
    %967 = vmatprep.subr.mxu0 0.0
    %968 = vmatpush1.msra.mxu0 0.0
    %969 = vmatprep.subr.mxu0 0.0
    %970 = vmatpush1.msra.mxu0 0.0
    %971 = vmatprep.subr.mxu0 0.0
    %972 = vmatpush1.msra.mxu0 0.0
    %973 = vmatprep.subr.mxu0 0.0
    %974 = vmatpush1.msra.mxu0 0.0
    %975 = vmatprep.subr.mxu0 0.0
    %976 = vmatpush1.msra.mxu0 0.0
    %977 = vmatprep.subr.mxu0 0.0
    %978 = vmatpush1.msra.mxu0 0.0
    %979 = vmatprep.subr.mxu0 0.0
    %980 = vmatpush1.msra.mxu0 0.0
    %981 = vmatprep.subr.mxu0 0.0
    %982 = vmatpush1.msra.mxu0 0.0
    %983 = vmatprep.subr.mxu0 0.0
    %984 = vmatpush1.msra.mxu0 0.0
    %985 = vmatprep.subr.mxu0 0.0
    %986 = vmatpush1.msra.mxu0 0.0
    %987 = vmatprep.subr.mxu0 0.0
    %988 = vmatpush1.msra.mxu0 0.0
    %989 = vmatprep.subr.mxu0 0.0
    %990 = vmatpush1.msra.mxu0 0.0
    %991 = vmatprep.subr.mxu0 0.0
    %992 = vmatpush1.msra.mxu0 0.0
    %993 = vmatprep.subr.mxu0 0.0
    %994 = vmatpush1.msra.mxu0 0.0
    %995 = vmatprep.subr.mxu0 0.0
    %996 = vmatpush1.msra.mxu0 0.0
    %997 = vmatprep.subr.mxu0 0.0
    %998 = vmatpush1.msra.mxu0 0.0
    %999 = vmatprep.subr.mxu0 0.0
    %1000 = vmatpush1.msra.mxu0 0.0
    %1001 = vmatprep.subr.mxu0 0.0
    %1002 = vmatpush1.msra.mxu0 0.0
    %1003 = vmatprep.subr.mxu0 0.0
    %1004 = vmatpush1.msra.mxu0 0.0
    %1005 = vmatprep.subr.mxu0 0.0
    %1006 = vmatpush1.msra.mxu0 0.0
    %1007 = vmatprep.subr.mxu0 0.0
    %1008 = vmatpush1.msra.mxu0 0.0
    %1009 = vmatprep.subr.mxu0 0.0
    %1010 = vmatpush1.msra.mxu0 0.0
    %1011 = vmatprep.subr.mxu0 0.0
    %1012 = vmatpush1.msra.mxu0 0.0
    %1013 = vmatprep.subr.mxu0 0.0
    %1014 = vmatpush1.msra.mxu0 0.0
    %1015 = vmatprep.subr.mxu0 0.0
    %1016 = vmatpush1.msra.mxu0 0.0
    %1017 = vmatprep.subr.mxu0 0.0
    %1018 = vmatpush1.msra.mxu0 0.0
    %1019 = vmatprep.subr.mxu0 0.0
    %1020 = vmatpush1.msra.mxu0 0.0
    %1021 = vmatprep.mubr.f32.mxu0 0.0
    %1022 = vmatmul.mubr.f32.gmra.mrb[0].mxu0 %v953
    %v1023 = vpop.f32.mrb[0].mxu0
    %v1024 = vadd.f32 %v950, %v1023
    %v1025 = vpop.f32.mrb[0].mxu0
    %1026 = vdwg.mxu0
    %v1027 = vmul.f32 %v1024, %v939
    %1028 = vrot.lane.b32.xlu0 %v407, 56
    %v1029 = vpop.permute.xlu0 %1028
    %1030 = vrot.lane.b32.xlu0 %v409, 88
    %v1031 = vpop.permute.xlu0 %1030
    %v1032 = vsel %vm458, %v1029, 0
    %v1034 = vsel %vm458, %v1031, 0
    %1036 = vmatprep.subr.mxu0 0.0
    %1037 = vmatpush1.xpose.msra.mxu0 %v1034
    %1038 = vmatprep.subr.mxu0 0.0
    %1039 = vmatpush1.xpose.msra.mxu0 0.0
    %1040 = vmatprep.subr.mxu0 0.0
    %1041 = vmatpush1.xpose.msra.mxu0 0.0
    %1042 = vmatprep.subr.mxu0 0.0
    %1043 = vmatpush1.xpose.msra.mxu0 0.0
    %1044 = vmatprep.subr.mxu0 0.0
    %1045 = vmatpush1.xpose.msra.mxu0 0.0
    %1046 = vmatprep.subr.mxu0 0.0
    %1047 = vmatpush1.xpose.msra.mxu0 0.0
    %1048 = vmatprep.subr.mxu0 0.0
    %1049 = vmatpush1.xpose.msra.mxu0 0.0
    %1050 = vmatprep.subr.mxu0 0.0
    %1051 = vmatpush1.xpose.msra.mxu0 0.0
    %1052 = vmatprep.subr.mxu0 0.0
    %1053 = vmatpush1.xpose.msra.mxu0 0.0
    %1054 = vmatprep.subr.mxu0 0.0
    %1055 = vmatpush1.xpose.msra.mxu0 0.0
    %1056 = vmatprep.subr.mxu0 0.0
    %1057 = vmatpush1.xpose.msra.mxu0 0.0
    %1058 = vmatprep.subr.mxu0 0.0
    %1059 = vmatpush1.xpose.msra.mxu0 0.0
    %1060 = vmatprep.subr.mxu0 0.0
    %1061 = vmatpush1.xpose.msra.mxu0 0.0
    %1062 = vmatprep.subr.mxu0 0.0
    %1063 = vmatpush1.xpose.msra.mxu0 0.0
    %1064 = vmatprep.subr.mxu0 0.0
    %1065 = vmatpush1.xpose.msra.mxu0 0.0
    %1066 = vmatprep.subr.mxu0 0.0
    %1067 = vmatpush1.xpose.msra.mxu0 0.0
    %1068 = vmatprep.subr.mxu0 0.0
    %1069 = vmatpush1.xpose.msra.mxu0 0.0
    %1070 = vmatprep.subr.mxu0 0.0
    %1071 = vmatpush1.xpose.msra.mxu0 0.0
    %1072 = vmatprep.subr.mxu0 0.0
    %1073 = vmatpush1.xpose.msra.mxu0 0.0
    %1074 = vmatprep.subr.mxu0 0.0
    %1075 = vmatpush1.xpose.msra.mxu0 0.0
    %1076 = vmatprep.subr.mxu0 0.0
    %1077 = vmatpush1.xpose.msra.mxu0 0.0
    %1078 = vmatprep.subr.mxu0 0.0
    %1079 = vmatpush1.xpose.msra.mxu0 0.0
    %1080 = vmatprep.subr.mxu0 0.0
    %1081 = vmatpush1.xpose.msra.mxu0 0.0
    %1082 = vmatprep.subr.mxu0 0.0
    %1083 = vmatpush1.xpose.msra.mxu0 0.0
    %1084 = vmatprep.subr.mxu0 0.0
    %1085 = vmatpush1.xpose.msra.mxu0 0.0
    %1086 = vmatprep.subr.mxu0 0.0
    %1087 = vmatpush1.xpose.msra.mxu0 0.0
    %1088 = vmatprep.subr.mxu0 0.0
    %1089 = vmatpush1.xpose.msra.mxu0 0.0
    %1090 = vmatprep.subr.mxu0 0.0
    %1091 = vmatpush1.xpose.msra.mxu0 0.0
    %1092 = vmatprep.subr.mxu0 0.0
    %1093 = vmatpush1.xpose.msra.mxu0 0.0
    %1094 = vmatprep.subr.mxu0 0.0
    %1095 = vmatpush1.xpose.msra.mxu0 0.0
    %1096 = vmatprep.subr.mxu0 0.0
    %1097 = vmatpush1.xpose.msra.mxu0 0.0
    %1098 = vmatprep.subr.mxu0 0.0
    %1099 = vmatpush1.xpose.msra.mxu0 0.0
    %1100 = vmatprep.mubr.f32.mxu0 0.0
    %1101 = vmatmul.mubr.f32.gmra.mrb[0].mxu0 %v1032
    %v1102 = vpop.f32.mrb[0].mxu0
    %v1103 = vadd.f32 0.0, %v1102
    %v1104 = vpop.f32.mrb[0].mxu0
    %1105 = vdwg.mxu0
    %v1106 = vmul.f32 %v1103, 0.20412415
    %1107 = vrot.lane.b32.xlu0 %v540, 56
    %v1108 = vpop.permute.xlu0 %1107
    %v1110 = vsel %vm541, %v1108, 0.0
    %1111 = vadd.xlane.f32.xlu0 %v1110
    %v1112 = vpop.xlane.xlu0 %1111
    %v1113 = vmul.f32 %v1112, 0.20412415
    %v1114 = vsel %vm546, %v1106, -inf
    %1115 = vmax.xlane.f32.xlu0 %v1114
    %v1116 = vpop.xlane.xlu0 %1115
    %v1117 = vmax.f32 %v1116, %v1113
    %v1118 = vsub.f32 %v1106, %v1117
    %v1119 = vmul.f32 %v1118, 1.442695
    %v1120 = vpow.pop %v1119
    %v1121 = vsub.f32 %v1113, %v1117
    %v1122 = vmul.f32 %v1121, 1.442695
    %v1123 = vpow.pop %v1122
    %v1124 = vsel %vm546, %v1120, 0.0
    %1125 = vadd.xlane.f32.xlu0 %v1124
    %v1126 = vpop.xlane.xlu0 %1125
    %v1127 = vadd.f32 %v1126, %v1123
    %v1128 = vrcp.pop %v1127
    %v1129 = vmul.f32 %v1123, %v566
    %1130 = vrot.lane.b32.xlu0 %v448, 120
    %v1131 = vpop.permute.xlu0 %1130
    %1133 = vrot.lane.b32.xlu0 %v1129, 56
    %v1134 = vpop.permute.xlu0 %1133
    %v1137 = vsel %vm572, %v1120, 0
    %v1139 = vsel %vm576, %v1131, 0
    %1141 = vmatprep.subr.mxu0 0.0
    %1142 = vmatpush1.msra.mxu0 %v1139
    %1143 = vmatprep.subr.mxu0 0.0
    %1144 = vmatpush1.msra.mxu0 0.0
    %1145 = vmatprep.subr.mxu0 0.0
    %1146 = vmatpush1.msra.mxu0 0.0
    %1147 = vmatprep.subr.mxu0 0.0
    %1148 = vmatpush1.msra.mxu0 0.0
    %1149 = vmatprep.subr.mxu0 0.0
    %1150 = vmatpush1.msra.mxu0 0.0
    %1151 = vmatprep.subr.mxu0 0.0
    %1152 = vmatpush1.msra.mxu0 0.0
    %1153 = vmatprep.subr.mxu0 0.0
    %1154 = vmatpush1.msra.mxu0 0.0
    %1155 = vmatprep.subr.mxu0 0.0
    %1156 = vmatpush1.msra.mxu0 0.0
    %1157 = vmatprep.subr.mxu0 0.0
    %1158 = vmatpush1.msra.mxu0 0.0
    %1159 = vmatprep.subr.mxu0 0.0
    %1160 = vmatpush1.msra.mxu0 0.0
    %1161 = vmatprep.subr.mxu0 0.0
    %1162 = vmatpush1.msra.mxu0 0.0
    %1163 = vmatprep.subr.mxu0 0.0
    %1164 = vmatpush1.msra.mxu0 0.0
    %1165 = vmatprep.subr.mxu0 0.0
    %1166 = vmatpush1.msra.mxu0 0.0
    %1167 = vmatprep.subr.mxu0 0.0
    %1168 = vmatpush1.msra.mxu0 0.0
    %1169 = vmatprep.subr.mxu0 0.0
    %1170 = vmatpush1.msra.mxu0 0.0
    %1171 = vmatprep.subr.mxu0 0.0
    %1172 = vmatpush1.msra.mxu0 0.0
    %1173 = vmatprep.subr.mxu0 0.0
    %1174 = vmatpush1.msra.mxu0 0.0
    %1175 = vmatprep.subr.mxu0 0.0
    %1176 = vmatpush1.msra.mxu0 0.0
    %1177 = vmatprep.subr.mxu0 0.0
    %1178 = vmatpush1.msra.mxu0 0.0
    %1179 = vmatprep.subr.mxu0 0.0
    %1180 = vmatpush1.msra.mxu0 0.0
    %1181 = vmatprep.subr.mxu0 0.0
    %1182 = vmatpush1.msra.mxu0 0.0
    %1183 = vmatprep.subr.mxu0 0.0
    %1184 = vmatpush1.msra.mxu0 0.0
    %1185 = vmatprep.subr.mxu0 0.0
    %1186 = vmatpush1.msra.mxu0 0.0
    %1187 = vmatprep.subr.mxu0 0.0
    %1188 = vmatpush1.msra.mxu0 0.0
    %1189 = vmatprep.subr.mxu0 0.0
    %1190 = vmatpush1.msra.mxu0 0.0
    %1191 = vmatprep.subr.mxu0 0.0
    %1192 = vmatpush1.msra.mxu0 0.0
    %1193 = vmatprep.subr.mxu0 0.0
    %1194 = vmatpush1.msra.mxu0 0.0
    %1195 = vmatprep.subr.mxu0 0.0
    %1196 = vmatpush1.msra.mxu0 0.0
    %1197 = vmatprep.subr.mxu0 0.0
    %1198 = vmatpush1.msra.mxu0 0.0
    %1199 = vmatprep.subr.mxu0 0.0
    %1200 = vmatpush1.msra.mxu0 0.0
    %1201 = vmatprep.subr.mxu0 0.0
    %1202 = vmatpush1.msra.mxu0 0.0
    %1203 = vmatprep.subr.mxu0 0.0
    %1204 = vmatpush1.msra.mxu0 0.0
    %1205 = vmatprep.mubr.f32.mxu0 0.0
    %1206 = vmatmul.mubr.f32.gmra.mrb[0].mxu0 %v1137
    %v1207 = vpop.f32.mrb[0].mxu0
    %v1208 = vadd.f32 %v1134, %v1207
    %v1209 = vpop.f32.mrb[0].mxu0
    %1210 = vdwg.mxu0
    %v1211 = vmul.f32 %v1208, %v1128
    %1213 = vrot.lane.b32.xlu0 %v838, 24
    %v1214 = vpop.permute.xlu0 %1213
    %1217 = vrot.lane.b32.xlu0 %v1027, 48
    %v1218 = vpop.permute.xlu0 %1217
    %1221 = vrot.lane.b32.xlu0 %v1211, 72
    %v1222 = vpop.permute.xlu0 %1221
    %v1224 = vsel %vm458, %v649, %v1214
    %vm1225 = vcmask 392192
    %v1226 = vsel %vm1225, %v1224, %v1218
    %vm1227 = vcmask 588800
    %v1228 = vsel %vm1227, %v1226, %v1222
    %v1229 = vpack.c.bf16 %v1228, %v1228
    %v1230 = vld [vmem:[#allocation7] sm:$0xf]
    %v1231 = vld [vmem:[#allocation7 + $0x4] sm:$0xf]
    %v1232 = vld [vmem:[#allocation7 + $0x8] sm:$0xf]
    %v1233 = vld [vmem:[#allocation7 + $0xc] sm:$0xf]
    %v1234 = vld [vmem:[#allocation7 + $0x10] sm:$0xf]
    %v1235 = vld [vmem:[#allocation7 + $0x14] sm:$0xf]
    %v1236 = vld [vmem:[#allocation7 + $0x18] sm:$0xf]
    %v1237 = vld [vmem:[#allocation7 + $0x1c] sm:$0xf]
    %v1238 = vld [vmem:[#allocation7 + $0x20] sm:$0xf]
    %v1239 = vld [vmem:[#allocation7 + $0x24] sm:$0xf]
    %v1240 = vld [vmem:[#allocation7 + $0x28] sm:$0xf]
    %v1241 = vld [vmem:[#allocation7 + $0x2c] sm:$0xf]
    %v1242 = vld [vmem:[#allocation8] sm:$0x1]
    %v1244 = vlaneseq
    %v1245 = vshrl.u32 %v1244, 7
    %v1246 = vsub.s32 0, %v1245
    %v1247 = vrot.slane %v1242, %v1246
    %v1261 = vunpack.c.l.b16 %v1230
    %v1262 = vunpack.c.l.b16 %v1231
    %v1263 = vunpack.c.l.b16 %v1232
    %v1264 = vunpack.c.l.b16 %v1233
    %v1265 = vunpack.c.l.b16 %v1234
    %v1266 = vunpack.c.l.b16 %v1235
    %v1267 = vunpack.c.l.b16 %v1236
    %v1268 = vunpack.c.l.b16 %v1237
    %v1269 = vunpack.c.l.b16 %v1238
    %v1270 = vunpack.c.l.b16 %v1239
    %v1271 = vunpack.c.l.b16 %v1240
    %v1272 = vunpack.c.l.b16 %v1241
    %v1273 = vpack.c.b16 %v1262, %v1261
    %v1274 = vpack.c.b16 %v1264, %v1263
    %v1275 = vpack.c.b16 %v1266, %v1265
    %v1276 = vpack.c.b16 %v1268, %v1267
    %v1277 = vpack.c.b16 %v1270, %v1269
    %v1278 = vpack.c.b16 %v1272, %v1271
    %v1286 = vsel %vm368, %v1229, 0
    %1288 = vmatprep.subr.bf16.mxu0 0
    %1289 = vmatpush1.bf16.msra.mxu0 %v1273
    %1290 = vmatprep.subr.bf16.mxu0 0
    %1291 = vmatpush1.bf16.msra.mxu0 %v1274
    %1292 = vmatprep.subr.bf16.mxu0 0
    %1293 = vmatpush1.bf16.msra.mxu0 %v1275
    %1294 = vmatprep.subr.bf16.mxu0 0
    %1295 = vmatpush1.bf16.msra.mxu0 %v1276
    %1296 = vmatprep.subr.bf16.mxu0 0
    %1297 = vmatpush1.bf16.msra.mxu0 %v1277
    %1298 = vmatprep.subr.bf16.mxu0 0
    %1299 = vmatpush1.bf16.msra.mxu0 %v1278
    %1300 = vmatprep.subr.bf16.mxu0 0
    %1301 = vmatpush1.bf16.msra.mxu0 0
    %1302 = vmatprep.subr.bf16.mxu0 0
    %1303 = vmatpush1.bf16.msra.mxu0 0
    %1304 = vmatprep.subr.bf16.mxu0 0
    %1305 = vmatpush1.bf16.msra.mxu0 0
    %1306 = vmatprep.subr.bf16.mxu0 0
    %1307 = vmatpush1.bf16.msra.mxu0 0
    %1308 = vmatprep.subr.bf16.mxu0 0
    %1309 = vmatpush1.bf16.msra.mxu0 0
    %1310 = vmatprep.subr.bf16.mxu0 0
    %1311 = vmatpush1.bf16.msra.mxu0 0
    %1312 = vmatprep.subr.bf16.mxu0 0
    %1313 = vmatpush1.bf16.msra.mxu0 0
    %1314 = vmatprep.subr.bf16.mxu0 0
    %1315 = vmatpush1.bf16.msra.mxu0 0
    %1316 = vmatprep.subr.bf16.mxu0 0
    %1317 = vmatpush1.bf16.msra.mxu0 0
    %1318 = vmatprep.subr.bf16.mxu0 0
    %1319 = vmatpush1.bf16.msra.mxu0 0
    %1320 = vmatprep.mubr.bf16.mxu0 0
    %1321 = vmatmul.mubr.bf16.gmra.mrb[0].mxu0 %v1286
    %v1322 = vpop.f32.mrb[0].mxu0
    %v1323 = vadd.f32 %v1247, %v1322
    %v1324 = vpop.f32.mrb[0].mxu0
    %v1325 = vpop.f32.mrb[0].mxu0
    %v1326 = vpop.f32.mrb[0].mxu0
    %1327 = vdwg.mxu0
    %v1328 = vadd.f32 %v197, %v1323
    %v1329 = vld [vmem:[#allocation10] sm:$0x1]
    %v1330 = vld [vmem:[#allocation11] sm:$0x1]
    %v1331 = vsel %vm201, %v1328, 0.0
    %1332 = vadd.xlane.f32.xlu0 %v1331
    %v1333 = vpop.xlane.xlu0 %1332
    %v1334 = vmul.f32 %v1333, %v205
    %v1335 = vsub.f32 %v1328, %v1334
    %v1336 = vmul.f32 %v1335, %v1335
    %v1337 = vsel %vm201, %v1336, 0.0
    %1338 = vadd.xlane.f32.xlu0 %v1337
    %v1339 = vpop.xlane.xlu0 %1338
    %v1340 = vmul.f32 %v1339, %v205
    %v1341 = vadd.f32 %v1340, 1e-05
    %v1342 = vrsqrt.pop %v1341
    %v1343 = vmul.f32 %v1335, %v1342
    %v1345 = vlaneseq
    %v1346 = vshrl.u32 %v1345, 7
    %v1347 = vsub.s32 0, %v1346
    %v1348 = vrot.slane %v1329, %v1347
    %v1350 = vmul.f32 %v1343, %v1348
    %v1352 = vlaneseq
    %v1353 = vshrl.u32 %v1352, 7
    %v1354 = vsub.s32 0, %v1353
    %v1355 = vrot.slane %v1330, %v1354
    %v1357 = vadd.f32 %v1350, %v1355
    %v1358 = vld [vmem:[#allocation13] sm:$0x1]
    %1360 = vset.pattern.permute.xlu0 0
    %1361 = vperm.xlu0 %1360, %v198
    %v1362 = vpop.permute.xlu0 %1361
    %v1365 = vlaneseq
    %v1366 = vshrl.u32 %v1365, 7
    %v1367 = vsub.s32 0, %v1366
    %v1368 = vrot.slane %v1358, %v1367
    %v1370 = vmul.f32 %v1362, %v1368
    %v1371 = vld [vmem:[#allocation14] sm:$0x1]
    %v1373 = vlaneseq
    %v1374 = vshrl.u32 %v1373, 7
    %v1375 = vsub.s32 0, %v1374
    %v1376 = vrot.slane %v1371, %v1375
    %v1378 = vadd.f32 %v1370, %v1376
    %v1379 = vmul.f32 %v1357, 2.0
    %v1380 = vadd.f32 %v1379, %v1378
    %v1381 = vld [vmem:[#allocation16] sm:$0x1]
    %v1382 = vld [vmem:[#allocation17] sm:$0x1]
    %v1383 = vsel %vm201, %v1380, 0.0
    %1384 = vadd.xlane.f32.xlu0 %v1383
    %v1385 = vpop.xlane.xlu0 %1384
    %v1386 = vmul.f32 %v1385, %v205
    %v1387 = vsub.f32 %v1380, %v1386
    %v1388 = vmul.f32 %v1387, %v1387
    %v1389 = vsel %vm201, %v1388, 0.0
    %1390 = vadd.xlane.f32.xlu0 %v1389
    %v1391 = vpop.xlane.xlu0 %1390
    %v1392 = vmul.f32 %v1391, %v205
    %v1393 = vadd.f32 %v1392, 1e-05
    %v1394 = vrsqrt.pop %v1393
    %v1395 = vmul.f32 %v1387, %v1394
    %v1397 = vlaneseq
    %v1398 = vshrl.u32 %v1397, 7
    %v1399 = vsub.s32 0, %v1398
    %v1400 = vrot.slane %v1381, %v1399
    %v1402 = vmul.f32 %v1395, %v1400
    %v1404 = vlaneseq
    %v1405 = vshrl.u32 %v1404, 7
    %v1406 = vsub.s32 0, %v1405
    %v1407 = vrot.slane %v1382, %v1406
    %v1409 = vadd.f32 %v1402, %v1407
    %s1410 = scalar_lea.vmem %s2, 1
    %v1411 = vld [vmem:[%s1410] sm:$0x1]
    %s1412 = scalar_lea.vmem %s3, 1
    %v1413 = vld [vmem:[%s1412] sm:$0x1]
    %v1414 = vsel %vm201, %v1409, 0.0
    %1415 = vadd.xlane.f32.xlu0 %v1414
    %v1416 = vpop.xlane.xlu0 %1415
    %v1417 = vmul.f32 %v1416, %v205
    %v1418 = vsub.f32 %v1409, %v1417
    %v1419 = vmul.f32 %v1418, %v1418
    %v1420 = vsel %vm201, %v1419, 0.0
    %1421 = vadd.xlane.f32.xlu0 %v1420
    %v1422 = vpop.xlane.xlu0 %1421
    %v1423 = vmul.f32 %v1422, %v205
    %v1424 = vadd.f32 %v1423, 1e-05
    %v1425 = vrsqrt.pop %v1424
    %v1426 = vmul.f32 %v1418, %v1425
    %v1428 = vlaneseq
    %v1429 = vshrl.u32 %v1428, 7
    %v1430 = vsub.s32 0, %v1429
    %v1431 = vrot.slane %v1411, %v1430
    %v1433 = vmul.f32 %v1426, %v1431
    %v1435 = vlaneseq
    %v1436 = vshrl.u32 %v1435, 7
    %v1437 = vsub.s32 0, %v1436
    %v1438 = vrot.slane %v1413, %v1437
    %v1440 = vadd.f32 %v1433, %v1438
    %v1441 = vpack.c.bf16 %v1440, %v1440
    %s1442 = scalar_lea.vmem [#allocation2], 144
    %v1443 = vld [vmem:[%s1442] sm:$0xff]
    %v1444 = vld [vmem:[%s1442 + $0x8] sm:$0xf]
    %v1445 = vld [vmem:[%s1442 + $0xc] sm:$0xff]
    %v1446 = vld [vmem:[%s1442 + $0x14] sm:$0xf]
    %v1447 = vld [vmem:[%s1442 + $0x18] sm:$0xff]
    %v1448 = vld [vmem:[%s1442 + $0x20] sm:$0xf]
    %v1449 = vld [vmem:[%s1442 + $0x24] sm:$0xff]
    %v1450 = vld [vmem:[%s1442 + $0x2c] sm:$0xf]
    %v1451 = vld [vmem:[%s1442 + $0x30] sm:$0xff]
    %v1452 = vld [vmem:[%s1442 + $0x38] sm:$0xf]
    %v1453 = vld [vmem:[%s1442 + $0x3c] sm:$0xff]
    %v1454 = vld [vmem:[%s1442 + $0x44] sm:$0xf]
    %v1455 = vld [vmem:[%s1442 + $0x48] sm:$0xff]
    %v1456 = vld [vmem:[%s1442 + $0x50] sm:$0xf]
    %v1457 = vld [vmem:[%s1442 + $0x54] sm:$0xff]
    %v1458 = vld [vmem:[%s1442 + $0x5c] sm:$0xf]
    %v1459 = vld [vmem:[%s1442 + $0x60] sm:$0xff]
    %v1460 = vld [vmem:[%s1442 + $0x68] sm:$0xf]
    %v1461 = vld [vmem:[%s1442 + $0x6c] sm:$0xff]
    %v1462 = vld [vmem:[%s1442 + $0x74] sm:$0xf]
    %v1463 = vld [vmem:[%s1442 + $0x78] sm:$0xff]
    %v1464 = vld [vmem:[%s1442 + $0x80] sm:$0xf]
    %v1465 = vld [vmem:[%s1442 + $0x84] sm:$0xff]
    %v1466 = vld [vmem:[%s1442 + $0x8c] sm:$0xf]
    %s1467 = scalar_lea.vmem %s5, 3
    %v1468 = vld [vmem:[%s1467] sm:$0x7]
    %v1470 = vlaneseq
    %v1471 = vshrl.u32 %v1470, 7
    %v1472 = vsub.s32 0, %v1471
    %v1473 = vrot.slane %v1468, %v1472
    %v1474 = vlaneseq
    %v1475 = vshrl.u32 %v1474, 7
    %v1476 = vsub.s32 1, %v1475
    %v1477 = vrot.slane %v1468, %v1476
    %v1478 = vlaneseq
    %v1479 = vshrl.u32 %v1478, 7
    %v1480 = vsub.s32 2, %v1479
    %v1481 = vrot.slane %v1468, %v1480
    %v1509 = vunpack.c.l.b16 %v1443
    %v1510 = vunpack.c.h.b16 %v1443
    %v1511 = vunpack.c.l.b16 %v1444
    %v1512 = vunpack.c.l.b16 %v1445
    %v1513 = vunpack.c.h.b16 %v1445
    %v1514 = vunpack.c.l.b16 %v1446
    %v1515 = vunpack.c.l.b16 %v1447
    %v1516 = vunpack.c.h.b16 %v1447
    %v1517 = vunpack.c.l.b16 %v1448
    %v1518 = vunpack.c.l.b16 %v1449
    %v1519 = vunpack.c.h.b16 %v1449
    %v1520 = vunpack.c.l.b16 %v1450
    %v1521 = vunpack.c.l.b16 %v1451
    %v1522 = vunpack.c.h.b16 %v1451
    %v1523 = vunpack.c.l.b16 %v1452
    %v1524 = vunpack.c.l.b16 %v1453
    %v1525 = vunpack.c.h.b16 %v1453
    %v1526 = vunpack.c.l.b16 %v1454
    %v1527 = vunpack.c.l.b16 %v1455
    %v1528 = vunpack.c.h.b16 %v1455
    %v1529 = vunpack.c.l.b16 %v1456
    %v1530 = vunpack.c.l.b16 %v1457
    %v1531 = vunpack.c.h.b16 %v1457
    %v1532 = vunpack.c.l.b16 %v1458
    %v1533 = vunpack.c.l.b16 %v1459
    %v1534 = vunpack.c.h.b16 %v1459
    %v1535 = vunpack.c.l.b16 %v1460
    %v1536 = vunpack.c.l.b16 %v1461
    %v1537 = vunpack.c.h.b16 %v1461
    %v1538 = vunpack.c.l.b16 %v1462
    %v1539 = vunpack.c.l.b16 %v1463
    %v1540 = vunpack.c.h.b16 %v1463
    %v1541 = vunpack.c.l.b16 %v1464
    %v1542 = vunpack.c.l.b16 %v1465
    %v1543 = vunpack.c.h.b16 %v1465
    %v1544 = vunpack.c.l.b16 %v1466
    %v1545 = vpack.c.b16 %v1512, %v1509
    %v1546 = vpack.c.b16 %v1513, %v1510
    %v1547 = vpack.c.b16 %v1514, %v1511
    %v1548 = vpack.c.b16 %v1518, %v1515
    %v1549 = vpack.c.b16 %v1519, %v1516
    %v1550 = vpack.c.b16 %v1520, %v1517
    %v1551 = vpack.c.b16 %v1524, %v1521
    %v1552 = vpack.c.b16 %v1525, %v1522
    %v1553 = vpack.c.b16 %v1526, %v1523
    %v1554 = vpack.c.b16 %v1530, %v1527
    %v1555 = vpack.c.b16 %v1531, %v1528
    %v1556 = vpack.c.b16 %v1532, %v1529
    %v1557 = vpack.c.b16 %v1536, %v1533
    %v1558 = vpack.c.b16 %v1537, %v1534
    %v1559 = vpack.c.b16 %v1538, %v1535
    %v1560 = vpack.c.b16 %v1542, %v1539
    %v1561 = vpack.c.b16 %v1543, %v1540
    %v1562 = vpack.c.b16 %v1544, %v1541
    %v1582 = vsel %vm368, %v1441, 0
    %1584 = vmatprep.subr.bf16.mxu0 %v1546
    %1585 = vmatpush1.bf16.msra.mxu0 %v1545
    %1586 = vmatprep.subr.bf16.mxu0 %v1549
    %1587 = vmatpush1.bf16.msra.mxu0 %v1548
    %1588 = vmatprep.subr.bf16.mxu0 %v1552
    %1589 = vmatpush1.bf16.msra.mxu0 %v1551
    %1590 = vmatprep.subr.bf16.mxu0 %v1555
    %1591 = vmatpush1.bf16.msra.mxu0 %v1554
    %1592 = vmatprep.subr.bf16.mxu0 %v1558
    %1593 = vmatpush1.bf16.msra.mxu0 %v1557
    %1594 = vmatprep.subr.bf16.mxu0 %v1561
    %1595 = vmatpush1.bf16.msra.mxu0 %v1560
    %1596 = vmatprep.subr.bf16.mxu0 0
    %1597 = vmatpush1.bf16.msra.mxu0 0
    %1598 = vmatprep.subr.bf16.mxu0 0
    %1599 = vmatpush1.bf16.msra.mxu0 0
    %1600 = vmatprep.subr.bf16.mxu0 0
    %1601 = vmatpush1.bf16.msra.mxu0 0
    %1602 = vmatprep.subr.bf16.mxu0 0
    %1603 = vmatpush1.bf16.msra.mxu0 0
    %1604 = vmatprep.subr.bf16.mxu0 0
    %1605 = vmatpush1.bf16.msra.mxu0 0
    %1606 = vmatprep.subr.bf16.mxu0 0
    %1607 = vmatpush1.bf16.msra.mxu0 0
    %1608 = vmatprep.subr.bf16.mxu0 0
    %1609 = vmatpush1.bf16.msra.mxu0 0
    %1610 = vmatprep.subr.bf16.mxu0 0
    %1611 = vmatpush1.bf16.msra.mxu0 0
    %1612 = vmatprep.subr.bf16.mxu0 0
    %1613 = vmatpush1.bf16.msra.mxu0 0
    %1614 = vmatprep.subr.bf16.mxu0 0
    %1615 = vmatpush1.bf16.msra.mxu0 0
    %1616 = vmatprep.mubr.bf16.mxu0 0
    %1617 = vmatmul.mubr.bf16.gmra.mrb[0].mxu0 %v1582
    %v1618 = vpop.f32.mrb[0].mxu0
    %v1619 = vadd.f32 %v1473, %v1618
    %v1620 = vpop.f32.mrb[0].mxu0
    %v1621 = vadd.f32 %v1477, %v1620
    %v1622 = vpop.f32.mrb[0].mxu0
    %v1623 = vpop.f32.mrb[0].mxu0
    %1624 = vdwg.mxu0
    %1625 = vmatprep.subr.bf16.mxu0 0
    %1626 = vmatpush1.bf16.msra.mxu0 %v1547
    %1627 = vmatprep.subr.bf16.mxu0 0
    %1628 = vmatpush1.bf16.msra.mxu0 %v1550
    %1629 = vmatprep.subr.bf16.mxu0 0
    %1630 = vmatpush1.bf16.msra.mxu0 %v1553
    %1631 = vmatprep.subr.bf16.mxu0 0
    %1632 = vmatpush1.bf16.msra.mxu0 %v1556
    %1633 = vmatprep.subr.bf16.mxu0 0
    %1634 = vmatpush1.bf16.msra.mxu0 %v1559
    %1635 = vmatprep.subr.bf16.mxu0 0
    %1636 = vmatpush1.bf16.msra.mxu0 %v1562
    %1637 = vmatprep.subr.bf16.mxu0 0
    %1638 = vmatpush1.bf16.msra.mxu0 0
    %1639 = vmatprep.subr.bf16.mxu0 0
    %1640 = vmatpush1.bf16.msra.mxu0 0
    %1641 = vmatprep.subr.bf16.mxu0 0
    %1642 = vmatpush1.bf16.msra.mxu0 0
    %1643 = vmatprep.subr.bf16.mxu0 0
    %1644 = vmatpush1.bf16.msra.mxu0 0
    %1645 = vmatprep.subr.bf16.mxu0 0
    %1646 = vmatpush1.bf16.msra.mxu0 0
    %1647 = vmatprep.subr.bf16.mxu0 0
    %1648 = vmatpush1.bf16.msra.mxu0 0
    %1649 = vmatprep.subr.bf16.mxu0 0
    %1650 = vmatpush1.bf16.msra.mxu0 0
    %1651 = vmatprep.subr.bf16.mxu0 0
    %1652 = vmatpush1.bf16.msra.mxu0 0
    %1653 = vmatprep.subr.bf16.mxu0 0
    %1654 = vmatpush1.bf16.msra.mxu0 0
    %1655 = vmatprep.subr.bf16.mxu0 0
    %1656 = vmatpush1.bf16.msra.mxu0 0
    %1657 = vmatprep.mubr.bf16.mxu0 0
    %1658 = vmatmul.mubr.bf16.gmra.mrb[0].mxu0 %v1582
    %v1659 = vpop.f32.mrb[0].mxu0
    %v1660 = vadd.f32 %v1481, %v1659
    %v1661 = vpop.f32.mrb[0].mxu0
    %v1662 = vpop.f32.mrb[0].mxu0
    %v1663 = vpop.f32.mrb[0].mxu0
    %1664 = vdwg.mxu0
    %s1665 = scalar_lea.vmem %s6, 1
    %v1666 = vld [vmem:[%s1665] sm:$0x1]
    %s1667 = scalar_lea.vmem [#allocation5], 1
    %v1668 = vld [vmem:[%s1667] sm:$0x1]
    %1670 = vrot.lane.b32.xlu0 %v1619, 32
    %v1671 = vpop.permute.xlu0 %1670
    %v1672 = vsel %vm458, %v1619, 0
    %v1674 = vsel %vm458, %v1671, 0
    %1676 = vmatprep.subr.mxu0 0.0
    %1677 = vmatpush1.xpose.msra.mxu0 %v1674
    %1678 = vmatprep.subr.mxu0 0.0
    %1679 = vmatpush1.xpose.msra.mxu0 0.0
    %1680 = vmatprep.subr.mxu0 0.0
    %1681 = vmatpush1.xpose.msra.mxu0 0.0
    %1682 = vmatprep.subr.mxu0 0.0
    %1683 = vmatpush1.xpose.msra.mxu0 0.0
    %1684 = vmatprep.subr.mxu0 0.0
    %1685 = vmatpush1.xpose.msra.mxu0 0.0
    %1686 = vmatprep.subr.mxu0 0.0
    %1687 = vmatpush1.xpose.msra.mxu0 0.0
    %1688 = vmatprep.subr.mxu0 0.0
    %1689 = vmatpush1.xpose.msra.mxu0 0.0
    %1690 = vmatprep.subr.mxu0 0.0
    %1691 = vmatpush1.xpose.msra.mxu0 0.0
    %1692 = vmatprep.subr.mxu0 0.0
    %1693 = vmatpush1.xpose.msra.mxu0 0.0
    %1694 = vmatprep.subr.mxu0 0.0
    %1695 = vmatpush1.xpose.msra.mxu0 0.0
    %1696 = vmatprep.subr.mxu0 0.0
    %1697 = vmatpush1.xpose.msra.mxu0 0.0
    %1698 = vmatprep.subr.mxu0 0.0
    %1699 = vmatpush1.xpose.msra.mxu0 0.0
    %1700 = vmatprep.subr.mxu0 0.0
    %1701 = vmatpush1.xpose.msra.mxu0 0.0
    %1702 = vmatprep.subr.mxu0 0.0
    %1703 = vmatpush1.xpose.msra.mxu0 0.0
    %1704 = vmatprep.subr.mxu0 0.0
    %1705 = vmatpush1.xpose.msra.mxu0 0.0
    %1706 = vmatprep.subr.mxu0 0.0
    %1707 = vmatpush1.xpose.msra.mxu0 0.0
    %1708 = vmatprep.subr.mxu0 0.0
    %1709 = vmatpush1.xpose.msra.mxu0 0.0
    %1710 = vmatprep.subr.mxu0 0.0
    %1711 = vmatpush1.xpose.msra.mxu0 0.0
    %1712 = vmatprep.subr.mxu0 0.0
    %1713 = vmatpush1.xpose.msra.mxu0 0.0
    %1714 = vmatprep.subr.mxu0 0.0
    %1715 = vmatpush1.xpose.msra.mxu0 0.0
    %1716 = vmatprep.subr.mxu0 0.0
    %1717 = vmatpush1.xpose.msra.mxu0 0.0
    %1718 = vmatprep.subr.mxu0 0.0
    %1719 = vmatpush1.xpose.msra.mxu0 0.0
    %1720 = vmatprep.subr.mxu0 0.0
    %1721 = vmatpush1.xpose.msra.mxu0 0.0
    %1722 = vmatprep.subr.mxu0 0.0
    %1723 = vmatpush1.xpose.msra.mxu0 0.0
    %1724 = vmatprep.subr.mxu0 0.0
    %1725 = vmatpush1.xpose.msra.mxu0 0.0
    %1726 = vmatprep.subr.mxu0 0.0
    %1727 = vmatpush1.xpose.msra.mxu0 0.0
    %1728 = vmatprep.subr.mxu0 0.0
    %1729 = vmatpush1.xpose.msra.mxu0 0.0
    %1730 = vmatprep.subr.mxu0 0.0
    %1731 = vmatpush1.xpose.msra.mxu0 0.0
    %1732 = vmatprep.subr.mxu0 0.0
    %1733 = vmatpush1.xpose.msra.mxu0 0.0
    %1734 = vmatprep.subr.mxu0 0.0
    %1735 = vmatpush1.xpose.msra.mxu0 0.0
    %1736 = vmatprep.subr.mxu0 0.0
    %1737 = vmatpush1.xpose.msra.mxu0 0.0
    %1738 = vmatprep.subr.mxu0 0.0
    %1739 = vmatpush1.xpose.msra.mxu0 0.0
    %1740 = vmatprep.mubr.f32.mxu0 0.0
    %1741 = vmatmul.mubr.f32.gmra.mrb[0].mxu0 %v1672
    %v1742 = vpop.f32.mrb[0].mxu0
    %v1743 = vadd.f32 0.0, %v1742
    %v1744 = vpop.f32.mrb[0].mxu0
    %1745 = vdwg.mxu0
    %v1746 = vmul.f32 %v1743, 0.20412415
    %v1748 = vlaneseq
    %v1749 = vshrl.u32 %v1748, 7
    %v1750 = vsub.s32 0, %v1749
    %v1751 = vrot.slane %v1666, %v1750
    %v1753 = vmul.f32 %v1619, %v1751
    %v1754 = vsel %vm541, %v1753, 0.0
    %1755 = vadd.xlane.f32.xlu0 %v1754
    %v1756 = vpop.xlane.xlu0 %1755
    %v1757 = vmul.f32 %v1756, 0.20412415
    %v1758 = vsel %vm546, %v1746, -inf
    %1759 = vmax.xlane.f32.xlu0 %v1758
    %v1760 = vpop.xlane.xlu0 %1759
    %v1761 = vmax.f32 %v1760, %v1757
    %v1762 = vsub.f32 %v1746, %v1761
    %v1763 = vmul.f32 %v1762, 1.442695
    %v1764 = vpow.pop %v1763
    %v1765 = vsub.f32 %v1757, %v1761
    %v1766 = vmul.f32 %v1765, 1.442695
    %v1767 = vpow.pop %v1766
    %v1768 = vsel %vm546, %v1764, 0.0
    %1769 = vadd.xlane.f32.xlu0 %v1768
    %v1770 = vpop.xlane.xlu0 %1769
    %v1771 = vadd.f32 %v1770, %v1767
    %v1772 = vrcp.pop %v1771
    %v1774 = vlaneseq
    %v1775 = vshrl.u32 %v1774, 7
    %v1776 = vsub.s32 0, %v1775
    %v1777 = vrot.slane %v1668, %v1776
    %v1779 = vmul.f32 %v1767, %v1777
    %1781 = vrot.lane.b32.xlu0 %v1621, 64
    %v1782 = vpop.permute.xlu0 %1781
    %v1784 = vsel %vm572, %v1764, 0
    %v1786 = vsel %vm576, %v1782, 0
    %1788 = vmatprep.subr.mxu0 0.0
    %1789 = vmatpush1.msra.mxu0 %v1786
    %1790 = vmatprep.subr.mxu0 0.0
    %1791 = vmatpush1.msra.mxu0 0.0
    %1792 = vmatprep.subr.mxu0 0.0
    %1793 = vmatpush1.msra.mxu0 0.0
    %1794 = vmatprep.subr.mxu0 0.0
    %1795 = vmatpush1.msra.mxu0 0.0
    %1796 = vmatprep.subr.mxu0 0.0
    %1797 = vmatpush1.msra.mxu0 0.0
    %1798 = vmatprep.subr.mxu0 0.0
    %1799 = vmatpush1.msra.mxu0 0.0
    %1800 = vmatprep.subr.mxu0 0.0
    %1801 = vmatpush1.msra.mxu0 0.0
    %1802 = vmatprep.subr.mxu0 0.0
    %1803 = vmatpush1.msra.mxu0 0.0
    %1804 = vmatprep.subr.mxu0 0.0
    %1805 = vmatpush1.msra.mxu0 0.0
    %1806 = vmatprep.subr.mxu0 0.0
    %1807 = vmatpush1.msra.mxu0 0.0
    %1808 = vmatprep.subr.mxu0 0.0
    %1809 = vmatpush1.msra.mxu0 0.0
    %1810 = vmatprep.subr.mxu0 0.0
    %1811 = vmatpush1.msra.mxu0 0.0
    %1812 = vmatprep.subr.mxu0 0.0
    %1813 = vmatpush1.msra.mxu0 0.0
    %1814 = vmatprep.subr.mxu0 0.0
    %1815 = vmatpush1.msra.mxu0 0.0
    %1816 = vmatprep.subr.mxu0 0.0
    %1817 = vmatpush1.msra.mxu0 0.0
    %1818 = vmatprep.subr.mxu0 0.0
    %1819 = vmatpush1.msra.mxu0 0.0
    %1820 = vmatprep.subr.mxu0 0.0
    %1821 = vmatpush1.msra.mxu0 0.0
    %1822 = vmatprep.subr.mxu0 0.0
    %1823 = vmatpush1.msra.mxu0 0.0
    %1824 = vmatprep.subr.mxu0 0.0
    %1825 = vmatpush1.msra.mxu0 0.0
    %1826 = vmatprep.subr.mxu0 0.0
    %1827 = vmatpush1.msra.mxu0 0.0
    %1828 = vmatprep.subr.mxu0 0.0
    %1829 = vmatpush1.msra.mxu0 0.0
    %1830 = vmatprep.subr.mxu0 0.0
    %1831 = vmatpush1.msra.mxu0 0.0
    %1832 = vmatprep.subr.mxu0 0.0
    %1833 = vmatpush1.msra.mxu0 0.0
    %1834 = vmatprep.subr.mxu0 0.0
    %1835 = vmatpush1.msra.mxu0 0.0
    %1836 = vmatprep.subr.mxu0 0.0
    %1837 = vmatpush1.msra.mxu0 0.0
    %1838 = vmatprep.subr.mxu0 0.0
    %1839 = vmatpush1.msra.mxu0 0.0
    %1840 = vmatprep.subr.mxu0 0.0
    %1841 = vmatpush1.msra.mxu0 0.0
    %1842 = vmatprep.subr.mxu0 0.0
    %1843 = vmatpush1.msra.mxu0 0.0
    %1844 = vmatprep.subr.mxu0 0.0
    %1845 = vmatpush1.msra.mxu0 0.0
    %1846 = vmatprep.subr.mxu0 0.0
    %1847 = vmatpush1.msra.mxu0 0.0
    %1848 = vmatprep.subr.mxu0 0.0
    %1849 = vmatpush1.msra.mxu0 0.0
    %1850 = vmatprep.subr.mxu0 0.0
    %1851 = vmatpush1.msra.mxu0 0.0
    %1852 = vmatprep.mubr.f32.mxu0 0.0
    %1853 = vmatmul.mubr.f32.gmra.mrb[0].mxu0 %v1784
    %v1854 = vpop.f32.mrb[0].mxu0
    %v1855 = vadd.f32 %v1779, %v1854
    %v1856 = vpop.f32.mrb[0].mxu0
    %1857 = vdwg.mxu0
    %v1858 = vmul.f32 %v1855, %v1772
    %1859 = vrot.lane.b32.xlu0 %v1619, 104
    %v1860 = vpop.permute.xlu0 %1859
    %1861 = vrot.lane.b32.xlu0 %v1619, 8
    %v1862 = vpop.permute.xlu0 %1861
    %1863 = vrot.lane.b32.xlu0 %v1621, 8
    %v1864 = vpop.permute.xlu0 %1863
    %v1865 = vsel %vm656, %v1862, %v1864
    %v1866 = vsel %vm458, %v1860, 0
    %v1868 = vsel %vm458, %v1865, 0
    %1870 = vmatprep.subr.mxu0 0.0
    %1871 = vmatpush1.xpose.msra.mxu0 %v1868
    %1872 = vmatprep.subr.mxu0 0.0
    %1873 = vmatpush1.xpose.msra.mxu0 0.0
    %1874 = vmatprep.subr.mxu0 0.0
    %1875 = vmatpush1.xpose.msra.mxu0 0.0
    %1876 = vmatprep.subr.mxu0 0.0
    %1877 = vmatpush1.xpose.msra.mxu0 0.0
    %1878 = vmatprep.subr.mxu0 0.0
    %1879 = vmatpush1.xpose.msra.mxu0 0.0
    %1880 = vmatprep.subr.mxu0 0.0
    %1881 = vmatpush1.xpose.msra.mxu0 0.0
    %1882 = vmatprep.subr.mxu0 0.0
    %1883 = vmatpush1.xpose.msra.mxu0 0.0
    %1884 = vmatprep.subr.mxu0 0.0
    %1885 = vmatpush1.xpose.msra.mxu0 0.0
    %1886 = vmatprep.subr.mxu0 0.0
    %1887 = vmatpush1.xpose.msra.mxu0 0.0
    %1888 = vmatprep.subr.mxu0 0.0
    %1889 = vmatpush1.xpose.msra.mxu0 0.0
    %1890 = vmatprep.subr.mxu0 0.0
    %1891 = vmatpush1.xpose.msra.mxu0 0.0
    %1892 = vmatprep.subr.mxu0 0.0
    %1893 = vmatpush1.xpose.msra.mxu0 0.0
    %1894 = vmatprep.subr.mxu0 0.0
    %1895 = vmatpush1.xpose.msra.mxu0 0.0
    %1896 = vmatprep.subr.mxu0 0.0
    %1897 = vmatpush1.xpose.msra.mxu0 0.0
    %1898 = vmatprep.subr.mxu0 0.0
    %1899 = vmatpush1.xpose.msra.mxu0 0.0
    %1900 = vmatprep.subr.mxu0 0.0
    %1901 = vmatpush1.xpose.msra.mxu0 0.0
    %1902 = vmatprep.subr.mxu0 0.0
    %1903 = vmatpush1.xpose.msra.mxu0 0.0
    %1904 = vmatprep.subr.mxu0 0.0
    %1905 = vmatpush1.xpose.msra.mxu0 0.0
    %1906 = vmatprep.subr.mxu0 0.0
    %1907 = vmatpush1.xpose.msra.mxu0 0.0
    %1908 = vmatprep.subr.mxu0 0.0
    %1909 = vmatpush1.xpose.msra.mxu0 0.0
    %1910 = vmatprep.subr.mxu0 0.0
    %1911 = vmatpush1.xpose.msra.mxu0 0.0
    %1912 = vmatprep.subr.mxu0 0.0
    %1913 = vmatpush1.xpose.msra.mxu0 0.0
    %1914 = vmatprep.subr.mxu0 0.0
    %1915 = vmatpush1.xpose.msra.mxu0 0.0
    %1916 = vmatprep.subr.mxu0 0.0
    %1917 = vmatpush1.xpose.msra.mxu0 0.0
    %1918 = vmatprep.subr.mxu0 0.0
    %1919 = vmatpush1.xpose.msra.mxu0 0.0
    %1920 = vmatprep.subr.mxu0 0.0
    %1921 = vmatpush1.xpose.msra.mxu0 0.0
    %1922 = vmatprep.subr.mxu0 0.0
    %1923 = vmatpush1.xpose.msra.mxu0 0.0
    %1924 = vmatprep.subr.mxu0 0.0
    %1925 = vmatpush1.xpose.msra.mxu0 0.0
    %1926 = vmatprep.subr.mxu0 0.0
    %1927 = vmatpush1.xpose.msra.mxu0 0.0
    %1928 = vmatprep.subr.mxu0 0.0
    %1929 = vmatpush1.xpose.msra.mxu0 0.0
    %1930 = vmatprep.subr.mxu0 0.0
    %1931 = vmatpush1.xpose.msra.mxu0 0.0
    %1932 = vmatprep.subr.mxu0 0.0
    %1933 = vmatpush1.xpose.msra.mxu0 0.0
    %1934 = vmatprep.mubr.f32.mxu0 0.0
    %1935 = vmatmul.mubr.f32.gmra.mrb[0].mxu0 %v1866
    %v1936 = vpop.f32.mrb[0].mxu0
    %v1937 = vadd.f32 0.0, %v1936
    %v1938 = vpop.f32.mrb[0].mxu0
    %1939 = vdwg.mxu0
    %v1940 = vmul.f32 %v1937, 0.20412415
    %1942 = vrot.lane.b32.xlu0 %v1753, 104
    %v1943 = vpop.permute.xlu0 %1942
    %v1945 = vsel %vm541, %v1943, 0.0
    %1946 = vadd.xlane.f32.xlu0 %v1945
    %v1947 = vpop.xlane.xlu0 %1946
    %v1948 = vmul.f32 %v1947, 0.20412415
    %v1949 = vsel %vm546, %v1940, -inf
    %1950 = vmax.xlane.f32.xlu0 %v1949
    %v1951 = vpop.xlane.xlu0 %1950
    %v1952 = vmax.f32 %v1951, %v1948
    %v1953 = vsub.f32 %v1940, %v1952
    %v1954 = vmul.f32 %v1953, 1.442695
    %v1955 = vpow.pop %v1954
    %v1956 = vsub.f32 %v1948, %v1952
    %v1957 = vmul.f32 %v1956, 1.442695
    %v1958 = vpow.pop %v1957
    %v1959 = vsel %vm546, %v1955, 0.0
    %1960 = vadd.xlane.f32.xlu0 %v1959
    %v1961 = vpop.xlane.xlu0 %1960
    %v1962 = vadd.f32 %v1961, %v1958
    %v1963 = vrcp.pop %v1962
    %v1964 = vmul.f32 %v1958, %v1777
    %1965 = vrot.lane.b32.xlu0 %v1621, 40
    %v1966 = vpop.permute.xlu0 %1965
    %1968 = vrot.lane.b32.xlu0 %v1964, 104
    %v1969 = vpop.permute.xlu0 %1968
    %v1972 = vsel %vm572, %v1955, 0
    %v1974 = vsel %vm576, %v1966, 0
    %1976 = vmatprep.subr.mxu0 0.0
    %1977 = vmatpush1.msra.mxu0 %v1974
    %1978 = vmatprep.subr.mxu0 0.0
    %1979 = vmatpush1.msra.mxu0 0.0
    %1980 = vmatprep.subr.mxu0 0.0
    %1981 = vmatpush1.msra.mxu0 0.0
    %1982 = vmatprep.subr.mxu0 0.0
    %1983 = vmatpush1.msra.mxu0 0.0
    %1984 = vmatprep.subr.mxu0 0.0
    %1985 = vmatpush1.msra.mxu0 0.0
    %1986 = vmatprep.subr.mxu0 0.0
    %1987 = vmatpush1.msra.mxu0 0.0
    %1988 = vmatprep.subr.mxu0 0.0
    %1989 = vmatpush1.msra.mxu0 0.0
    %1990 = vmatprep.subr.mxu0 0.0
    %1991 = vmatpush1.msra.mxu0 0.0
    %1992 = vmatprep.subr.mxu0 0.0
    %1993 = vmatpush1.msra.mxu0 0.0
    %1994 = vmatprep.subr.mxu0 0.0
    %1995 = vmatpush1.msra.mxu0 0.0
    %1996 = vmatprep.subr.mxu0 0.0
    %1997 = vmatpush1.msra.mxu0 0.0
    %1998 = vmatprep.subr.mxu0 0.0
    %1999 = vmatpush1.msra.mxu0 0.0
    %2000 = vmatprep.subr.mxu0 0.0
    %2001 = vmatpush1.msra.mxu0 0.0
    %2002 = vmatprep.subr.mxu0 0.0
    %2003 = vmatpush1.msra.mxu0 0.0
    %2004 = vmatprep.subr.mxu0 0.0
    %2005 = vmatpush1.msra.mxu0 0.0
    %2006 = vmatprep.subr.mxu0 0.0
    %2007 = vmatpush1.msra.mxu0 0.0
    %2008 = vmatprep.subr.mxu0 0.0
    %2009 = vmatpush1.msra.mxu0 0.0
    %2010 = vmatprep.subr.mxu0 0.0
    %2011 = vmatpush1.msra.mxu0 0.0
    %2012 = vmatprep.subr.mxu0 0.0
    %2013 = vmatpush1.msra.mxu0 0.0
    %2014 = vmatprep.subr.mxu0 0.0
    %2015 = vmatpush1.msra.mxu0 0.0
    %2016 = vmatprep.subr.mxu0 0.0
    %2017 = vmatpush1.msra.mxu0 0.0
    %2018 = vmatprep.subr.mxu0 0.0
    %2019 = vmatpush1.msra.mxu0 0.0
    %2020 = vmatprep.subr.mxu0 0.0
    %2021 = vmatpush1.msra.mxu0 0.0
    %2022 = vmatprep.subr.mxu0 0.0
    %2023 = vmatpush1.msra.mxu0 0.0
    %2024 = vmatprep.subr.mxu0 0.0
    %2025 = vmatpush1.msra.mxu0 0.0
    %2026 = vmatprep.subr.mxu0 0.0
    %2027 = vmatpush1.msra.mxu0 0.0
    %2028 = vmatprep.subr.mxu0 0.0
    %2029 = vmatpush1.msra.mxu0 0.0
    %2030 = vmatprep.subr.mxu0 0.0
    %2031 = vmatpush1.msra.mxu0 0.0
    %2032 = vmatprep.subr.mxu0 0.0
    %2033 = vmatpush1.msra.mxu0 0.0
    %2034 = vmatprep.subr.mxu0 0.0
    %2035 = vmatpush1.msra.mxu0 0.0
    %2036 = vmatprep.subr.mxu0 0.0
    %2037 = vmatpush1.msra.mxu0 0.0
    %2038 = vmatprep.subr.mxu0 0.0
    %2039 = vmatpush1.msra.mxu0 0.0
    %2040 = vmatprep.mubr.f32.mxu0 0.0
    %2041 = vmatmul.mubr.f32.gmra.mrb[0].mxu0 %v1972
    %v2042 = vpop.f32.mrb[0].mxu0
    %v2043 = vadd.f32 %v1969, %v2042
    %v2044 = vpop.f32.mrb[0].mxu0
    %2045 = vdwg.mxu0
    %v2046 = vmul.f32 %v2043, %v1963
    %2047 = vrot.lane.b32.xlu0 %v1619, 80
    %v2048 = vpop.permute.xlu0 %2047
    %2049 = vrot.lane.b32.xlu0 %v1621, 112
    %v2050 = vpop.permute.xlu0 %2049
    %v2051 = vsel %vm458, %v2048, 0
    %v2053 = vsel %vm458, %v2050, 0
    %2055 = vmatprep.subr.mxu0 0.0
    %2056 = vmatpush1.xpose.msra.mxu0 %v2053
    %2057 = vmatprep.subr.mxu0 0.0
    %2058 = vmatpush1.xpose.msra.mxu0 0.0
    %2059 = vmatprep.subr.mxu0 0.0
    %2060 = vmatpush1.xpose.msra.mxu0 0.0
    %2061 = vmatprep.subr.mxu0 0.0
    %2062 = vmatpush1.xpose.msra.mxu0 0.0
    %2063 = vmatprep.subr.mxu0 0.0
    %2064 = vmatpush1.xpose.msra.mxu0 0.0
    %2065 = vmatprep.subr.mxu0 0.0
    %2066 = vmatpush1.xpose.msra.mxu0 0.0
    %2067 = vmatprep.subr.mxu0 0.0
    %2068 = vmatpush1.xpose.msra.mxu0 0.0
    %2069 = vmatprep.subr.mxu0 0.0
    %2070 = vmatpush1.xpose.msra.mxu0 0.0
    %2071 = vmatprep.subr.mxu0 0.0
    %2072 = vmatpush1.xpose.msra.mxu0 0.0
    %2073 = vmatprep.subr.mxu0 0.0
    %2074 = vmatpush1.xpose.msra.mxu0 0.0
    %2075 = vmatprep.subr.mxu0 0.0
    %2076 = vmatpush1.xpose.msra.mxu0 0.0
    %2077 = vmatprep.subr.mxu0 0.0
    %2078 = vmatpush1.xpose.msra.mxu0 0.0
    %2079 = vmatprep.subr.mxu0 0.0
    %2080 = vmatpush1.xpose.msra.mxu0 0.0
    %2081 = vmatprep.subr.mxu0 0.0
    %2082 = vmatpush1.xpose.msra.mxu0 0.0
    %2083 = vmatprep.subr.mxu0 0.0
    %2084 = vmatpush1.xpose.msra.mxu0 0.0
    %2085 = vmatprep.subr.mxu0 0.0
    %2086 = vmatpush1.xpose.msra.mxu0 0.0
    %2087 = vmatprep.subr.mxu0 0.0
    %2088 = vmatpush1.xpose.msra.mxu0 0.0
    %2089 = vmatprep.subr.mxu0 0.0
    %2090 = vmatpush1.xpose.msra.mxu0 0.0
    %2091 = vmatprep.subr.mxu0 0.0
    %2092 = vmatpush1.xpose.msra.mxu0 0.0
    %2093 = vmatprep.subr.mxu0 0.0
    %2094 = vmatpush1.xpose.msra.mxu0 0.0
    %2095 = vmatprep.subr.mxu0 0.0
    %2096 = vmatpush1.xpose.msra.mxu0 0.0
    %2097 = vmatprep.subr.mxu0 0.0
    %2098 = vmatpush1.xpose.msra.mxu0 0.0
    %2099 = vmatprep.subr.mxu0 0.0
    %2100 = vmatpush1.xpose.msra.mxu0 0.0
    %2101 = vmatprep.subr.mxu0 0.0
    %2102 = vmatpush1.xpose.msra.mxu0 0.0
    %2103 = vmatprep.subr.mxu0 0.0
    %2104 = vmatpush1.xpose.msra.mxu0 0.0
    %2105 = vmatprep.subr.mxu0 0.0
    %2106 = vmatpush1.xpose.msra.mxu0 0.0
    %2107 = vmatprep.subr.mxu0 0.0
    %2108 = vmatpush1.xpose.msra.mxu0 0.0
    %2109 = vmatprep.subr.mxu0 0.0
    %2110 = vmatpush1.xpose.msra.mxu0 0.0
    %2111 = vmatprep.subr.mxu0 0.0
    %2112 = vmatpush1.xpose.msra.mxu0 0.0
    %2113 = vmatprep.subr.mxu0 0.0
    %2114 = vmatpush1.xpose.msra.mxu0 0.0
    %2115 = vmatprep.subr.mxu0 0.0
    %2116 = vmatpush1.xpose.msra.mxu0 0.0
    %2117 = vmatprep.subr.mxu0 0.0
    %2118 = vmatpush1.xpose.msra.mxu0 0.0
    %2119 = vmatprep.mubr.f32.mxu0 0.0
    %2120 = vmatmul.mubr.f32.gmra.mrb[0].mxu0 %v2051
    %v2121 = vpop.f32.mrb[0].mxu0
    %v2122 = vadd.f32 0.0, %v2121
    %v2123 = vpop.f32.mrb[0].mxu0
    %2124 = vdwg.mxu0
    %v2125 = vmul.f32 %v2122, 0.20412415
    %2126 = vrot.lane.b32.xlu0 %v1753, 80
    %v2127 = vpop.permute.xlu0 %2126
    %v2129 = vsel %vm541, %v2127, 0.0
    %2130 = vadd.xlane.f32.xlu0 %v2129
    %v2131 = vpop.xlane.xlu0 %2130
    %v2132 = vmul.f32 %v2131, 0.20412415
    %v2133 = vsel %vm546, %v2125, -inf
    %2134 = vmax.xlane.f32.xlu0 %v2133
    %v2135 = vpop.xlane.xlu0 %2134
    %v2136 = vmax.f32 %v2135, %v2132
    %v2137 = vsub.f32 %v2125, %v2136
    %v2138 = vmul.f32 %v2137, 1.442695
    %v2139 = vpow.pop %v2138
    %v2140 = vsub.f32 %v2132, %v2136
    %v2141 = vmul.f32 %v2140, 1.442695
    %v2142 = vpow.pop %v2141
    %v2143 = vsel %vm546, %v2139, 0.0
    %2144 = vadd.xlane.f32.xlu0 %v2143
    %v2145 = vpop.xlane.xlu0 %2144
    %v2146 = vadd.f32 %v2145, %v2142
    %v2147 = vrcp.pop %v2146
    %v2148 = vmul.f32 %v2142, %v1777
    %2150 = vrot.lane.b32.xlu0 %v1621, 16
    %v2151 = vpop.permute.xlu0 %2150
    %2152 = vrot.lane.b32.xlu0 %v1660, 16
    %v2153 = vpop.permute.xlu0 %2152
    %v2154 = vsel %vm946, %v2151, %v2153
    %2156 = vrot.lane.b32.xlu0 %v2148, 80
    %v2157 = vpop.permute.xlu0 %2156
    %v2160 = vsel %vm572, %v2139, 0
    %v2162 = vsel %vm576, %v2154, 0
    %2164 = vmatprep.subr.mxu0 0.0
    %2165 = vmatpush1.msra.mxu0 %v2162
    %2166 = vmatprep.subr.mxu0 0.0
    %2167 = vmatpush1.msra.mxu0 0.0
    %2168 = vmatprep.subr.mxu0 0.0
    %2169 = vmatpush1.msra.mxu0 0.0
    %2170 = vmatprep.subr.mxu0 0.0
    %2171 = vmatpush1.msra.mxu0 0.0
    %2172 = vmatprep.subr.mxu0 0.0
    %2173 = vmatpush1.msra.mxu0 0.0
    %2174 = vmatprep.subr.mxu0 0.0
    %2175 = vmatpush1.msra.mxu0 0.0
    %2176 = vmatprep.subr.mxu0 0.0
    %2177 = vmatpush1.msra.mxu0 0.0
    %2178 = vmatprep.subr.mxu0 0.0
    %2179 = vmatpush1.msra.mxu0 0.0
    %2180 = vmatprep.subr.mxu0 0.0
    %2181 = vmatpush1.msra.mxu0 0.0
    %2182 = vmatprep.subr.mxu0 0.0
    %2183 = vmatpush1.msra.mxu0 0.0
    %2184 = vmatprep.subr.mxu0 0.0
    %2185 = vmatpush1.msra.mxu0 0.0
    %2186 = vmatprep.subr.mxu0 0.0
    %2187 = vmatpush1.msra.mxu0 0.0
    %2188 = vmatprep.subr.mxu0 0.0
    %2189 = vmatpush1.msra.mxu0 0.0
    %2190 = vmatprep.subr.mxu0 0.0
    %2191 = vmatpush1.msra.mxu0 0.0
    %2192 = vmatprep.subr.mxu0 0.0
    %2193 = vmatpush1.msra.mxu0 0.0
    %2194 = vmatprep.subr.mxu0 0.0
    %2195 = vmatpush1.msra.mxu0 0.0
    %2196 = vmatprep.subr.mxu0 0.0
    %2197 = vmatpush1.msra.mxu0 0.0
    %2198 = vmatprep.subr.mxu0 0.0
    %2199 = vmatpush1.msra.mxu0 0.0
    %2200 = vmatprep.subr.mxu0 0.0
    %2201 = vmatpush1.msra.mxu0 0.0
    %2202 = vmatprep.subr.mxu0 0.0
    %2203 = vmatpush1.msra.mxu0 0.0
    %2204 = vmatprep.subr.mxu0 0.0
    %2205 = vmatpush1.msra.mxu0 0.0
    %2206 = vmatprep.subr.mxu0 0.0
    %2207 = vmatpush1.msra.mxu0 0.0
    %2208 = vmatprep.subr.mxu0 0.0
    %2209 = vmatpush1.msra.mxu0 0.0
    %2210 = vmatprep.subr.mxu0 0.0
    %2211 = vmatpush1.msra.mxu0 0.0
    %2212 = vmatprep.subr.mxu0 0.0
    %2213 = vmatpush1.msra.mxu0 0.0
    %2214 = vmatprep.subr.mxu0 0.0
    %2215 = vmatpush1.msra.mxu0 0.0
    %2216 = vmatprep.subr.mxu0 0.0
    %2217 = vmatpush1.msra.mxu0 0.0
    %2218 = vmatprep.subr.mxu0 0.0
    %2219 = vmatpush1.msra.mxu0 0.0
    %2220 = vmatprep.subr.mxu0 0.0
    %2221 = vmatpush1.msra.mxu0 0.0
    %2222 = vmatprep.subr.mxu0 0.0
    %2223 = vmatpush1.msra.mxu0 0.0
    %2224 = vmatprep.subr.mxu0 0.0
    %2225 = vmatpush1.msra.mxu0 0.0
    %2226 = vmatprep.subr.mxu0 0.0
    %2227 = vmatpush1.msra.mxu0 0.0
    %2228 = vmatprep.mubr.f32.mxu0 0.0
    %2229 = vmatmul.mubr.f32.gmra.mrb[0].mxu0 %v2160
    %v2230 = vpop.f32.mrb[0].mxu0
    %v2231 = vadd.f32 %v2157, %v2230
    %v2232 = vpop.f32.mrb[0].mxu0
    %2233 = vdwg.mxu0
    %v2234 = vmul.f32 %v2231, %v2147
    %2235 = vrot.lane.b32.xlu0 %v1619, 56
    %v2236 = vpop.permute.xlu0 %2235
    %2237 = vrot.lane.b32.xlu0 %v1621, 88
    %v2238 = vpop.permute.xlu0 %2237
    %v2239 = vsel %vm458, %v2236, 0
    %v2241 = vsel %vm458, %v2238, 0
    %2243 = vmatprep.subr.mxu0 0.0
    %2244 = vmatpush1.xpose.msra.mxu0 %v2241
    %2245 = vmatprep.subr.mxu0 0.0
    %2246 = vmatpush1.xpose.msra.mxu0 0.0
    %2247 = vmatprep.subr.mxu0 0.0
    %2248 = vmatpush1.xpose.msra.mxu0 0.0
    %2249 = vmatprep.subr.mxu0 0.0
    %2250 = vmatpush1.xpose.msra.mxu0 0.0
    %2251 = vmatprep.subr.mxu0 0.0
    %2252 = vmatpush1.xpose.msra.mxu0 0.0
    %2253 = vmatprep.subr.mxu0 0.0
    %2254 = vmatpush1.xpose.msra.mxu0 0.0
    %2255 = vmatprep.subr.mxu0 0.0
    %2256 = vmatpush1.xpose.msra.mxu0 0.0
    %2257 = vmatprep.subr.mxu0 0.0
    %2258 = vmatpush1.xpose.msra.mxu0 0.0
    %2259 = vmatprep.subr.mxu0 0.0
    %2260 = vmatpush1.xpose.msra.mxu0 0.0
    %2261 = vmatprep.subr.mxu0 0.0
    %2262 = vmatpush1.xpose.msra.mxu0 0.0
    %2263 = vmatprep.subr.mxu0 0.0
    %2264 = vmatpush1.xpose.msra.mxu0 0.0
    %2265 = vmatprep.subr.mxu0 0.0
    %2266 = vmatpush1.xpose.msra.mxu0 0.0
    %2267 = vmatprep.subr.mxu0 0.0
    %2268 = vmatpush1.xpose.msra.mxu0 0.0
    %2269 = vmatprep.subr.mxu0 0.0
    %2270 = vmatpush1.xpose.msra.mxu0 0.0
    %2271 = vmatprep.subr.mxu0 0.0
    %2272 = vmatpush1.xpose.msra.mxu0 0.0
    %2273 = vmatprep.subr.mxu0 0.0
    %2274 = vmatpush1.xpose.msra.mxu0 0.0
    %2275 = vmatprep.subr.mxu0 0.0
    %2276 = vmatpush1.xpose.msra.mxu0 0.0
    %2277 = vmatprep.subr.mxu0 0.0
    %2278 = vmatpush1.xpose.msra.mxu0 0.0
    %2279 = vmatprep.subr.mxu0 0.0
    %2280 = vmatpush1.xpose.msra.mxu0 0.0
    %2281 = vmatprep.subr.mxu0 0.0
    %2282 = vmatpush1.xpose.msra.mxu0 0.0
    %2283 = vmatprep.subr.mxu0 0.0
    %2284 = vmatpush1.xpose.msra.mxu0 0.0
    %2285 = vmatprep.subr.mxu0 0.0
    %2286 = vmatpush1.xpose.msra.mxu0 0.0
    %2287 = vmatprep.subr.mxu0 0.0
    %2288 = vmatpush1.xpose.msra.mxu0 0.0
    %2289 = vmatprep.subr.mxu0 0.0
    %2290 = vmatpush1.xpose.msra.mxu0 0.0
    %2291 = vmatprep.subr.mxu0 0.0
    %2292 = vmatpush1.xpose.msra.mxu0 0.0
    %2293 = vmatprep.subr.mxu0 0.0
    %2294 = vmatpush1.xpose.msra.mxu0 0.0
    %2295 = vmatprep.subr.mxu0 0.0
    %2296 = vmatpush1.xpose.msra.mxu0 0.0
    %2297 = vmatprep.subr.mxu0 0.0
    %2298 = vmatpush1.xpose.msra.mxu0 0.0
    %2299 = vmatprep.subr.mxu0 0.0
    %2300 = vmatpush1.xpose.msra.mxu0 0.0
    %2301 = vmatprep.subr.mxu0 0.0
    %2302 = vmatpush1.xpose.msra.mxu0 0.0
    %2303 = vmatprep.subr.mxu0 0.0
    %2304 = vmatpush1.xpose.msra.mxu0 0.0
    %2305 = vmatprep.subr.mxu0 0.0
    %2306 = vmatpush1.xpose.msra.mxu0 0.0
    %2307 = vmatprep.mubr.f32.mxu0 0.0
    %2308 = vmatmul.mubr.f32.gmra.mrb[0].mxu0 %v2239
    %v2309 = vpop.f32.mrb[0].mxu0
    %v2310 = vadd.f32 0.0, %v2309
    %v2311 = vpop.f32.mrb[0].mxu0
    %2312 = vdwg.mxu0
    %v2313 = vmul.f32 %v2310, 0.20412415
    %2314 = vrot.lane.b32.xlu0 %v1753, 56
    %v2315 = vpop.permute.xlu0 %2314
    %v2317 = vsel %vm541, %v2315, 0.0
    %2318 = vadd.xlane.f32.xlu0 %v2317
    %v2319 = vpop.xlane.xlu0 %2318
    %v2320 = vmul.f32 %v2319, 0.20412415
    %v2321 = vsel %vm546, %v2313, -inf
    %2322 = vmax.xlane.f32.xlu0 %v2321
    %v2323 = vpop.xlane.xlu0 %2322
    %v2324 = vmax.f32 %v2323, %v2320
    %v2325 = vsub.f32 %v2313, %v2324
    %v2326 = vmul.f32 %v2325, 1.442695
    %v2327 = vpow.pop %v2326
    %v2328 = vsub.f32 %v2320, %v2324
    %v2329 = vmul.f32 %v2328, 1.442695
    %v2330 = vpow.pop %v2329
    %v2331 = vsel %vm546, %v2327, 0.0
    %2332 = vadd.xlane.f32.xlu0 %v2331
    %v2333 = vpop.xlane.xlu0 %2332
    %v2334 = vadd.f32 %v2333, %v2330
    %v2335 = vrcp.pop %v2334
    %v2336 = vmul.f32 %v2330, %v1777
    %2337 = vrot.lane.b32.xlu0 %v1660, 120
    %v2338 = vpop.permute.xlu0 %2337
    %2340 = vrot.lane.b32.xlu0 %v2336, 56
    %v2341 = vpop.permute.xlu0 %2340
    %v2344 = vsel %vm572, %v2327, 0
    %v2346 = vsel %vm576, %v2338, 0
    %2348 = vmatprep.subr.mxu0 0.0
    %2349 = vmatpush1.msra.mxu0 %v2346
    %2350 = vmatprep.subr.mxu0 0.0
    %2351 = vmatpush1.msra.mxu0 0.0
    %2352 = vmatprep.subr.mxu0 0.0
    %2353 = vmatpush1.msra.mxu0 0.0
    %2354 = vmatprep.subr.mxu0 0.0
    %2355 = vmatpush1.msra.mxu0 0.0
    %2356 = vmatprep.subr.mxu0 0.0
    %2357 = vmatpush1.msra.mxu0 0.0
    %2358 = vmatprep.subr.mxu0 0.0
    %2359 = vmatpush1.msra.mxu0 0.0
    %2360 = vmatprep.subr.mxu0 0.0
    %2361 = vmatpush1.msra.mxu0 0.0
    %2362 = vmatprep.subr.mxu0 0.0
    %2363 = vmatpush1.msra.mxu0 0.0
    %2364 = vmatprep.subr.mxu0 0.0
    %2365 = vmatpush1.msra.mxu0 0.0
    %2366 = vmatprep.subr.mxu0 0.0
    %2367 = vmatpush1.msra.mxu0 0.0
    %2368 = vmatprep.subr.mxu0 0.0
    %2369 = vmatpush1.msra.mxu0 0.0
    %2370 = vmatprep.subr.mxu0 0.0
    %2371 = vmatpush1.msra.mxu0 0.0
    %2372 = vmatprep.subr.mxu0 0.0
    %2373 = vmatpush1.msra.mxu0 0.0
    %2374 = vmatprep.subr.mxu0 0.0
    %2375 = vmatpush1.msra.mxu0 0.0
    %2376 = vmatprep.subr.mxu0 0.0
    %2377 = vmatpush1.msra.mxu0 0.0
    %2378 = vmatprep.subr.mxu0 0.0
    %2379 = vmatpush1.msra.mxu0 0.0
    %2380 = vmatprep.subr.mxu0 0.0
    %2381 = vmatpush1.msra.mxu0 0.0
    %2382 = vmatprep.subr.mxu0 0.0
    %2383 = vmatpush1.msra.mxu0 0.0
    %2384 = vmatprep.subr.mxu0 0.0
    %2385 = vmatpush1.msra.mxu0 0.0
    %2386 = vmatprep.subr.mxu0 0.0
    %2387 = vmatpush1.msra.mxu0 0.0
    %2388 = vmatprep.subr.mxu0 0.0
    %2389 = vmatpush1.msra.mxu0 0.0
    %2390 = vmatprep.subr.mxu0 0.0
    %2391 = vmatpush1.msra.mxu0 0.0
    %2392 = vmatprep.subr.mxu0 0.0
    %2393 = vmatpush1.msra.mxu0 0.0
    %2394 = vmatprep.subr.mxu0 0.0
    %2395 = vmatpush1.msra.mxu0 0.0
    %2396 = vmatprep.subr.mxu0 0.0
    %2397 = vmatpush1.msra.mxu0 0.0
    %2398 = vmatprep.subr.mxu0 0.0
    %2399 = vmatpush1.msra.mxu0 0.0
    %2400 = vmatprep.subr.mxu0 0.0
    %2401 = vmatpush1.msra.mxu0 0.0
    %2402 = vmatprep.subr.mxu0 0.0
    %2403 = vmatpush1.msra.mxu0 0.0
    %2404 = vmatprep.subr.mxu0 0.0
    %2405 = vmatpush1.msra.mxu0 0.0
    %2406 = vmatprep.subr.mxu0 0.0
    %2407 = vmatpush1.msra.mxu0 0.0
    %2408 = vmatprep.subr.mxu0 0.0
    %2409 = vmatpush1.msra.mxu0 0.0
    %2410 = vmatprep.subr.mxu0 0.0
    %2411 = vmatpush1.msra.mxu0 0.0
    %2412 = vmatprep.mubr.f32.mxu0 0.0
    %2413 = vmatmul.mubr.f32.gmra.mrb[0].mxu0 %v2344
    %v2414 = vpop.f32.mrb[0].mxu0
    %v2415 = vadd.f32 %v2341, %v2414
    %v2416 = vpop.f32.mrb[0].mxu0
    %2417 = vdwg.mxu0
    %v2418 = vmul.f32 %v2415, %v2335
    %2420 = vrot.lane.b32.xlu0 %v2046, 24
    %v2421 = vpop.permute.xlu0 %2420
    %2424 = vrot.lane.b32.xlu0 %v2234, 48
    %v2425 = vpop.permute.xlu0 %2424
    %2428 = vrot.lane.b32.xlu0 %v2418, 72
    %v2429 = vpop.permute.xlu0 %2428
    %v2431 = vsel %vm458, %v1858, %v2421
    %v2432 = vsel %vm1225, %v2431, %v2425
    %v2433 = vsel %vm1227, %v2432, %v2429
    %v2434 = vpack.c.bf16 %v2433, %v2433
    %s2435 = scalar_lea.vmem [#allocation7], 48
    %v2436 = vld [vmem:[%s2435] sm:$0xf]
    %v2437 = vld [vmem:[%s2435 + $0x4] sm:$0xf]
    %v2438 = vld [vmem:[%s2435 + $0x8] sm:$0xf]
    %v2439 = vld [vmem:[%s2435 + $0xc] sm:$0xf]
    %v2440 = vld [vmem:[%s2435 + $0x10] sm:$0xf]
    %v2441 = vld [vmem:[%s2435 + $0x14] sm:$0xf]
    %v2442 = vld [vmem:[%s2435 + $0x18] sm:$0xf]
    %v2443 = vld [vmem:[%s2435 + $0x1c] sm:$0xf]
    %v2444 = vld [vmem:[%s2435 + $0x20] sm:$0xf]
    %v2445 = vld [vmem:[%s2435 + $0x24] sm:$0xf]
    %v2446 = vld [vmem:[%s2435 + $0x28] sm:$0xf]
    %v2447 = vld [vmem:[%s2435 + $0x2c] sm:$0xf]
    %s2448 = scalar_lea.vmem [#allocation8], 1
    %v2449 = vld [vmem:[%s2448] sm:$0x1]
    %v2451 = vlaneseq
    %v2452 = vshrl.u32 %v2451, 7
    %v2453 = vsub.s32 0, %v2452
    %v2454 = vrot.slane %v2449, %v2453
    %v2468 = vunpack.c.l.b16 %v2436
    %v2469 = vunpack.c.l.b16 %v2437
    %v2470 = vunpack.c.l.b16 %v2438
    %v2471 = vunpack.c.l.b16 %v2439
    %v2472 = vunpack.c.l.b16 %v2440
    %v2473 = vunpack.c.l.b16 %v2441
    %v2474 = vunpack.c.l.b16 %v2442
    %v2475 = vunpack.c.l.b16 %v2443
    %v2476 = vunpack.c.l.b16 %v2444
    %v2477 = vunpack.c.l.b16 %v2445
    %v2478 = vunpack.c.l.b16 %v2446
    %v2479 = vunpack.c.l.b16 %v2447
    %v2480 = vpack.c.b16 %v2469, %v2468
    %v2481 = vpack.c.b16 %v2471, %v2470
    %v2482 = vpack.c.b16 %v2473, %v2472
    %v2483 = vpack.c.b16 %v2475, %v2474
    %v2484 = vpack.c.b16 %v2477, %v2476
    %v2485 = vpack.c.b16 %v2479, %v2478
    %v2493 = vsel %vm368, %v2434, 0
    %2495 = vmatprep.subr.bf16.mxu0 0
    %2496 = vmatpush1.bf16.msra.mxu0 %v2480
    %2497 = vmatprep.subr.bf16.mxu0 0
    %2498 = vmatpush1.bf16.msra.mxu0 %v2481
    %2499 = vmatprep.subr.bf16.mxu0 0
    %2500 = vmatpush1.bf16.msra.mxu0 %v2482
    %2501 = vmatprep.subr.bf16.mxu0 0
    %2502 = vmatpush1.bf16.msra.mxu0 %v2483
    %2503 = vmatprep.subr.bf16.mxu0 0
    %2504 = vmatpush1.bf16.msra.mxu0 %v2484
    %2505 = vmatprep.subr.bf16.mxu0 0
    %2506 = vmatpush1.bf16.msra.mxu0 %v2485
    %2507 = vmatprep.subr.bf16.mxu0 0
    %2508 = vmatpush1.bf16.msra.mxu0 0
    %2509 = vmatprep.subr.bf16.mxu0 0
    %2510 = vmatpush1.bf16.msra.mxu0 0
    %2511 = vmatprep.subr.bf16.mxu0 0
    %2512 = vmatpush1.bf16.msra.mxu0 0
    %2513 = vmatprep.subr.bf16.mxu0 0
    %2514 = vmatpush1.bf16.msra.mxu0 0
    %2515 = vmatprep.subr.bf16.mxu0 0
    %2516 = vmatpush1.bf16.msra.mxu0 0
    %2517 = vmatprep.subr.bf16.mxu0 0
    %2518 = vmatpush1.bf16.msra.mxu0 0
    %2519 = vmatprep.subr.bf16.mxu0 0
    %2520 = vmatpush1.bf16.msra.mxu0 0
    %2521 = vmatprep.subr.bf16.mxu0 0
    %2522 = vmatpush1.bf16.msra.mxu0 0
    %2523 = vmatprep.subr.bf16.mxu0 0
    %2524 = vmatpush1.bf16.msra.mxu0 0
    %2525 = vmatprep.subr.bf16.mxu0 0
    %2526 = vmatpush1.bf16.msra.mxu0 0
    %2527 = vmatprep.mubr.bf16.mxu0 0
    %2528 = vmatmul.mubr.bf16.gmra.mrb[0].mxu0 %v2493
    %v2529 = vpop.f32.mrb[0].mxu0
    %v2530 = vadd.f32 %v2454, %v2529
    %v2531 = vpop.f32.mrb[0].mxu0
    %v2532 = vpop.f32.mrb[0].mxu0
    %v2533 = vpop.f32.mrb[0].mxu0
    %2534 = vdwg.mxu0
    %v2535 = vadd.f32 %v1409, %v2530
    %s2536 = scalar_lea.vmem [#allocation10], 1
    %v2537 = vld [vmem:[%s2536] sm:$0x1]
    %s2538 = scalar_lea.vmem [#allocation11], 1
    %v2539 = vld [vmem:[%s2538] sm:$0x1]
    %v2540 = vsel %vm201, %v2535, 0.0
    %2541 = vadd.xlane.f32.xlu0 %v2540
    %v2542 = vpop.xlane.xlu0 %2541
    %v2543 = vmul.f32 %v2542, %v205
    %v2544 = vsub.f32 %v2535, %v2543
    %v2545 = vmul.f32 %v2544, %v2544
    %v2546 = vsel %vm201, %v2545, 0.0
    %2547 = vadd.xlane.f32.xlu0 %v2546
    %v2548 = vpop.xlane.xlu0 %2547
    %v2549 = vmul.f32 %v2548, %v205
    %v2550 = vadd.f32 %v2549, 1e-05
    %v2551 = vrsqrt.pop %v2550
    %v2552 = vmul.f32 %v2544, %v2551
    %v2554 = vlaneseq
    %v2555 = vshrl.u32 %v2554, 7
    %v2556 = vsub.s32 0, %v2555
    %v2557 = vrot.slane %v2537, %v2556
    %v2559 = vmul.f32 %v2552, %v2557
    %v2561 = vlaneseq
    %v2562 = vshrl.u32 %v2561, 7
    %v2563 = vsub.s32 0, %v2562
    %v2564 = vrot.slane %v2539, %v2563
    %v2566 = vadd.f32 %v2559, %v2564
    %s2567 = scalar_lea.vmem [#allocation13], 1
    %v2568 = vld [vmem:[%s2567] sm:$0x1]
    %v2570 = vlaneseq
    %v2571 = vshrl.u32 %v2570, 7
    %v2572 = vsub.s32 0, %v2571
    %v2573 = vrot.slane %v2568, %v2572
    %v2575 = vmul.f32 %v1362, %v2573
    %s2576 = scalar_lea.vmem [#allocation14], 1
    %v2577 = vld [vmem:[%s2576] sm:$0x1]
    %v2579 = vlaneseq
    %v2580 = vshrl.u32 %v2579, 7
    %v2581 = vsub.s32 0, %v2580
    %v2582 = vrot.slane %v2577, %v2581
    %v2584 = vadd.f32 %v2575, %v2582
    %v2585 = vmul.f32 %v2566, 2.0
    %v2586 = vadd.f32 %v2585, %v2584
    %s2587 = scalar_lea.vmem [#allocation16], 1
    %v2588 = vld [vmem:[%s2587] sm:$0x1]
    %s2589 = scalar_lea.vmem [#allocation17], 1
    %v2590 = vld [vmem:[%s2589] sm:$0x1]
    %v2591 = vsel %vm201, %v2586, 0.0
    %2592 = vadd.xlane.f32.xlu0 %v2591
    %v2593 = vpop.xlane.xlu0 %2592
    %v2594 = vmul.f32 %v2593, %v205
    %v2595 = vsub.f32 %v2586, %v2594
    %v2596 = vmul.f32 %v2595, %v2595
    %v2597 = vsel %vm201, %v2596, 0.0
    %2598 = vadd.xlane.f32.xlu0 %v2597
    %v2599 = vpop.xlane.xlu0 %2598
    %v2600 = vmul.f32 %v2599, %v205
    %v2601 = vadd.f32 %v2600, 1e-05
    %v2602 = vrsqrt.pop %v2601
    %v2603 = vmul.f32 %v2595, %v2602
    %v2605 = vlaneseq
    %v2606 = vshrl.u32 %v2605, 7
    %v2607 = vsub.s32 0, %v2606
    %v2608 = vrot.slane %v2588, %v2607
    %v2610 = vmul.f32 %v2603, %v2608
    %v2612 = vlaneseq
    %v2613 = vshrl.u32 %v2612, 7
    %v2614 = vsub.s32 0, %v2613
    %v2615 = vrot.slane %v2590, %v2614
    %v2617 = vadd.f32 %v2610, %v2615
    %v2618 = vpack.c.bf16 %v2617, %v2617
    %v2619 = vld [vmem:[%s16] sm:$0xf]
    %v2620 = vld [vmem:[%s16 + $0x4] sm:$0xf]
    %v2621 = vld [vmem:[%s16 + $0x8] sm:$0xf]
    %v2622 = vld [vmem:[%s16 + $0xc] sm:$0xf]
    %v2623 = vld [vmem:[%s16 + $0x10] sm:$0xf]
    %v2624 = vld [vmem:[%s16 + $0x14] sm:$0xf]
    %v2625 = vld [vmem:[%s16 + $0x18] sm:$0xf]
    %v2626 = vld [vmem:[%s16 + $0x1c] sm:$0xf]
    %v2627 = vld [vmem:[%s16 + $0x20] sm:$0xf]
    %v2628 = vld [vmem:[%s16 + $0x24] sm:$0xf]
    %v2629 = vld [vmem:[%s16 + $0x28] sm:$0xf]
    %v2630 = vld [vmem:[%s16 + $0x2c] sm:$0xf]
    %v2631 = vld [vmem:[%s17] sm:$0x1]
    %v2633 = vlaneseq
    %v2634 = vshrl.u32 %v2633, 7
    %v2635 = vsub.s32 0, %v2634
    %v2636 = vrot.slane %v2631, %v2635
    %v2650 = vunpack.c.l.b16 %v2619
    %v2651 = vunpack.c.l.b16 %v2620
    %v2652 = vunpack.c.l.b16 %v2621
    %v2653 = vunpack.c.l.b16 %v2622
    %v2654 = vunpack.c.l.b16 %v2623
    %v2655 = vunpack.c.l.b16 %v2624
    %v2656 = vunpack.c.l.b16 %v2625
    %v2657 = vunpack.c.l.b16 %v2626
    %v2658 = vunpack.c.l.b16 %v2627
    %v2659 = vunpack.c.l.b16 %v2628
    %v2660 = vunpack.c.l.b16 %v2629
    %v2661 = vunpack.c.l.b16 %v2630
    %v2662 = vpack.c.b16 %v2651, %v2650
    %v2663 = vpack.c.b16 %v2653, %v2652
    %v2664 = vpack.c.b16 %v2655, %v2654
    %v2665 = vpack.c.b16 %v2657, %v2656
    %v2666 = vpack.c.b16 %v2659, %v2658
    %v2667 = vpack.c.b16 %v2661, %v2660
    %v2675 = vsel %vm368, %v2618, 0
    %2677 = vmatprep.subr.bf16.mxu0 0
    %2678 = vmatpush1.bf16.msra.mxu0 %v2662
    %2679 = vmatprep.subr.bf16.mxu0 0
    %2680 = vmatpush1.bf16.msra.mxu0 %v2663
    %2681 = vmatprep.subr.bf16.mxu0 0
    %2682 = vmatpush1.bf16.msra.mxu0 %v2664
    %2683 = vmatprep.subr.bf16.mxu0 0
    %2684 = vmatpush1.bf16.msra.mxu0 %v2665
    %2685 = vmatprep.subr.bf16.mxu0 0
    %2686 = vmatpush1.bf16.msra.mxu0 %v2666
    %2687 = vmatprep.subr.bf16.mxu0 0
    %2688 = vmatpush1.bf16.msra.mxu0 %v2667
    %2689 = vmatprep.subr.bf16.mxu0 0
    %2690 = vmatpush1.bf16.msra.mxu0 0
    %2691 = vmatprep.subr.bf16.mxu0 0
    %2692 = vmatpush1.bf16.msra.mxu0 0
    %2693 = vmatprep.subr.bf16.mxu0 0
    %2694 = vmatpush1.bf16.msra.mxu0 0
    %2695 = vmatprep.subr.bf16.mxu0 0
    %2696 = vmatpush1.bf16.msra.mxu0 0
    %2697 = vmatprep.subr.bf16.mxu0 0
    %2698 = vmatpush1.bf16.msra.mxu0 0
    %2699 = vmatprep.subr.bf16.mxu0 0
    %2700 = vmatpush1.bf16.msra.mxu0 0
    %2701 = vmatprep.subr.bf16.mxu0 0
    %2702 = vmatpush1.bf16.msra.mxu0 0
    %2703 = vmatprep.subr.bf16.mxu0 0
    %2704 = vmatpush1.bf16.msra.mxu0 0
    %2705 = vmatprep.subr.bf16.mxu0 0
    %2706 = vmatpush1.bf16.msra.mxu0 0
    %2707 = vmatprep.subr.bf16.mxu0 0
    %2708 = vmatpush1.bf16.msra.mxu0 0
    %2709 = vmatprep.mubr.bf16.mxu0 0
    %2710 = vmatmul.mubr.bf16.gmra.mrb[0].mxu0 %v2675
    %v2711 = vpop.f32.mrb[0].mxu0
    %v2712 = vadd.f32 %v2636, %v2711
    %v2713 = vpop.f32.mrb[0].mxu0
    %v2714 = vpop.f32.mrb[0].mxu0
    %v2715 = vpop.f32.mrb[0].mxu0
    %2716 = vdwg.mxu0
    %2717 = vst [vmem:[#allocation19] sm:$0xf] %v2712
    // Predicated region
    $region114: #{tpu_custom_call.1} parent=1 // pred_check
      _
    $region115: #{tpu_custom_call.1} parent=1 // pred_check_branch
      %2719 = sbr.rel (0) target = $region117
    $region116: #{tpu_custom_call.1} parent=1 // pred_region
      %s2721 = ssub.s32 64, 64
      %2722 = vsyncadd [#allocation4], %s2721
      %s2724 = sshll.u32 [#allocation19], 4
      %s2725 = int_to_ptr.vmem [resolvable:$true] %s2724
      %2727 = dma.vmem_to_hbm [thread:$0]  %s2725, 64, %s18, [#allocation4]
    $region117: #{tpu_custom_call.1} parent=1 // pred_fallthru
      _
    // Predicated region
    $region118: #{tpu_custom_call.1} parent=1 // pred_check
      _
    $region119: #{tpu_custom_call.1} parent=1 // pred_check_branch
      %2729 = sbr.rel (0) target = $region121
    $region120: #{tpu_custom_call.1} parent=1 // pred_region
      %2730 = dma.done [#allocation4], 64
    $region121: #{tpu_custom_call.1} parent=1 // pred_fallthru
      _
    %2731 = vsyncpa [#allocation3], 1
    %2732 = vsyncpa [#allocation6], 1
    %2733 = vsyncpa [#allocation9], 1
    %2734 = vsyncpa [#allocation12], 1
    %2735 = vsyncpa [#allocation15], 1
    %2736 = vsyncpa [#allocation18], 1
    %2737 = vsyncpa [#allocation4], 1

</llo_original>
